<compile_context>
chip_gen: v7x
topology: tpu7x:2x2x1
jax: 0.10.0
libtpu: 0.0.40
codegen_flags: <defaults>
</compile_context>

<pallas_src>
import functools
import typing

import numpy as np
import jax
import jax.numpy as jnp
from jax.experimental import pallas as pl
from jax.experimental.pallas import tpu as pltpu


def _build_buffers(mapping: typing.Sequence[typing.Sequence[int]],
                   from_joint_number: int):
    """Deterministically build the A (position regressor) and I (rotation index) buffers."""
    rotation_indices = []
    position_regressors = []
    for indices in mapping:
        regressor = np.zeros(from_joint_number, dtype=np.float32)
        if len(indices) > 1:
            rotation_indices.append(from_joint_number)  # appended identity
        else:
            rotation_indices.append(indices[0])
        for index in indices:
            regressor[index] = 1.0 / len(indices)
        position_regressors.append(regressor)
    A = np.stack(position_regressors).astype(np.float32)   # (L, J)
    I = np.asarray(rotation_indices, dtype=np.int32)       # (L,)
    return jnp.asarray(A), jnp.asarray(I)


def _round_up(x: int, m: int) -> int:
    return -(-x // m) * m


def _choose_tile(n: int, tn: int, min_blocks: int = 4) -> int:
    """Frame-tile size: big enough to amortize ~0.35us/step pipeline overhead,
    capped so the 'parallel' grid has >= min_blocks steps (feeds both v7x
    TensorCores), multiple of 8 (sublane granularity) unless it covers N."""
    cap = _round_up(-(-n // min_blocks), 8)
    t = min(int(tn), cap, n)
    if t < n:
        t = max(8, (t // 8) * 8)
    return max(t, 1)


def _to_smplh_kernel(wp_ref, wr_ref, bias_ref, pos_ref, rot_ref,
                     pos_out_ref, rot_out_ref):
    # wp_ref:   (J*C, L*C)   kron(A.T, I_3)          (resident; constant block index)
    # wr_ref:   (J*6, L*6)   kron(S.T, I_6)          (resident)
    # bias_ref: (1,   L*6)   identity-rotation row   (resident, f32)
    # pos_ref:  (TN, J*C)    natural frame-major position tile
    # rot_ref:  (TN, J*6)    natural frame-major flattened-rotation tile
    pos_out_ref[...] = jnp.dot(
        pos_ref[...], wp_ref[...],
        preferred_element_type=jnp.float32,
        precision=jax.lax.Precision.HIGHEST,
    ).astype(pos_out_ref.dtype)

    rot = jnp.dot(
        rot_ref[...], wr_ref[...],
        preferred_element_type=jnp.float32,
        precision=jax.lax.Precision.HIGHEST,
    ) + bias_ref[...]                       # (TN, L*6) + (1, L*6) broadcast
    rot_out_ref[...] = rot.astype(rot_out_ref.dtype)


@functools.partial(jax.jit, static_argnames=("tn",))
def to_smplh_forward(positions: jax.Array,
                     rotations: jax.Array,
                     A: jax.Array,
                     I: jax.Array,
                     *,
                     tn: int = 8192) -> typing.Mapping[str, jax.Array]:
    """positions: (B,T,J,C), rotations: (B,T,J,3,2); outputs keep the input dtype."""
    B, T, J, C = positions.shape
    L = A.shape[0]
    R = 6                         # flattened 3x2 rotation representation
    N = B * T

    # --- free reshapes to the natural contiguous 2-D slabs ---------------------
    pos2d = positions.reshape(N, J * C)
    rot2d = rotations.reshape(N, J * R)

    # --- tiny Kronecker-expanded weights + identity bias (built once, ~9 KiB) --
    A32 = A.astype(jnp.float32)
    S = jax.nn.one_hot(I, J, dtype=jnp.float32)             # (L, J); I==J rows -> all-zero
    Wp = jnp.kron(A32.T, jnp.eye(C, dtype=jnp.float32))     # (J*C, L*C)
    Wr = jnp.kron(S.T, jnp.eye(R, dtype=jnp.float32))       # (J*R, L*R)
    id_flag = (I == J).astype(jnp.float32)                  # (L,)
    id_pattern = jnp.asarray([1., 0., 0., 1., 0., 0.], jnp.float32)  # eye(3)[:, :2].ravel()
    bias = (id_flag[:, None] * id_pattern[None, :]).reshape(1, L * R)  # (1, L*6), f32

    # stream weights in the input dtype (bf16 inputs stay bf16 end-to-end)
    wp = Wp.astype(positions.dtype)
    wr = Wr.astype(rotations.dtype)

    # --- frame tiling -----------------------------------------------------------
    tn_eff = _choose_tile(N, tn)
    num_blocks = pl.cdiv(N, tn_eff)

    pos_isize = jnp.dtype(positions.dtype).itemsize
    rot_isize = jnp.dtype(rotations.dtype).itemsize
    cost = pl.CostEstimate(
        flops=2 * N * ((J * C) * (L * C) + (J * R) * (L * R)),
        transcendentals=0,
        bytes_accessed=N * ((J * C + L * C) * pos_isize + (J * R + L * R) * rot_isize),
    )

    pos_o, rot_o = pl.pallas_call(
        _to_smplh_kernel,
        out_shape=(
            jax.ShapeDtypeStruct((N, L * C), positions.dtype),
            jax.ShapeDtypeStruct((N, L * R), rotations.dtype),
        ),
        grid=(num_blocks,),
        in_specs=[
            pl.BlockSpec((J * C, L * C), lambda i: (0, 0)),    # Wp     (resident)
            pl.BlockSpec((J * R, L * R), lambda i: (0, 0)),    # Wr     (resident)
            pl.BlockSpec((1, L * R), lambda i: (0, 0)),        # bias   (resident)
            pl.BlockSpec((tn_eff, J * C), lambda i: (i, 0)),   # positions tile
            pl.BlockSpec((tn_eff, J * R), lambda i: (i, 0)),   # rotations tile
        ],
        out_specs=(
            pl.BlockSpec((tn_eff, L * C), lambda i: (i, 0)),
            pl.BlockSpec((tn_eff, L * R), lambda i: (i, 0)),
        ),
        compiler_params=pltpu.CompilerParams(
            dimension_semantics=("parallel",)),
        cost_estimate=cost,
    )(wp, wr, bias, pos2d, rot2d)

    # --- free reshapes back to the reference output layout ----------------------
    return {
        "positions": pos_o.reshape(B, T, L, C),
        "rotations": rot_o.reshape(B, T, L, 3, 2),
    }


def _reference(positions, rotations, A, I):
    """Numpy reference mirroring the PyTorch forward (float64 accumulation)."""
    pos = np.einsum("btjc,lj->btlc",
                    np.asarray(positions, np.float64),
                    np.asarray(A, np.float64)).astype(np.float32)
    rot_np = np.asarray(rotations)
    Bb, Tt = rot_np.shape[:2]
    eye = np.broadcast_to(np.eye(3, dtype=rot_np.dtype)[:, :2], (Bb, Tt, 1, 3, 2))
    padded = np.concatenate([rot_np, eye], axis=2)
    rot = padded[:, :, np.asarray(I)]
    return {"positions": pos, "rotations": rot}


if __name__ == "__main__":
    # Small, deterministic configuration.
    from_joint_number = 8                                # J: source joints
    mapping = [[0], [1, 2], [3], [4, 5, 6], [7], [2]]    # L = 6 target joints
    A, I = _build_buffers(mapping, from_joint_number)

    B, T, J, C = 2, 512, from_joint_number, 3
    key = jax.random.PRNGKey(0)
    k_pos, k_rot = jax.random.split(key)
    positions = jax.random.normal(k_pos, (B, T, J, C), dtype=jnp.float32)
    rotations = jax.random.normal(k_rot, (B, T, J, 3, 2), dtype=jnp.float32)

    # Default path: 4 "parallel" grid steps of 256 frames each for N=1024.
    out_default = to_smplh_forward(positions, rotations, A, I)
    jax.block_until_ready(out_default)
    # Ragged path: tile that does not divide N (exercises boundary clipping).
    out_ragged = to_smplh_forward(positions, rotations, A, I, tn=192)
    jax.block_until_ready(out_ragged)

    ref = _reference(positions, rotations, A, I)
    for out in (out_default, out_ragged):
        assert out["positions"].shape == (B, T, len(mapping), C)
        assert out["rotations"].shape == (B, T, len(mapping), 3, 2)
        np.testing.assert_allclose(np.asarray(out["positions"]),
                                   ref["positions"], rtol=1e-5, atol=1e-5)
        np.testing.assert_allclose(np.asarray(out["rotations"]),
                                   ref["rotations"], rtol=1e-5, atol=1e-5)
    print("KERNEL_OK")
</pallas_src>

<mosaic_0001>
module attributes {stable_mosaic.version = 11 : i64} {
  func.func @_to_smplh_kernel(%arg0: i32, %arg1: memref<24x18xf32, #tpu.memory_space<vmem>>, %arg2: memref<48x36xf32, #tpu.memory_space<vmem>>, %arg3: memref<1x36xf32, #tpu.memory_space<vmem>>, %arg4: memref<256x24xf32, #tpu.memory_space<vmem>>, %arg5: memref<256x48xf32, #tpu.memory_space<vmem>>, %arg6: memref<256x18xf32, #tpu.memory_space<vmem>>, %arg7: memref<256x36xf32, #tpu.memory_space<vmem>>) attributes {dimension_semantics = [#tpu.dimension_semantics<parallel>], iteration_bounds = array<i64: 4>, scalar_prefetch = 0 : i64, scratch_operands = 0 : i64, tpu.core_type = #tpu.core_type<tc>, window_params = [{pipeline_mode = #tpu.pipeline_mode<synchronous>, transform_indices = @transform_0, window_bounds = array<i64: 24, 18>}, {pipeline_mode = #tpu.pipeline_mode<synchronous>, transform_indices = @transform_1, window_bounds = array<i64: 48, 36>}, {pipeline_mode = #tpu.pipeline_mode<synchronous>, transform_indices = @transform_2, window_bounds = array<i64: 1, 36>}, {transform_indices = @transform_3, window_bounds = array<i64: 256, 24>}, {transform_indices = @transform_4, window_bounds = array<i64: 256, 48>}, {transform_indices = @transform_5, window_bounds = array<i64: 256, 18>}, {transform_indices = @transform_6, window_bounds = array<i64: 256, 36>}]} {
    %c0 = arith.constant 0 : index
    %c0_0 = arith.constant 0 : index
    %0 = vector.load %arg4[%c0, %c0_0] : memref<256x24xf32, #tpu.memory_space<vmem>>, vector<256x24xf32>
    %c0_1 = arith.constant 0 : index
    %c0_2 = arith.constant 0 : index
    %1 = vector.load %arg1[%c0_1, %c0_2] : memref<24x18xf32, #tpu.memory_space<vmem>>, vector<24x18xf32>
    %cst = arith.constant dense<0.000000e+00> : vector<256x18xf32>
    %2 = tpu.matmul %0, %1, %cst {dimension_numbers = #tpu.dot_dimension_numbers<[1], [0], [0], [1], [0, 0, 1, 1], [], []>, precision = #tpu.contract_precision<fp32>} : vector<256x24xf32>, vector<24x18xf32>, vector<256x18xf32> -> vector<256x18xf32>
    %c0_3 = arith.constant 0 : index
    %c0_4 = arith.constant 0 : index
    %3 = vector.load %arg6[%c0_3, %c0_4] : memref<256x18xf32, #tpu.memory_space<vmem>>, vector<256x18xf32>
    tpu.vector_store %arg6[%c0_3, %c0_4], %2 {strides = array<i32>} : memref<256x18xf32, #tpu.memory_space<vmem>>, vector<256x18xf32>,
    %c0_5 = arith.constant 0 : index
    %c0_6 = arith.constant 0 : index
    %4 = vector.load %arg5[%c0_5, %c0_6] : memref<256x48xf32, #tpu.memory_space<vmem>>, vector<256x48xf32>
    %c0_7 = arith.constant 0 : index
    %c0_8 = arith.constant 0 : index
    %5 = vector.load %arg2[%c0_7, %c0_8] : memref<48x36xf32, #tpu.memory_space<vmem>>, vector<48x36xf32>
    %cst_9 = arith.constant dense<0.000000e+00> : vector<256x36xf32>
    %6 = tpu.matmul %4, %5, %cst_9 {dimension_numbers = #tpu.dot_dimension_numbers<[1], [0], [0], [1], [0, 0, 1, 1], [], []>, precision = #tpu.contract_precision<fp32>} : vector<256x48xf32>, vector<48x36xf32>, vector<256x36xf32> -> vector<256x36xf32>
    %c0_10 = arith.constant 0 : index
    %c0_11 = arith.constant 0 : index
    %7 = vector.load %arg3[%c0_10, %c0_11] : memref<1x36xf32, #tpu.memory_space<vmem>>, vector<1x36xf32>
    %8 = vector.broadcast %7 : vector<1x36xf32> to vector<256x36xf32>
    %9 = arith.addf %6, %8 : vector<256x36xf32>
    %c0_12 = arith.constant 0 : index
    %c0_13 = arith.constant 0 : index
    %10 = vector.load %arg7[%c0_12, %c0_13] : memref<256x36xf32, #tpu.memory_space<vmem>>, vector<256x36xf32>
    tpu.vector_store %arg7[%c0_12, %c0_13], %9 {strides = array<i32>} : memref<256x36xf32, #tpu.memory_space<vmem>>, vector<256x36xf32>,
    return
  }
  func.func @transform_0(%arg0: i32) -> (i32, i32) {
    %c0_i32 = arith.constant 0 : i32
    %c0_i32_0 = arith.constant 0 : i32
    %c0_i32_1 = arith.constant 0 : i32
    return %c0_i32, %c0_i32_0 : i32, i32
  }
  func.func @transform_1(%arg0: i32) -> (i32, i32) {
    %c0_i32 = arith.constant 0 : i32
    %c0_i32_0 = arith.constant 0 : i32
    %c0_i32_1 = arith.constant 0 : i32
    return %c0_i32, %c0_i32_0 : i32, i32
  }
  func.func @transform_2(%arg0: i32) -> (i32, i32) {
    %c0_i32 = arith.constant 0 : i32
    %c0_i32_0 = arith.constant 0 : i32
    %c0_i32_1 = arith.constant 0 : i32
    return %c0_i32, %c0_i32_0 : i32, i32
  }
  func.func @transform_3(%arg0: i32) -> (i32, i32) {
    %c0_i32 = arith.constant 0 : i32
    %c0_i32_0 = arith.constant 0 : i32
    return %arg0, %c0_i32 : i32, i32
  }
  func.func @transform_4(%arg0: i32) -> (i32, i32) {
    %c0_i32 = arith.constant 0 : i32
    %c0_i32_0 = arith.constant 0 : i32
    return %arg0, %c0_i32 : i32, i32
  }
  func.func @transform_5(%arg0: i32) -> (i32, i32) {
    %c0_i32 = arith.constant 0 : i32
    %c0_i32_0 = arith.constant 0 : i32
    return %arg0, %c0_i32 : i32, i32
  }
  func.func @transform_6(%arg0: i32) -> (i32, i32) {
    %c0_i32 = arith.constant 0 : i32
    %c0_i32_0 = arith.constant 0 : i32
    return %arg0, %c0_i32 : i32, i32
  }
}

</mosaic_0001>

<llo_original>
// kernel: to_smplh_forward.1
$region0: #{to_smplh_forward.1}
  #allocation0 [shape = 'u32[]', space=smem, size = 0x4, offset = 0x4, fixed_abs, tag = 'smem constant byte address 0x4 - core index']
  #allocation1 [shape = 'u32[144,128]{1,0:T(1,128)}', space=vmem, size = 0x12000, scoped, tag = 'internal scratch']
  %s0 = inlined_call_operand.vmem [shape: f32[24,18], index: 0, kind: input, shape index: {}]
  %s1 = inlined_call_operand.vmem [shape: f32[48,36], index: 1, kind: input, shape index: {}]
  %s2 = inlined_call_operand.vmem [shape: f32[1,36], index: 2, kind: input, shape index: {}]
  %s3 = inlined_call_operand.vmem [shape: f32[1024,24], index: 3, kind: input, shape index: {}]
  %s4 = inlined_call_operand.vmem [shape: f32[1024,48], index: 4, kind: input, shape index: {}]
  %s5 = inlined_call_operand.vmem [shape: f32[1024,18], index: 5, kind: output, shape index: {0}]
  %s6 = inlined_call_operand.vmem [shape: f32[1024,36], index: 6, kind: output, shape index: {1}]
  %7 = xla_tuple %s5, %s6
  %s8 = sld [smem:[#allocation0]]
  $region61: #{to_smplh_forward.1} parent=0
    _
  %s10 = ssub.s32 1, %s8
  %s11 = scalar_select 0, %s10, %s8
  loop: start=0, step=1, limit=6
  $region2: #{to_smplh_forward.1} parent=0 // loop_pre_header
    _
  $region3: #{to_smplh_forward.1} parent=0 // loop_header
    %s13 = sphi 0, %s17
    %p14 = scmp.ge.s32.totalorder %s13, 6
    %s21 = sphi 0, %s21
    %s23 = sphi 0, %s21
    %s24 = sphi 0, %s23
    %s38 = sphi 0, %s24
    %s42 = sphi 0, %s42
    %s44 = sphi 0, %s42
    %s45 = sphi 0, %s44
    %s59 = sphi 0, %s45
    %s63 = sphi 0, %s63
    %s65 = sphi 0, %s63
    %s66 = sphi 0, %s65
    %s80 = sphi 0, %s66
    %s86 = sphi 0, %s88
    %s89 = sphi 0, %s86
    %s90 = sphi 0, %s89
    %s106 = sphi 0, %s90
    %s112 = sphi 0, %s114
    %s115 = sphi 0, %s112
    %s116 = sphi 0, %s115
    %s132 = sphi 0, %s116
    %s138 = sphi 0, %s140
    %s141 = sphi 0, %s138
    %s142 = sphi 0, %s141
    %s158 = sphi 0, %s142
    %s164 = sphi 0, %s166
    %s167 = sphi 0, %s164
    %s168 = sphi 0, %s167
    %s184 = sphi 0, %s168
  $region4: #{to_smplh_forward.1} parent=0 // loop_header_branch
    %16 = sbr.rel (%p14) target = $region8
  $region5: #{to_smplh_forward.1} parent=0 // loop_body
    %s18 = ssub.s32 %s13, 1
    %s19 = ssub.s32 %s13, 2
    %s20 = sadd.s32 %s13, 1
    %s22 = sadd.s32 %s21, 1
    %p25 = scmp.eq.s32.totalorder %s13, 3
    %p26 = scmp.ne.s32.totalorder %s21, %s23
    %p27 = scmp.eq.s32.totalorder %s13, 0
    %p28 = por %p26, %p27
    %p29 = scmp.ne.s32.totalorder %s21, %s23
    %p30 = scmp.eq.s32.totalorder %s18, 3
    %p31 = por %p29, %p30
    %p32 = scmp.ne.s32.totalorder %s23, %s24
    %p33 = scmp.eq.s32.totalorder %s18, 0
    %p34 = por %p32, %p33
    %p35 = scmp.ne.s32.totalorder %s23, %s24
    %p36 = scmp.eq.s32.totalorder %s19, 3
    %p37 = por %p35, %p36
    %p39 = scmp.ne.s32.totalorder %s24, %s38
    %p40 = scmp.eq.s32.totalorder %s19, 0
    %p41 = por %p39, %p40
    %s43 = sadd.s32 %s42, 1
    %p46 = scmp.eq.s32.totalorder %s13, 3
    %p47 = scmp.ne.s32.totalorder %s42, %s44
    %p48 = scmp.eq.s32.totalorder %s13, 0
    %p49 = por %p47, %p48
    %p50 = scmp.ne.s32.totalorder %s42, %s44
    %p51 = scmp.eq.s32.totalorder %s18, 3
    %p52 = por %p50, %p51
    %p53 = scmp.ne.s32.totalorder %s44, %s45
    %p54 = scmp.eq.s32.totalorder %s18, 0
    %p55 = por %p53, %p54
    %p56 = scmp.ne.s32.totalorder %s44, %s45
    %p57 = scmp.eq.s32.totalorder %s19, 3
    %p58 = por %p56, %p57
    %p60 = scmp.ne.s32.totalorder %s45, %s59
    %p61 = scmp.eq.s32.totalorder %s19, 0
    %p62 = por %p60, %p61
    %s64 = sadd.s32 %s63, 1
    %p67 = scmp.eq.s32.totalorder %s13, 3
    %p68 = scmp.ne.s32.totalorder %s63, %s65
    %p69 = scmp.eq.s32.totalorder %s13, 0
    %p70 = por %p68, %p69
    %p71 = scmp.ne.s32.totalorder %s63, %s65
    %p72 = scmp.eq.s32.totalorder %s18, 3
    %p73 = por %p71, %p72
    %p74 = scmp.ne.s32.totalorder %s65, %s66
    %p75 = scmp.eq.s32.totalorder %s18, 0
    %p76 = por %p74, %p75
    %p77 = scmp.ne.s32.totalorder %s65, %s66
    %p78 = scmp.eq.s32.totalorder %s19, 3
    %p79 = por %p77, %p78
    %p81 = scmp.ne.s32.totalorder %s66, %s80
    %p82 = scmp.eq.s32.totalorder %s19, 0
    %p83 = por %p81, %p82
    %s84 = ssub.s32 %s13, %s20
    %p85 = scmp.eq.s32.totalorder %s84, 0
    %s87 = sadd.s32 %s86, 1
    %s88 = scalar_select %p85, %s86, %s87
    %p91 = pneg %p85
    %p92 = scmp.eq.s32.totalorder %s13, 3
    %p93 = por %p91, %p92
    %p94 = scmp.ne.s32.totalorder %s86, %s89
    %p95 = scmp.eq.s32.totalorder %s13, 0
    %p96 = por %p94, %p95
    %p97 = scmp.ne.s32.totalorder %s86, %s89
    %p98 = scmp.eq.s32.totalorder %s18, 3
    %p99 = por %p97, %p98
    %p100 = scmp.ne.s32.totalorder %s89, %s90
    %p101 = scmp.eq.s32.totalorder %s18, 0
    %p102 = por %p100, %p101
    %p103 = scmp.ne.s32.totalorder %s89, %s90
    %p104 = scmp.eq.s32.totalorder %s19, 3
    %p105 = por %p103, %p104
    %p107 = scmp.ne.s32.totalorder %s90, %s106
    %p108 = scmp.eq.s32.totalorder %s19, 0
    %p109 = por %p107, %p108
    %s110 = ssub.s32 %s13, %s20
    %p111 = scmp.eq.s32.totalorder %s110, 0
    %s113 = sadd.s32 %s112, 1
    %s114 = scalar_select %p111, %s112, %s113
    %p117 = pneg %p111
    %p118 = scmp.eq.s32.totalorder %s13, 3
    %p119 = por %p117, %p118
    %p120 = scmp.ne.s32.totalorder %s112, %s115
    %p121 = scmp.eq.s32.totalorder %s13, 0
    %p122 = por %p120, %p121
    %p123 = scmp.ne.s32.totalorder %s112, %s115
    %p124 = scmp.eq.s32.totalorder %s18, 3
    %p125 = por %p123, %p124
    %p126 = scmp.ne.s32.totalorder %s115, %s116
    %p127 = scmp.eq.s32.totalorder %s18, 0
    %p128 = por %p126, %p127
    %p129 = scmp.ne.s32.totalorder %s115, %s116
    %p130 = scmp.eq.s32.totalorder %s19, 3
    %p131 = por %p129, %p130
    %p133 = scmp.ne.s32.totalorder %s116, %s132
    %p134 = scmp.eq.s32.totalorder %s19, 0
    %p135 = por %p133, %p134
    %s136 = ssub.s32 %s13, %s20
    %p137 = scmp.eq.s32.totalorder %s136, 0
    %s139 = sadd.s32 %s138, 1
    %s140 = scalar_select %p137, %s138, %s139
    %p143 = pneg %p137
    %p144 = scmp.eq.s32.totalorder %s13, 3
    %p145 = por %p143, %p144
    %p146 = scmp.ne.s32.totalorder %s138, %s141
    %p147 = scmp.eq.s32.totalorder %s13, 0
    %p148 = por %p146, %p147
    %p149 = scmp.ne.s32.totalorder %s138, %s141
    %p150 = scmp.eq.s32.totalorder %s18, 3
    %p151 = por %p149, %p150
    %p152 = scmp.ne.s32.totalorder %s141, %s142
    %p153 = scmp.eq.s32.totalorder %s18, 0
    %p154 = por %p152, %p153
    %p155 = scmp.ne.s32.totalorder %s141, %s142
    %p156 = scmp.eq.s32.totalorder %s19, 3
    %p157 = por %p155, %p156
    %p159 = scmp.ne.s32.totalorder %s142, %s158
    %p160 = scmp.eq.s32.totalorder %s19, 0
    %p161 = por %p159, %p160
    %s162 = ssub.s32 %s13, %s20
    %p163 = scmp.eq.s32.totalorder %s162, 0
    %s165 = sadd.s32 %s164, 1
    %s166 = scalar_select %p163, %s164, %s165
    %p169 = pneg %p163
    %p170 = scmp.eq.s32.totalorder %s13, 3
    %p171 = por %p169, %p170
    %p172 = scmp.ne.s32.totalorder %s164, %s167
    %p173 = scmp.eq.s32.totalorder %s13, 0
    %p174 = por %p172, %p173
    %p175 = scmp.ne.s32.totalorder %s164, %s167
    %p176 = scmp.eq.s32.totalorder %s18, 3
    %p177 = por %p175, %p176
    %p178 = scmp.ne.s32.totalorder %s167, %s168
    %p179 = scmp.eq.s32.totalorder %s18, 0
    %p180 = por %p178, %p179
    %p181 = scmp.ne.s32.totalorder %s167, %s168
    %p182 = scmp.eq.s32.totalorder %s19, 3
    %p183 = por %p181, %p182
    %p185 = scmp.ne.s32.totalorder %s168, %s184
    %p186 = scmp.eq.s32.totalorder %s19, 0
    %p187 = por %p185, %p186
    %p188 = scmp.le.s32.totalorder 1, %s13
    %p189 = scmp.lt.s32.totalorder %s13, 5
    %p190 = pnand %p188, %p189
    %p191 = pneg %p190
    // Predicated region
    $region9: #{to_smplh_forward.1} parent=5 // pred_check
      _
    $region10: #{to_smplh_forward.1} parent=5 // pred_check_branch
      %193 = sbr.rel (%p190) target = $region12
    $region11: #{to_smplh_forward.1} parent=5 // pred_region
      %s194 = ssub.s32 %s13, 1
      // Predicated region
      $region13: #{to_smplh_forward.1} parent=11 // pred_check
        %p195 = pneg %p34
      $region14: #{to_smplh_forward.1} parent=11 // pred_check_branch
        %197 = sbr.rel (%p195) target = $region16
      $region15: #{to_smplh_forward.1} parent=11 // pred_region
        _
      $region16: #{to_smplh_forward.1} parent=11 // pred_fallthru
        _
      // Predicated region
      $region17: #{to_smplh_forward.1} parent=11 // pred_check
        %p198 = pneg %p55
      $region18: #{to_smplh_forward.1} parent=11 // pred_check_branch
        %200 = sbr.rel (%p198) target = $region20
      $region19: #{to_smplh_forward.1} parent=11 // pred_region
        _
      $region20: #{to_smplh_forward.1} parent=11 // pred_fallthru
        _
      // Predicated region
      $region21: #{to_smplh_forward.1} parent=11 // pred_check
        %p201 = pneg %p76
      $region22: #{to_smplh_forward.1} parent=11 // pred_check_branch
        %203 = sbr.rel (%p201) target = $region24
      $region23: #{to_smplh_forward.1} parent=11 // pred_region
        _
      $region24: #{to_smplh_forward.1} parent=11 // pred_fallthru
        _
    $region12: #{to_smplh_forward.1} parent=5 // pred_fallthru
      _
    %p204 = scmp.lt.s32.totalorder %s13, 4
    // Predicated region
    $region25: #{to_smplh_forward.1} parent=5 // pred_check
      %p205 = pneg %p204
    $region26: #{to_smplh_forward.1} parent=5 // pred_check_branch
      %207 = sbr.rel (%p205) target = $region28
    $region27: #{to_smplh_forward.1} parent=5 // pred_region
      // Predicated region
      $region29: #{to_smplh_forward.1} parent=27 // pred_check
        %p208 = pneg %p96
      $region30: #{to_smplh_forward.1} parent=27 // pred_check_branch
        %210 = sbr.rel (%p208) target = $region32
      $region31: #{to_smplh_forward.1} parent=27 // pred_region
        %s211 = smul.u32 32, %s13
        %p212 = scmp.lt.s32.totalorder %s211, 127
        %s213 = scalar_select %p212, %s211, 127
        %s214 = smul.addr %s213, 8
        %s215 = scalar_lea.vmem %s3, %s214
        %s216 = smul.u32 32, %s13
      $region32: #{to_smplh_forward.1} parent=27 // pred_fallthru
        _
      // Predicated region
      $region33: #{to_smplh_forward.1} parent=27 // pred_check
        %p217 = pneg %p122
      $region34: #{to_smplh_forward.1} parent=27 // pred_check_branch
        %219 = sbr.rel (%p217) target = $region36
      $region35: #{to_smplh_forward.1} parent=27 // pred_region
        %s220 = smul.u32 32, %s13
        %p221 = scmp.lt.s32.totalorder %s220, 127
        %s222 = scalar_select %p221, %s220, 127
        %s223 = smul.addr %s222, 8
        %s224 = scalar_lea.vmem %s4, %s223
        %s225 = smul.u32 32, %s13
      $region36: #{to_smplh_forward.1} parent=27 // pred_fallthru
        _
    $region28: #{to_smplh_forward.1} parent=5 // pred_fallthru
      _
    %p226 = scmp.le.s32.totalorder 1, %s13
    %p227 = scmp.lt.s32.totalorder %s13, 5
    %p228 = pnand %p226, %p227
    %p229 = pneg %p228
    // Predicated region
    $region37: #{to_smplh_forward.1} parent=5 // pred_check
      _
    $region38: #{to_smplh_forward.1} parent=5 // pred_check_branch
      %231 = sbr.rel (%p228) target = $region40
    $region39: #{to_smplh_forward.1} parent=5 // pred_region
      %s232 = ssub.s32 %s13, 1
      %p233 = pneg %p34
      %p234 = pneg %p31
      %p235 = pneg %p55
      %p236 = pneg %p52
      %p237 = pneg %p76
      %p238 = pneg %p73
      %s239 = smul.u32 32, %s18
      %p240 = scmp.lt.s32.totalorder %s239, 127
      %s241 = scalar_select %p240, %s239, 127
      %s242 = smul.addr %s241, 8
      %s243 = scalar_lea.vmem %s3, %s242
      %p244 = pneg %p102
      %p245 = pneg %p99
      %s246 = smul.u32 32, %s18
      %p247 = scmp.lt.s32.totalorder %s246, 127
      %s248 = scalar_select %p247, %s246, 127
      %s249 = smul.addr %s248, 8
      %s250 = scalar_lea.vmem %s4, %s249
      %p251 = pneg %p128
      %p252 = pneg %p125
      %p253 = pneg %p154
      %p254 = pneg %p151
      %s255 = smul.u32 32, %s18
      %p256 = scmp.lt.s32.totalorder %s255, 127
      %s257 = scalar_select %p256, %s255, 127
      %s258 = smul.addr %s257, 8
      %s259 = scalar_lea.vmem %s5, %s258
      %p260 = pneg %p180
      %p261 = pneg %p177
      %s262 = smul.u32 32, %s18
      %p263 = scmp.lt.s32.totalorder %s262, 127
      %s264 = scalar_select %p263, %s262, 127
      %s265 = smul.addr %s264, 8
      %s266 = scalar_lea.vmem %s6, %s265
      %s267 = smul.u32 32, %s18
      %p268 = scmp.lt.s32.totalorder %s267, 127
      %s269 = scalar_select %p268, %s267, 127
      %s270 = smul.addr %s269, 8
      %s271 = scalar_lea.vmem %s3, %s270
      %s272 = smul.u32 32, %s18
      %s273 = smul.u32 32, %s18
      %p274 = scmp.lt.s32.totalorder %s273, 127
      %s275 = scalar_select %p274, %s273, 127
      %s276 = smul.addr %s275, 8
      %s277 = scalar_lea.vmem %s4, %s276
      %s278 = smul.u32 32, %s18
      %s279 = smul.u32 32, %s18
      %p280 = scmp.lt.s32.totalorder %s279, 127
      %s281 = scalar_select %p280, %s279, 127
      %s282 = smul.addr %s281, 8
      %s283 = scalar_lea.vmem %s5, %s282
      %s284 = smul.u32 32, %s18
      %s285 = smul.u32 32, %s18
      %p286 = scmp.lt.s32.totalorder %s285, 127
      %s287 = scalar_select %p286, %s285, 127
      %s288 = smul.addr %s287, 8
      %s289 = scalar_lea.vmem %s6, %s288
      %s290 = smul.u32 32, %s18
      %v291 = vld [vmem:[%s271] sm:$0xff]
      %v292 = vld [vmem:[%s271 + $0x8] sm:$0xff]
      %v293 = vld [vmem:[%s271 + $0x10] sm:$0xff]
      %v294 = vld [vmem:[%s271 + $0x18] sm:$0xff]
      %v295 = vld [vmem:[%s271 + $0x20] sm:$0xff]
      %v296 = vld [vmem:[%s271 + $0x28] sm:$0xff]
      %v297 = vld [vmem:[%s271 + $0x30] sm:$0xff]
      %v298 = vld [vmem:[%s271 + $0x38] sm:$0xff]
      %v299 = vld [vmem:[%s271 + $0x40] sm:$0xff]
      %v300 = vld [vmem:[%s271 + $0x48] sm:$0xff]
      %v301 = vld [vmem:[%s271 + $0x50] sm:$0xff]
      %v302 = vld [vmem:[%s271 + $0x58] sm:$0xff]
      %v303 = vld [vmem:[%s271 + $0x60] sm:$0xff]
      %v304 = vld [vmem:[%s271 + $0x68] sm:$0xff]
      %v305 = vld [vmem:[%s271 + $0x70] sm:$0xff]
      %v306 = vld [vmem:[%s271 + $0x78] sm:$0xff]
      %v307 = vld [vmem:[%s271 + $0x80] sm:$0xff]
      %v308 = vld [vmem:[%s271 + $0x88] sm:$0xff]
      %v309 = vld [vmem:[%s271 + $0x90] sm:$0xff]
      %v310 = vld [vmem:[%s271 + $0x98] sm:$0xff]
      %v311 = vld [vmem:[%s271 + $0xa0] sm:$0xff]
      %v312 = vld [vmem:[%s271 + $0xa8] sm:$0xff]
      %v313 = vld [vmem:[%s271 + $0xb0] sm:$0xff]
      %v314 = vld [vmem:[%s271 + $0xb8] sm:$0xff]
      %v315 = vld [vmem:[%s271 + $0xc0] sm:$0xff]
      %v316 = vld [vmem:[%s271 + $0xc8] sm:$0xff]
      %v317 = vld [vmem:[%s271 + $0xd0] sm:$0xff]
      %v318 = vld [vmem:[%s271 + $0xd8] sm:$0xff]
      %v319 = vld [vmem:[%s271 + $0xe0] sm:$0xff]
      %v320 = vld [vmem:[%s271 + $0xe8] sm:$0xff]
      %v321 = vld [vmem:[%s271 + $0xf0] sm:$0xff]
      %v322 = vld [vmem:[%s271 + $0xf8] sm:$0xff]
      %v323 = vld [vmem:[%s0] sm:$0xff]
      %v324 = vld [vmem:[%s0 + $0x8] sm:$0xff]
      %v325 = vld [vmem:[%s0 + $0x10] sm:$0xff]
      %vm326 = vcmask 195584
      %v328 = vsel %vm326, %v291, 0
      %v331 = vsel %vm326, %v292, 0
      %v334 = vsel %vm326, %v293, 0
      %v337 = vsel %vm326, %v294, 0
      %v340 = vsel %vm326, %v295, 0
      %v343 = vsel %vm326, %v296, 0
      %v346 = vsel %vm326, %v297, 0
      %v349 = vsel %vm326, %v298, 0
      %v352 = vsel %vm326, %v299, 0
      %v355 = vsel %vm326, %v300, 0
      %v358 = vsel %vm326, %v301, 0
      %v361 = vsel %vm326, %v302, 0
      %v364 = vsel %vm326, %v303, 0
      %v367 = vsel %vm326, %v304, 0
      %v370 = vsel %vm326, %v305, 0
      %v373 = vsel %vm326, %v306, 0
      %v376 = vsel %vm326, %v307, 0
      %v379 = vsel %vm326, %v308, 0
      %v382 = vsel %vm326, %v309, 0
      %v385 = vsel %vm326, %v310, 0
      %v388 = vsel %vm326, %v311, 0
      %v391 = vsel %vm326, %v312, 0
      %v394 = vsel %vm326, %v313, 0
      %v397 = vsel %vm326, %v314, 0
      %v400 = vsel %vm326, %v315, 0
      %v403 = vsel %vm326, %v316, 0
      %v406 = vsel %vm326, %v317, 0
      %v409 = vsel %vm326, %v318, 0
      %v412 = vsel %vm326, %v319, 0
      %v415 = vsel %vm326, %v320, 0
      %v418 = vsel %vm326, %v321, 0
      %v421 = vsel %vm326, %v322, 0
      %423 = vmatprep.subr.mxu0 0.0
      %v424 = vand.u32 %v323, 4294901760
      %425 = vmatpush1.msra.mxu0 %v424
      %426 = vmatprep.subr.mxu0 0.0
      %v427 = vand.u32 %v324, 4294901760
      %428 = vmatpush1.msra.mxu0 %v427
      %429 = vmatprep.subr.mxu0 0.0
      %v430 = vand.u32 %v325, 4294901760
      %431 = vmatpush1.msra.mxu0 %v430
      %432 = vmatprep.subr.mxu0 0.0
      %433 = vmatpush1.msra.mxu0 0.0
      %434 = vmatprep.subr.mxu0 0.0
      %435 = vmatpush1.msra.mxu0 0.0
      %436 = vmatprep.subr.mxu0 0.0
      %437 = vmatpush1.msra.mxu0 0.0
      %438 = vmatprep.subr.mxu0 0.0
      %439 = vmatpush1.msra.mxu0 0.0
      %440 = vmatprep.subr.mxu0 0.0
      %441 = vmatpush1.msra.mxu0 0.0
      %442 = vmatprep.subr.mxu0 0.0
      %443 = vmatpush1.msra.mxu0 0.0
      %444 = vmatprep.subr.mxu0 0.0
      %445 = vmatpush1.msra.mxu0 0.0
      %446 = vmatprep.subr.mxu0 0.0
      %447 = vmatpush1.msra.mxu0 0.0
      %448 = vmatprep.subr.mxu0 0.0
      %449 = vmatpush1.msra.mxu0 0.0
      %450 = vmatprep.subr.mxu0 0.0
      %451 = vmatpush1.msra.mxu0 0.0
      %452 = vmatprep.subr.mxu0 0.0
      %453 = vmatpush1.msra.mxu0 0.0
      %454 = vmatprep.subr.mxu0 0.0
      %455 = vmatpush1.msra.mxu0 0.0
      %456 = vmatprep.subr.mxu0 0.0
      %457 = vmatpush1.msra.mxu0 0.0
      %458 = vmatprep.subr.mxu0 0.0
      %459 = vmatpush1.msra.mxu0 0.0
      %460 = vmatprep.subr.mxu0 0.0
      %461 = vmatpush1.msra.mxu0 0.0
      %462 = vmatprep.subr.mxu0 0.0
      %463 = vmatpush1.msra.mxu0 0.0
      %464 = vmatprep.subr.mxu0 0.0
      %465 = vmatpush1.msra.mxu0 0.0
      %466 = vmatprep.subr.mxu0 0.0
      %467 = vmatpush1.msra.mxu0 0.0
      %468 = vmatprep.subr.mxu0 0.0
      %469 = vmatpush1.msra.mxu0 0.0
      %470 = vmatprep.subr.mxu0 0.0
      %471 = vmatpush1.msra.mxu0 0.0
      %472 = vmatprep.subr.mxu0 0.0
      %473 = vmatpush1.msra.mxu0 0.0
      %474 = vmatprep.subr.mxu0 0.0
      %475 = vmatpush1.msra.mxu0 0.0
      %476 = vmatprep.subr.mxu0 0.0
      %477 = vmatpush1.msra.mxu0 0.0
      %478 = vmatprep.subr.mxu0 0.0
      %479 = vmatpush1.msra.mxu0 0.0
      %480 = vmatprep.subr.mxu0 0.0
      %481 = vmatpush1.msra.mxu0 0.0
      %482 = vmatprep.subr.mxu0 0.0
      %483 = vmatpush1.msra.mxu0 0.0
      %484 = vmatprep.subr.mxu0 0.0
      %485 = vmatpush1.msra.mxu0 0.0
      %486 = vmatprep.subr.mxu0 0.0
      %487 = vmatpush1.msra.mxu0 0.0
      %488 = vmatprep.subr.mxu0 0.0
      %489 = vmatpush1.msra.mxu0 0.0
      %490 = vmatprep.mubr.f32.mxu0 0.0
      %v491 = vand.u32 %v328, 4294901760
      %v492 = vsub.f32 %v328, %v491
      %v493 = vand.u32 %v492, 4294901760
      %v494 = vsub.f32 %v492, %v493
      %v495 = vand.u32 %v494, 4294901760
      %496 = vmatmul.mubr.f32.gmra.mrb[0].mxu0 %v495
      %v497 = vpop.f32.mrb[0].mxu0
      %v498 = vadd.f32 0.0, %v497
      %v499 = vpop.f32.mrb[0].mxu0
      %500 = vmatprep.mubr.f32.mxu0 0.0
      %v501 = vand.u32 %v331, 4294901760
      %v502 = vsub.f32 %v331, %v501
      %v503 = vand.u32 %v502, 4294901760
      %v504 = vsub.f32 %v502, %v503
      %v505 = vand.u32 %v504, 4294901760
      %506 = vmatmul.mubr.f32.gmra.mrb[0].mxu0 %v505
      %v507 = vpop.f32.mrb[0].mxu0
      %v508 = vadd.f32 0.0, %v507
      %v509 = vpop.f32.mrb[0].mxu0
      %510 = vmatprep.mubr.f32.mxu0 0.0
      %v511 = vand.u32 %v334, 4294901760
      %v512 = vsub.f32 %v334, %v511
      %v513 = vand.u32 %v512, 4294901760
      %v514 = vsub.f32 %v512, %v513
      %v515 = vand.u32 %v514, 4294901760
      %516 = vmatmul.mubr.f32.gmra.mrb[0].mxu0 %v515
      %v517 = vpop.f32.mrb[0].mxu0
      %v518 = vadd.f32 0.0, %v517
      %v519 = vpop.f32.mrb[0].mxu0
      %520 = vmatprep.mubr.f32.mxu0 0.0
      %v521 = vand.u32 %v337, 4294901760
      %v522 = vsub.f32 %v337, %v521
      %v523 = vand.u32 %v522, 4294901760
      %v524 = vsub.f32 %v522, %v523
      %v525 = vand.u32 %v524, 4294901760
      %526 = vmatmul.mubr.f32.gmra.mrb[0].mxu0 %v525
      %v527 = vpop.f32.mrb[0].mxu0
      %v528 = vadd.f32 0.0, %v527
      %v529 = vpop.f32.mrb[0].mxu0
      %530 = vmatprep.mubr.f32.mxu0 0.0
      %v531 = vand.u32 %v340, 4294901760
      %v532 = vsub.f32 %v340, %v531
      %v533 = vand.u32 %v532, 4294901760
      %v534 = vsub.f32 %v532, %v533
      %v535 = vand.u32 %v534, 4294901760
      %536 = vmatmul.mubr.f32.gmra.mrb[0].mxu0 %v535
      %v537 = vpop.f32.mrb[0].mxu0
      %v538 = vadd.f32 0.0, %v537
      %v539 = vpop.f32.mrb[0].mxu0
      %540 = vmatprep.mubr.f32.mxu0 0.0
      %v541 = vand.u32 %v343, 4294901760
      %v542 = vsub.f32 %v343, %v541
      %v543 = vand.u32 %v542, 4294901760
      %v544 = vsub.f32 %v542, %v543
      %v545 = vand.u32 %v544, 4294901760
      %546 = vmatmul.mubr.f32.gmra.mrb[0].mxu0 %v545
      %v547 = vpop.f32.mrb[0].mxu0
      %v548 = vadd.f32 0.0, %v547
      %v549 = vpop.f32.mrb[0].mxu0
      %550 = vmatprep.mubr.f32.mxu0 0.0
      %v551 = vand.u32 %v346, 4294901760
      %v552 = vsub.f32 %v346, %v551
      %v553 = vand.u32 %v552, 4294901760
      %v554 = vsub.f32 %v552, %v553
      %v555 = vand.u32 %v554, 4294901760
      %556 = vmatmul.mubr.f32.gmra.mrb[0].mxu0 %v555
      %v557 = vpop.f32.mrb[0].mxu0
      %v558 = vadd.f32 0.0, %v557
      %v559 = vpop.f32.mrb[0].mxu0
      %560 = vmatprep.mubr.f32.mxu0 0.0
      %v561 = vand.u32 %v349, 4294901760
      %v562 = vsub.f32 %v349, %v561
      %v563 = vand.u32 %v562, 4294901760
      %v564 = vsub.f32 %v562, %v563
      %v565 = vand.u32 %v564, 4294901760
      %566 = vmatmul.mubr.f32.gmra.mrb[0].mxu0 %v565
      %v567 = vpop.f32.mrb[0].mxu0
      %v568 = vadd.f32 0.0, %v567
      %v569 = vpop.f32.mrb[0].mxu0
      %570 = vmatprep.mubr.f32.mxu0 0.0
      %v571 = vand.u32 %v352, 4294901760
      %v572 = vsub.f32 %v352, %v571
      %v573 = vand.u32 %v572, 4294901760
      %v574 = vsub.f32 %v572, %v573
      %v575 = vand.u32 %v574, 4294901760
      %576 = vmatmul.mubr.f32.gmra.mrb[0].mxu0 %v575
      %v577 = vpop.f32.mrb[0].mxu0
      %v578 = vadd.f32 0.0, %v577
      %v579 = vpop.f32.mrb[0].mxu0
      %580 = vmatprep.mubr.f32.mxu0 0.0
      %v581 = vand.u32 %v355, 4294901760
      %v582 = vsub.f32 %v355, %v581
      %v583 = vand.u32 %v582, 4294901760
      %v584 = vsub.f32 %v582, %v583
      %v585 = vand.u32 %v584, 4294901760
      %586 = vmatmul.mubr.f32.gmra.mrb[0].mxu0 %v585
      %v587 = vpop.f32.mrb[0].mxu0
      %v588 = vadd.f32 0.0, %v587
      %v589 = vpop.f32.mrb[0].mxu0
      %590 = vmatprep.mubr.f32.mxu0 0.0
      %v591 = vand.u32 %v358, 4294901760
      %v592 = vsub.f32 %v358, %v591
      %v593 = vand.u32 %v592, 4294901760
      %v594 = vsub.f32 %v592, %v593
      %v595 = vand.u32 %v594, 4294901760
      %596 = vmatmul.mubr.f32.gmra.mrb[0].mxu0 %v595
      %v597 = vpop.f32.mrb[0].mxu0
      %v598 = vadd.f32 0.0, %v597
      %v599 = vpop.f32.mrb[0].mxu0
      %600 = vmatprep.mubr.f32.mxu0 0.0
      %v601 = vand.u32 %v361, 4294901760
      %v602 = vsub.f32 %v361, %v601
      %v603 = vand.u32 %v602, 4294901760
      %v604 = vsub.f32 %v602, %v603
      %v605 = vand.u32 %v604, 4294901760
      %606 = vmatmul.mubr.f32.gmra.mrb[0].mxu0 %v605
      %v607 = vpop.f32.mrb[0].mxu0
      %v608 = vadd.f32 0.0, %v607
      %v609 = vpop.f32.mrb[0].mxu0
      %610 = vmatprep.mubr.f32.mxu0 0.0
      %v611 = vand.u32 %v364, 4294901760
      %v612 = vsub.f32 %v364, %v611
      %v613 = vand.u32 %v612, 4294901760
      %v614 = vsub.f32 %v612, %v613
      %v615 = vand.u32 %v614, 4294901760
      %616 = vmatmul.mubr.f32.gmra.mrb[0].mxu0 %v615
      %v617 = vpop.f32.mrb[0].mxu0
      %v618 = vadd.f32 0.0, %v617
      %v619 = vpop.f32.mrb[0].mxu0
      %620 = vmatprep.mubr.f32.mxu0 0.0
      %v621 = vand.u32 %v367, 4294901760
      %v622 = vsub.f32 %v367, %v621
      %v623 = vand.u32 %v622, 4294901760
      %v624 = vsub.f32 %v622, %v623
      %v625 = vand.u32 %v624, 4294901760
      %626 = vmatmul.mubr.f32.gmra.mrb[0].mxu0 %v625
      %v627 = vpop.f32.mrb[0].mxu0
      %v628 = vadd.f32 0.0, %v627
      %v629 = vpop.f32.mrb[0].mxu0
      %630 = vmatprep.mubr.f32.mxu0 0.0
      %v631 = vand.u32 %v370, 4294901760
      %v632 = vsub.f32 %v370, %v631
      %v633 = vand.u32 %v632, 4294901760
      %v634 = vsub.f32 %v632, %v633
      %v635 = vand.u32 %v634, 4294901760
      %636 = vmatmul.mubr.f32.gmra.mrb[0].mxu0 %v635
      %v637 = vpop.f32.mrb[0].mxu0
      %v638 = vadd.f32 0.0, %v637
      %v639 = vpop.f32.mrb[0].mxu0
      %640 = vmatprep.mubr.f32.mxu0 0.0
      %v641 = vand.u32 %v373, 4294901760
      %v642 = vsub.f32 %v373, %v641
      %v643 = vand.u32 %v642, 4294901760
      %v644 = vsub.f32 %v642, %v643
      %v645 = vand.u32 %v644, 4294901760
      %646 = vmatmul.mubr.f32.gmra.mrb[0].mxu0 %v645
      %v647 = vpop.f32.mrb[0].mxu0
      %v648 = vadd.f32 0.0, %v647
      %v649 = vpop.f32.mrb[0].mxu0
      %650 = vmatprep.mubr.f32.mxu0 0.0
      %v651 = vand.u32 %v376, 4294901760
      %v652 = vsub.f32 %v376, %v651
      %v653 = vand.u32 %v652, 4294901760
      %v654 = vsub.f32 %v652, %v653
      %v655 = vand.u32 %v654, 4294901760
      %656 = vmatmul.mubr.f32.gmra.mrb[0].mxu0 %v655
      %v657 = vpop.f32.mrb[0].mxu0
      %v658 = vadd.f32 0.0, %v657
      %v659 = vpop.f32.mrb[0].mxu0
      %660 = vmatprep.mubr.f32.mxu0 0.0
      %v661 = vand.u32 %v379, 4294901760
      %v662 = vsub.f32 %v379, %v661
      %v663 = vand.u32 %v662, 4294901760
      %v664 = vsub.f32 %v662, %v663
      %v665 = vand.u32 %v664, 4294901760
      %666 = vmatmul.mubr.f32.gmra.mrb[0].mxu0 %v665
      %v667 = vpop.f32.mrb[0].mxu0
      %v668 = vadd.f32 0.0, %v667
      %v669 = vpop.f32.mrb[0].mxu0
      %670 = vmatprep.mubr.f32.mxu0 0.0
      %v671 = vand.u32 %v382, 4294901760
      %v672 = vsub.f32 %v382, %v671
      %v673 = vand.u32 %v672, 4294901760
      %v674 = vsub.f32 %v672, %v673
      %v675 = vand.u32 %v674, 4294901760
      %676 = vmatmul.mubr.f32.gmra.mrb[0].mxu0 %v675
      %v677 = vpop.f32.mrb[0].mxu0
      %v678 = vadd.f32 0.0, %v677
      %v679 = vpop.f32.mrb[0].mxu0
      %680 = vmatprep.mubr.f32.mxu0 0.0
      %v681 = vand.u32 %v385, 4294901760
      %v682 = vsub.f32 %v385, %v681
      %v683 = vand.u32 %v682, 4294901760
      %v684 = vsub.f32 %v682, %v683
      %v685 = vand.u32 %v684, 4294901760
      %686 = vmatmul.mubr.f32.gmra.mrb[0].mxu0 %v685
      %v687 = vpop.f32.mrb[0].mxu0
      %v688 = vadd.f32 0.0, %v687
      %v689 = vpop.f32.mrb[0].mxu0
      %690 = vmatprep.mubr.f32.mxu0 0.0
      %v691 = vand.u32 %v388, 4294901760
      %v692 = vsub.f32 %v388, %v691
      %v693 = vand.u32 %v692, 4294901760
      %v694 = vsub.f32 %v692, %v693
      %v695 = vand.u32 %v694, 4294901760
      %696 = vmatmul.mubr.f32.gmra.mrb[0].mxu0 %v695
      %v697 = vpop.f32.mrb[0].mxu0
      %v698 = vadd.f32 0.0, %v697
      %v699 = vpop.f32.mrb[0].mxu0
      %700 = vmatprep.mubr.f32.mxu0 0.0
      %v701 = vand.u32 %v391, 4294901760
      %v702 = vsub.f32 %v391, %v701
      %v703 = vand.u32 %v702, 4294901760
      %v704 = vsub.f32 %v702, %v703
      %v705 = vand.u32 %v704, 4294901760
      %706 = vmatmul.mubr.f32.gmra.mrb[0].mxu0 %v705
      %v707 = vpop.f32.mrb[0].mxu0
      %v708 = vadd.f32 0.0, %v707
      %v709 = vpop.f32.mrb[0].mxu0
      %710 = vmatprep.mubr.f32.mxu0 0.0
      %v711 = vand.u32 %v394, 4294901760
      %v712 = vsub.f32 %v394, %v711
      %v713 = vand.u32 %v712, 4294901760
      %v714 = vsub.f32 %v712, %v713
      %v715 = vand.u32 %v714, 4294901760
      %716 = vmatmul.mubr.f32.gmra.mrb[0].mxu0 %v715
      %v717 = vpop.f32.mrb[0].mxu0
      %v718 = vadd.f32 0.0, %v717
      %v719 = vpop.f32.mrb[0].mxu0
      %720 = vmatprep.mubr.f32.mxu0 0.0
      %v721 = vand.u32 %v397, 4294901760
      %v722 = vsub.f32 %v397, %v721
      %v723 = vand.u32 %v722, 4294901760
      %v724 = vsub.f32 %v722, %v723
      %v725 = vand.u32 %v724, 4294901760
      %726 = vmatmul.mubr.f32.gmra.mrb[0].mxu0 %v725
      %v727 = vpop.f32.mrb[0].mxu0
      %v728 = vadd.f32 0.0, %v727
      %v729 = vpop.f32.mrb[0].mxu0
      %730 = vmatprep.mubr.f32.mxu0 0.0
      %v731 = vand.u32 %v400, 4294901760
      %v732 = vsub.f32 %v400, %v731
      %v733 = vand.u32 %v732, 4294901760
      %v734 = vsub.f32 %v732, %v733
      %v735 = vand.u32 %v734, 4294901760
      %736 = vmatmul.mubr.f32.gmra.mrb[0].mxu0 %v735
      %v737 = vpop.f32.mrb[0].mxu0
      %v738 = vadd.f32 0.0, %v737
      %v739 = vpop.f32.mrb[0].mxu0
      %740 = vmatprep.mubr.f32.mxu0 0.0
      %v741 = vand.u32 %v403, 4294901760
      %v742 = vsub.f32 %v403, %v741
      %v743 = vand.u32 %v742, 4294901760
      %v744 = vsub.f32 %v742, %v743
      %v745 = vand.u32 %v744, 4294901760
      %746 = vmatmul.mubr.f32.gmra.mrb[0].mxu0 %v745
      %v747 = vpop.f32.mrb[0].mxu0
      %v748 = vadd.f32 0.0, %v747
      %v749 = vpop.f32.mrb[0].mxu0
      %750 = vmatprep.mubr.f32.mxu0 0.0
      %v751 = vand.u32 %v406, 4294901760
      %v752 = vsub.f32 %v406, %v751
      %v753 = vand.u32 %v752, 4294901760
      %v754 = vsub.f32 %v752, %v753
      %v755 = vand.u32 %v754, 4294901760
      %756 = vmatmul.mubr.f32.gmra.mrb[0].mxu0 %v755
      %v757 = vpop.f32.mrb[0].mxu0
      %v758 = vadd.f32 0.0, %v757
      %v759 = vpop.f32.mrb[0].mxu0
      %760 = vmatprep.mubr.f32.mxu0 0.0
      %v761 = vand.u32 %v409, 4294901760
      %v762 = vsub.f32 %v409, %v761
      %v763 = vand.u32 %v762, 4294901760
      %v764 = vsub.f32 %v762, %v763
      %v765 = vand.u32 %v764, 4294901760
      %766 = vmatmul.mubr.f32.gmra.mrb[0].mxu0 %v765
      %v767 = vpop.f32.mrb[0].mxu0
      %v768 = vadd.f32 0.0, %v767
      %v769 = vpop.f32.mrb[0].mxu0
      %770 = vmatprep.mubr.f32.mxu0 0.0
      %v771 = vand.u32 %v412, 4294901760
      %v772 = vsub.f32 %v412, %v771
      %v773 = vand.u32 %v772, 4294901760
      %v774 = vsub.f32 %v772, %v773
      %v775 = vand.u32 %v774, 4294901760
      %776 = vmatmul.mubr.f32.gmra.mrb[0].mxu0 %v775
      %v777 = vpop.f32.mrb[0].mxu0
      %v778 = vadd.f32 0.0, %v777
      %v779 = vpop.f32.mrb[0].mxu0
      %780 = vmatprep.mubr.f32.mxu0 0.0
      %v781 = vand.u32 %v415, 4294901760
      %v782 = vsub.f32 %v415, %v781
      %v783 = vand.u32 %v782, 4294901760
      %v784 = vsub.f32 %v782, %v783
      %v785 = vand.u32 %v784, 4294901760
      %786 = vmatmul.mubr.f32.gmra.mrb[0].mxu0 %v785
      %v787 = vpop.f32.mrb[0].mxu0
      %v788 = vadd.f32 0.0, %v787
      %v789 = vpop.f32.mrb[0].mxu0
      %790 = vmatprep.mubr.f32.mxu0 0.0
      %v791 = vand.u32 %v418, 4294901760
      %v792 = vsub.f32 %v418, %v791
      %v793 = vand.u32 %v792, 4294901760
      %v794 = vsub.f32 %v792, %v793
      %v795 = vand.u32 %v794, 4294901760
      %796 = vmatmul.mubr.f32.gmra.mrb[0].mxu0 %v795
      %v797 = vpop.f32.mrb[0].mxu0
      %v798 = vadd.f32 0.0, %v797
      %v799 = vpop.f32.mrb[0].mxu0
      %800 = vmatprep.mubr.f32.mxu0 0.0
      %v801 = vand.u32 %v421, 4294901760
      %v802 = vsub.f32 %v421, %v801
      %v803 = vand.u32 %v802, 4294901760
      %v804 = vsub.f32 %v802, %v803
      %v805 = vand.u32 %v804, 4294901760
      %806 = vmatmul.mubr.f32.gmra.mrb[0].mxu0 %v805
      %v807 = vpop.f32.mrb[0].mxu0
      %v808 = vadd.f32 0.0, %v807
      %v809 = vpop.f32.mrb[0].mxu0
      %810 = vdwg.mxu0
      %811 = vmatprep.subr.mxu0 0.0
      %v812 = vand.u32 %v323, 4294901760
      %v813 = vsub.f32 %v323, %v812
      %v814 = vand.u32 %v813, 4294901760
      %v815 = vsub.f32 %v813, %v814
      %v816 = vand.u32 %v815, 4294901760
      %817 = vmatpush1.msra.mxu0 %v816
      %818 = vmatprep.subr.mxu0 0.0
      %v819 = vand.u32 %v324, 4294901760
      %v820 = vsub.f32 %v324, %v819
      %v821 = vand.u32 %v820, 4294901760
      %v822 = vsub.f32 %v820, %v821
      %v823 = vand.u32 %v822, 4294901760
      %824 = vmatpush1.msra.mxu0 %v823
      %825 = vmatprep.subr.mxu0 0.0
      %v826 = vand.u32 %v325, 4294901760
      %v827 = vsub.f32 %v325, %v826
      %v828 = vand.u32 %v827, 4294901760
      %v829 = vsub.f32 %v827, %v828
      %v830 = vand.u32 %v829, 4294901760
      %831 = vmatpush1.msra.mxu0 %v830
      %832 = vmatprep.subr.mxu0 0.0
      %833 = vmatpush1.msra.mxu0 0.0
      %834 = vmatprep.subr.mxu0 0.0
      %835 = vmatpush1.msra.mxu0 0.0
      %836 = vmatprep.subr.mxu0 0.0
      %837 = vmatpush1.msra.mxu0 0.0
      %838 = vmatprep.subr.mxu0 0.0
      %839 = vmatpush1.msra.mxu0 0.0
      %840 = vmatprep.subr.mxu0 0.0
      %841 = vmatpush1.msra.mxu0 0.0
      %842 = vmatprep.subr.mxu0 0.0
      %843 = vmatpush1.msra.mxu0 0.0
      %844 = vmatprep.subr.mxu0 0.0
      %845 = vmatpush1.msra.mxu0 0.0
      %846 = vmatprep.subr.mxu0 0.0
      %847 = vmatpush1.msra.mxu0 0.0
      %848 = vmatprep.subr.mxu0 0.0
      %849 = vmatpush1.msra.mxu0 0.0
      %850 = vmatprep.subr.mxu0 0.0
      %851 = vmatpush1.msra.mxu0 0.0
      %852 = vmatprep.subr.mxu0 0.0
      %853 = vmatpush1.msra.mxu0 0.0
      %854 = vmatprep.subr.mxu0 0.0
      %855 = vmatpush1.msra.mxu0 0.0
      %856 = vmatprep.subr.mxu0 0.0
      %857 = vmatpush1.msra.mxu0 0.0
      %858 = vmatprep.subr.mxu0 0.0
      %859 = vmatpush1.msra.mxu0 0.0
      %860 = vmatprep.subr.mxu0 0.0
      %861 = vmatpush1.msra.mxu0 0.0
      %862 = vmatprep.subr.mxu0 0.0
      %863 = vmatpush1.msra.mxu0 0.0
      %864 = vmatprep.subr.mxu0 0.0
      %865 = vmatpush1.msra.mxu0 0.0
      %866 = vmatprep.subr.mxu0 0.0
      %867 = vmatpush1.msra.mxu0 0.0
      %868 = vmatprep.subr.mxu0 0.0
      %869 = vmatpush1.msra.mxu0 0.0
      %870 = vmatprep.subr.mxu0 0.0
      %871 = vmatpush1.msra.mxu0 0.0
      %872 = vmatprep.subr.mxu0 0.0
      %873 = vmatpush1.msra.mxu0 0.0
      %874 = vmatprep.subr.mxu0 0.0
      %875 = vmatpush1.msra.mxu0 0.0
      %876 = vmatprep.subr.mxu0 0.0
      %877 = vmatpush1.msra.mxu0 0.0
      %878 = vmatprep.subr.mxu0 0.0
      %879 = vmatpush1.msra.mxu0 0.0
      %880 = vmatprep.subr.mxu0 0.0
      %881 = vmatpush1.msra.mxu0 0.0
      %882 = vmatprep.subr.mxu0 0.0
      %883 = vmatpush1.msra.mxu0 0.0
      %884 = vmatprep.subr.mxu0 0.0
      %885 = vmatpush1.msra.mxu0 0.0
      %886 = vmatprep.subr.mxu0 0.0
      %887 = vmatpush1.msra.mxu0 0.0
      %888 = vmatprep.subr.mxu0 0.0
      %889 = vmatpush1.msra.mxu0 0.0
      %890 = vmatprep.mubr.f32.mxu0 0.0
      %v891 = vand.u32 %v328, 4294901760
      %892 = vmatmul.mubr.f32.gmra.mrb[0].mxu0 %v891
      %v893 = vpop.f32.mrb[0].mxu0
      %v894 = vadd.f32 %v498, %v893
      %v895 = vpop.f32.mrb[0].mxu0
      %896 = vmatprep.mubr.f32.mxu0 0.0
      %v897 = vand.u32 %v331, 4294901760
      %898 = vmatmul.mubr.f32.gmra.mrb[0].mxu0 %v897
      %v899 = vpop.f32.mrb[0].mxu0
      %v900 = vadd.f32 %v508, %v899
      %v901 = vpop.f32.mrb[0].mxu0
      %902 = vmatprep.mubr.f32.mxu0 0.0
      %v903 = vand.u32 %v334, 4294901760
      %904 = vmatmul.mubr.f32.gmra.mrb[0].mxu0 %v903
      %v905 = vpop.f32.mrb[0].mxu0
      %v906 = vadd.f32 %v518, %v905
      %v907 = vpop.f32.mrb[0].mxu0
      %908 = vmatprep.mubr.f32.mxu0 0.0
      %v909 = vand.u32 %v337, 4294901760
      %910 = vmatmul.mubr.f32.gmra.mrb[0].mxu0 %v909
      %v911 = vpop.f32.mrb[0].mxu0
      %v912 = vadd.f32 %v528, %v911
      %v913 = vpop.f32.mrb[0].mxu0
      %914 = vmatprep.mubr.f32.mxu0 0.0
      %v915 = vand.u32 %v340, 4294901760
      %916 = vmatmul.mubr.f32.gmra.mrb[0].mxu0 %v915
      %v917 = vpop.f32.mrb[0].mxu0
      %v918 = vadd.f32 %v538, %v917
      %v919 = vpop.f32.mrb[0].mxu0
      %920 = vmatprep.mubr.f32.mxu0 0.0
      %v921 = vand.u32 %v343, 4294901760
      %922 = vmatmul.mubr.f32.gmra.mrb[0].mxu0 %v921
      %v923 = vpop.f32.mrb[0].mxu0
      %v924 = vadd.f32 %v548, %v923
      %v925 = vpop.f32.mrb[0].mxu0
      %926 = vmatprep.mubr.f32.mxu0 0.0
      %v927 = vand.u32 %v346, 4294901760
      %928 = vmatmul.mubr.f32.gmra.mrb[0].mxu0 %v927
      %v929 = vpop.f32.mrb[0].mxu0
      %v930 = vadd.f32 %v558, %v929
      %v931 = vpop.f32.mrb[0].mxu0
      %932 = vmatprep.mubr.f32.mxu0 0.0
      %v933 = vand.u32 %v349, 4294901760
      %934 = vmatmul.mubr.f32.gmra.mrb[0].mxu0 %v933
      %v935 = vpop.f32.mrb[0].mxu0
      %v936 = vadd.f32 %v568, %v935
      %v937 = vpop.f32.mrb[0].mxu0
      %938 = vmatprep.mubr.f32.mxu0 0.0
      %v939 = vand.u32 %v352, 4294901760
      %940 = vmatmul.mubr.f32.gmra.mrb[0].mxu0 %v939
      %v941 = vpop.f32.mrb[0].mxu0
      %v942 = vadd.f32 %v578, %v941
      %v943 = vpop.f32.mrb[0].mxu0
      %944 = vmatprep.mubr.f32.mxu0 0.0
      %v945 = vand.u32 %v355, 4294901760
      %946 = vmatmul.mubr.f32.gmra.mrb[0].mxu0 %v945
      %v947 = vpop.f32.mrb[0].mxu0
      %v948 = vadd.f32 %v588, %v947
      %v949 = vpop.f32.mrb[0].mxu0
      %950 = vmatprep.mubr.f32.mxu0 0.0
      %v951 = vand.u32 %v358, 4294901760
      %952 = vmatmul.mubr.f32.gmra.mrb[0].mxu0 %v951
      %v953 = vpop.f32.mrb[0].mxu0
      %v954 = vadd.f32 %v598, %v953
      %v955 = vpop.f32.mrb[0].mxu0
      %956 = vmatprep.mubr.f32.mxu0 0.0
      %v957 = vand.u32 %v361, 4294901760
      %958 = vmatmul.mubr.f32.gmra.mrb[0].mxu0 %v957
      %v959 = vpop.f32.mrb[0].mxu0
      %v960 = vadd.f32 %v608, %v959
      %v961 = vpop.f32.mrb[0].mxu0
      %962 = vmatprep.mubr.f32.mxu0 0.0
      %v963 = vand.u32 %v364, 4294901760
      %964 = vmatmul.mubr.f32.gmra.mrb[0].mxu0 %v963
      %v965 = vpop.f32.mrb[0].mxu0
      %v966 = vadd.f32 %v618, %v965
      %v967 = vpop.f32.mrb[0].mxu0
      %968 = vmatprep.mubr.f32.mxu0 0.0
      %v969 = vand.u32 %v367, 4294901760
      %970 = vmatmul.mubr.f32.gmra.mrb[0].mxu0 %v969
      %v971 = vpop.f32.mrb[0].mxu0
      %v972 = vadd.f32 %v628, %v971
      %v973 = vpop.f32.mrb[0].mxu0
      %974 = vmatprep.mubr.f32.mxu0 0.0
      %v975 = vand.u32 %v370, 4294901760
      %976 = vmatmul.mubr.f32.gmra.mrb[0].mxu0 %v975
      %v977 = vpop.f32.mrb[0].mxu0
      %v978 = vadd.f32 %v638, %v977
      %v979 = vpop.f32.mrb[0].mxu0
      %980 = vmatprep.mubr.f32.mxu0 0.0
      %v981 = vand.u32 %v373, 4294901760
      %982 = vmatmul.mubr.f32.gmra.mrb[0].mxu0 %v981
      %v983 = vpop.f32.mrb[0].mxu0
      %v984 = vadd.f32 %v648, %v983
      %v985 = vpop.f32.mrb[0].mxu0
      %986 = vmatprep.mubr.f32.mxu0 0.0
      %v987 = vand.u32 %v376, 4294901760
      %988 = vmatmul.mubr.f32.gmra.mrb[0].mxu0 %v987
      %v989 = vpop.f32.mrb[0].mxu0
      %v990 = vadd.f32 %v658, %v989
      %v991 = vpop.f32.mrb[0].mxu0
      %992 = vmatprep.mubr.f32.mxu0 0.0
      %v993 = vand.u32 %v379, 4294901760
      %994 = vmatmul.mubr.f32.gmra.mrb[0].mxu0 %v993
      %v995 = vpop.f32.mrb[0].mxu0
      %v996 = vadd.f32 %v668, %v995
      %v997 = vpop.f32.mrb[0].mxu0
      %998 = vmatprep.mubr.f32.mxu0 0.0
      %v999 = vand.u32 %v382, 4294901760
      %1000 = vmatmul.mubr.f32.gmra.mrb[0].mxu0 %v999
      %v1001 = vpop.f32.mrb[0].mxu0
      %v1002 = vadd.f32 %v678, %v1001
      %v1003 = vpop.f32.mrb[0].mxu0
      %1004 = vmatprep.mubr.f32.mxu0 0.0
      %v1005 = vand.u32 %v385, 4294901760
      %1006 = vmatmul.mubr.f32.gmra.mrb[0].mxu0 %v1005
      %v1007 = vpop.f32.mrb[0].mxu0
      %v1008 = vadd.f32 %v688, %v1007
      %v1009 = vpop.f32.mrb[0].mxu0
      %1010 = vmatprep.mubr.f32.mxu0 0.0
      %v1011 = vand.u32 %v388, 4294901760
      %1012 = vmatmul.mubr.f32.gmra.mrb[0].mxu0 %v1011
      %v1013 = vpop.f32.mrb[0].mxu0
      %v1014 = vadd.f32 %v698, %v1013
      %v1015 = vpop.f32.mrb[0].mxu0
      %1016 = vmatprep.mubr.f32.mxu0 0.0
      %v1017 = vand.u32 %v391, 4294901760
      %1018 = vmatmul.mubr.f32.gmra.mrb[0].mxu0 %v1017
      %v1019 = vpop.f32.mrb[0].mxu0
      %v1020 = vadd.f32 %v708, %v1019
      %v1021 = vpop.f32.mrb[0].mxu0
      %1022 = vmatprep.mubr.f32.mxu0 0.0
      %v1023 = vand.u32 %v394, 4294901760
      %1024 = vmatmul.mubr.f32.gmra.mrb[0].mxu0 %v1023
      %v1025 = vpop.f32.mrb[0].mxu0
      %v1026 = vadd.f32 %v718, %v1025
      %v1027 = vpop.f32.mrb[0].mxu0
      %1028 = vmatprep.mubr.f32.mxu0 0.0
      %v1029 = vand.u32 %v397, 4294901760
      %1030 = vmatmul.mubr.f32.gmra.mrb[0].mxu0 %v1029
      %v1031 = vpop.f32.mrb[0].mxu0
      %v1032 = vadd.f32 %v728, %v1031
      %v1033 = vpop.f32.mrb[0].mxu0
      %1034 = vmatprep.mubr.f32.mxu0 0.0
      %v1035 = vand.u32 %v400, 4294901760
      %1036 = vmatmul.mubr.f32.gmra.mrb[0].mxu0 %v1035
      %v1037 = vpop.f32.mrb[0].mxu0
      %v1038 = vadd.f32 %v738, %v1037
      %v1039 = vpop.f32.mrb[0].mxu0
      %1040 = vmatprep.mubr.f32.mxu0 0.0
      %v1041 = vand.u32 %v403, 4294901760
      %1042 = vmatmul.mubr.f32.gmra.mrb[0].mxu0 %v1041
      %v1043 = vpop.f32.mrb[0].mxu0
      %v1044 = vadd.f32 %v748, %v1043
      %v1045 = vpop.f32.mrb[0].mxu0
      %1046 = vmatprep.mubr.f32.mxu0 0.0
      %v1047 = vand.u32 %v406, 4294901760
      %1048 = vmatmul.mubr.f32.gmra.mrb[0].mxu0 %v1047
      %v1049 = vpop.f32.mrb[0].mxu0
      %v1050 = vadd.f32 %v758, %v1049
      %v1051 = vpop.f32.mrb[0].mxu0
      %1052 = vmatprep.mubr.f32.mxu0 0.0
      %v1053 = vand.u32 %v409, 4294901760
      %1054 = vmatmul.mubr.f32.gmra.mrb[0].mxu0 %v1053
      %v1055 = vpop.f32.mrb[0].mxu0
      %v1056 = vadd.f32 %v768, %v1055
      %v1057 = vpop.f32.mrb[0].mxu0
      %1058 = vmatprep.mubr.f32.mxu0 0.0
      %v1059 = vand.u32 %v412, 4294901760
      %1060 = vmatmul.mubr.f32.gmra.mrb[0].mxu0 %v1059
      %v1061 = vpop.f32.mrb[0].mxu0
      %v1062 = vadd.f32 %v778, %v1061
      %v1063 = vpop.f32.mrb[0].mxu0
      %1064 = vmatprep.mubr.f32.mxu0 0.0
      %v1065 = vand.u32 %v415, 4294901760
      %1066 = vmatmul.mubr.f32.gmra.mrb[0].mxu0 %v1065
      %v1067 = vpop.f32.mrb[0].mxu0
      %v1068 = vadd.f32 %v788, %v1067
      %v1069 = vpop.f32.mrb[0].mxu0
      %1070 = vmatprep.mubr.f32.mxu0 0.0
      %v1071 = vand.u32 %v418, 4294901760
      %1072 = vmatmul.mubr.f32.gmra.mrb[0].mxu0 %v1071
      %v1073 = vpop.f32.mrb[0].mxu0
      %v1074 = vadd.f32 %v798, %v1073
      %v1075 = vpop.f32.mrb[0].mxu0
      %1076 = vmatprep.mubr.f32.mxu0 0.0
      %v1077 = vand.u32 %v421, 4294901760
      %1078 = vmatmul.mubr.f32.gmra.mrb[0].mxu0 %v1077
      %v1079 = vpop.f32.mrb[0].mxu0
      %v1080 = vadd.f32 %v808, %v1079
      %v1081 = vpop.f32.mrb[0].mxu0
      %1082 = vdwg.mxu0
      %1083 = vmatprep.subr.mxu0 0.0
      %v1084 = vand.u32 %v323, 4294901760
      %v1085 = vsub.f32 %v323, %v1084
      %1086 = vmatpush1.msra.mxu0 %v1085
      %1087 = vmatprep.subr.mxu0 0.0
      %v1088 = vand.u32 %v324, 4294901760
      %v1089 = vsub.f32 %v324, %v1088
      %1090 = vmatpush1.msra.mxu0 %v1089
      %1091 = vmatprep.subr.mxu0 0.0
      %v1092 = vand.u32 %v325, 4294901760
      %v1093 = vsub.f32 %v325, %v1092
      %1094 = vmatpush1.msra.mxu0 %v1093
      %1095 = vmatprep.subr.mxu0 0.0
      %1096 = vmatpush1.msra.mxu0 0.0
      %1097 = vmatprep.subr.mxu0 0.0
      %1098 = vmatpush1.msra.mxu0 0.0
      %1099 = vmatprep.subr.mxu0 0.0
      %1100 = vmatpush1.msra.mxu0 0.0
      %1101 = vmatprep.subr.mxu0 0.0
      %1102 = vmatpush1.msra.mxu0 0.0
      %1103 = vmatprep.subr.mxu0 0.0
      %1104 = vmatpush1.msra.mxu0 0.0
      %1105 = vmatprep.subr.mxu0 0.0
      %1106 = vmatpush1.msra.mxu0 0.0
      %1107 = vmatprep.subr.mxu0 0.0
      %1108 = vmatpush1.msra.mxu0 0.0
      %1109 = vmatprep.subr.mxu0 0.0
      %1110 = vmatpush1.msra.mxu0 0.0
      %1111 = vmatprep.subr.mxu0 0.0
      %1112 = vmatpush1.msra.mxu0 0.0
      %1113 = vmatprep.subr.mxu0 0.0
      %1114 = vmatpush1.msra.mxu0 0.0
      %1115 = vmatprep.subr.mxu0 0.0
      %1116 = vmatpush1.msra.mxu0 0.0
      %1117 = vmatprep.subr.mxu0 0.0
      %1118 = vmatpush1.msra.mxu0 0.0
      %1119 = vmatprep.subr.mxu0 0.0
      %1120 = vmatpush1.msra.mxu0 0.0
      %1121 = vmatprep.subr.mxu0 0.0
      %1122 = vmatpush1.msra.mxu0 0.0
      %1123 = vmatprep.subr.mxu0 0.0
      %1124 = vmatpush1.msra.mxu0 0.0
      %1125 = vmatprep.subr.mxu0 0.0
      %1126 = vmatpush1.msra.mxu0 0.0
      %1127 = vmatprep.subr.mxu0 0.0
      %1128 = vmatpush1.msra.mxu0 0.0
      %1129 = vmatprep.subr.mxu0 0.0
      %1130 = vmatpush1.msra.mxu0 0.0
      %1131 = vmatprep.subr.mxu0 0.0
      %1132 = vmatpush1.msra.mxu0 0.0
      %1133 = vmatprep.subr.mxu0 0.0
      %1134 = vmatpush1.msra.mxu0 0.0
      %1135 = vmatprep.subr.mxu0 0.0
      %1136 = vmatpush1.msra.mxu0 0.0
      %1137 = vmatprep.subr.mxu0 0.0
      %1138 = vmatpush1.msra.mxu0 0.0
      %1139 = vmatprep.subr.mxu0 0.0
      %1140 = vmatpush1.msra.mxu0 0.0
      %1141 = vmatprep.subr.mxu0 0.0
      %1142 = vmatpush1.msra.mxu0 0.0
      %1143 = vmatprep.subr.mxu0 0.0
      %1144 = vmatpush1.msra.mxu0 0.0
      %1145 = vmatprep.subr.mxu0 0.0
      %1146 = vmatpush1.msra.mxu0 0.0
      %1147 = vmatprep.subr.mxu0 0.0
      %1148 = vmatpush1.msra.mxu0 0.0
      %1149 = vmatprep.subr.mxu0 0.0
      %1150 = vmatpush1.msra.mxu0 0.0
      %1151 = vmatprep.subr.mxu0 0.0
      %1152 = vmatpush1.msra.mxu0 0.0
      %1153 = vmatprep.mubr.f32.mxu0 0.0
      %v1154 = vand.u32 %v328, 4294901760
      %v1155 = vsub.f32 %v328, %v1154
      %1156 = vmatmul.mubr.f32.gmra.mrb[0].mxu0 %v1155
      %v1157 = vpop.f32.mrb[0].mxu0
      %v1158 = vadd.f32 %v894, %v1157
      %v1159 = vpop.f32.mrb[0].mxu0
      %1160 = vmatprep.mubr.f32.mxu0 0.0
      %v1161 = vand.u32 %v331, 4294901760
      %v1162 = vsub.f32 %v331, %v1161
      %1163 = vmatmul.mubr.f32.gmra.mrb[0].mxu0 %v1162
      %v1164 = vpop.f32.mrb[0].mxu0
      %v1165 = vadd.f32 %v900, %v1164
      %v1166 = vpop.f32.mrb[0].mxu0
      %1167 = vmatprep.mubr.f32.mxu0 0.0
      %v1168 = vand.u32 %v334, 4294901760
      %v1169 = vsub.f32 %v334, %v1168
      %1170 = vmatmul.mubr.f32.gmra.mrb[0].mxu0 %v1169
      %v1171 = vpop.f32.mrb[0].mxu0
      %v1172 = vadd.f32 %v906, %v1171
      %v1173 = vpop.f32.mrb[0].mxu0
      %1174 = vmatprep.mubr.f32.mxu0 0.0
      %v1175 = vand.u32 %v337, 4294901760
      %v1176 = vsub.f32 %v337, %v1175
      %1177 = vmatmul.mubr.f32.gmra.mrb[0].mxu0 %v1176
      %v1178 = vpop.f32.mrb[0].mxu0
      %v1179 = vadd.f32 %v912, %v1178
      %v1180 = vpop.f32.mrb[0].mxu0
      %1181 = vmatprep.mubr.f32.mxu0 0.0
      %v1182 = vand.u32 %v340, 4294901760
      %v1183 = vsub.f32 %v340, %v1182
      %1184 = vmatmul.mubr.f32.gmra.mrb[0].mxu0 %v1183
      %v1185 = vpop.f32.mrb[0].mxu0
      %v1186 = vadd.f32 %v918, %v1185
      %v1187 = vpop.f32.mrb[0].mxu0
      %1188 = vmatprep.mubr.f32.mxu0 0.0
      %v1189 = vand.u32 %v343, 4294901760
      %v1190 = vsub.f32 %v343, %v1189
      %1191 = vmatmul.mubr.f32.gmra.mrb[0].mxu0 %v1190
      %v1192 = vpop.f32.mrb[0].mxu0
      %v1193 = vadd.f32 %v924, %v1192
      %v1194 = vpop.f32.mrb[0].mxu0
      %1195 = vmatprep.mubr.f32.mxu0 0.0
      %v1196 = vand.u32 %v346, 4294901760
      %v1197 = vsub.f32 %v346, %v1196
      %1198 = vmatmul.mubr.f32.gmra.mrb[0].mxu0 %v1197
      %v1199 = vpop.f32.mrb[0].mxu0
      %v1200 = vadd.f32 %v930, %v1199
      %v1201 = vpop.f32.mrb[0].mxu0
      %1202 = vmatprep.mubr.f32.mxu0 0.0
      %v1203 = vand.u32 %v349, 4294901760
      %v1204 = vsub.f32 %v349, %v1203
      %1205 = vmatmul.mubr.f32.gmra.mrb[0].mxu0 %v1204
      %v1206 = vpop.f32.mrb[0].mxu0
      %v1207 = vadd.f32 %v936, %v1206
      %v1208 = vpop.f32.mrb[0].mxu0
      %1209 = vmatprep.mubr.f32.mxu0 0.0
      %v1210 = vand.u32 %v352, 4294901760
      %v1211 = vsub.f32 %v352, %v1210
      %1212 = vmatmul.mubr.f32.gmra.mrb[0].mxu0 %v1211
      %v1213 = vpop.f32.mrb[0].mxu0
      %v1214 = vadd.f32 %v942, %v1213
      %v1215 = vpop.f32.mrb[0].mxu0
      %1216 = vmatprep.mubr.f32.mxu0 0.0
      %v1217 = vand.u32 %v355, 4294901760
      %v1218 = vsub.f32 %v355, %v1217
      %1219 = vmatmul.mubr.f32.gmra.mrb[0].mxu0 %v1218
      %v1220 = vpop.f32.mrb[0].mxu0
      %v1221 = vadd.f32 %v948, %v1220
      %v1222 = vpop.f32.mrb[0].mxu0
      %1223 = vmatprep.mubr.f32.mxu0 0.0
      %v1224 = vand.u32 %v358, 4294901760
      %v1225 = vsub.f32 %v358, %v1224
      %1226 = vmatmul.mubr.f32.gmra.mrb[0].mxu0 %v1225
      %v1227 = vpop.f32.mrb[0].mxu0
      %v1228 = vadd.f32 %v954, %v1227
      %v1229 = vpop.f32.mrb[0].mxu0
      %1230 = vmatprep.mubr.f32.mxu0 0.0
      %v1231 = vand.u32 %v361, 4294901760
      %v1232 = vsub.f32 %v361, %v1231
      %1233 = vmatmul.mubr.f32.gmra.mrb[0].mxu0 %v1232
      %v1234 = vpop.f32.mrb[0].mxu0
      %v1235 = vadd.f32 %v960, %v1234
      %v1236 = vpop.f32.mrb[0].mxu0
      %1237 = vmatprep.mubr.f32.mxu0 0.0
      %v1238 = vand.u32 %v364, 4294901760
      %v1239 = vsub.f32 %v364, %v1238
      %1240 = vmatmul.mubr.f32.gmra.mrb[0].mxu0 %v1239
      %v1241 = vpop.f32.mrb[0].mxu0
      %v1242 = vadd.f32 %v966, %v1241
      %v1243 = vpop.f32.mrb[0].mxu0
      %1244 = vmatprep.mubr.f32.mxu0 0.0
      %v1245 = vand.u32 %v367, 4294901760
      %v1246 = vsub.f32 %v367, %v1245
      %1247 = vmatmul.mubr.f32.gmra.mrb[0].mxu0 %v1246
      %v1248 = vpop.f32.mrb[0].mxu0
      %v1249 = vadd.f32 %v972, %v1248
      %v1250 = vpop.f32.mrb[0].mxu0
      %1251 = vmatprep.mubr.f32.mxu0 0.0
      %v1252 = vand.u32 %v370, 4294901760
      %v1253 = vsub.f32 %v370, %v1252
      %1254 = vmatmul.mubr.f32.gmra.mrb[0].mxu0 %v1253
      %v1255 = vpop.f32.mrb[0].mxu0
      %v1256 = vadd.f32 %v978, %v1255
      %v1257 = vpop.f32.mrb[0].mxu0
      %1258 = vmatprep.mubr.f32.mxu0 0.0
      %v1259 = vand.u32 %v373, 4294901760
      %v1260 = vsub.f32 %v373, %v1259
      %1261 = vmatmul.mubr.f32.gmra.mrb[0].mxu0 %v1260
      %v1262 = vpop.f32.mrb[0].mxu0
      %v1263 = vadd.f32 %v984, %v1262
      %v1264 = vpop.f32.mrb[0].mxu0
      %1265 = vmatprep.mubr.f32.mxu0 0.0
      %v1266 = vand.u32 %v376, 4294901760
      %v1267 = vsub.f32 %v376, %v1266
      %1268 = vmatmul.mubr.f32.gmra.mrb[0].mxu0 %v1267
      %v1269 = vpop.f32.mrb[0].mxu0
      %v1270 = vadd.f32 %v990, %v1269
      %v1271 = vpop.f32.mrb[0].mxu0
      %1272 = vmatprep.mubr.f32.mxu0 0.0
      %v1273 = vand.u32 %v379, 4294901760
      %v1274 = vsub.f32 %v379, %v1273
      %1275 = vmatmul.mubr.f32.gmra.mrb[0].mxu0 %v1274
      %v1276 = vpop.f32.mrb[0].mxu0
      %v1277 = vadd.f32 %v996, %v1276
      %v1278 = vpop.f32.mrb[0].mxu0
      %1279 = vmatprep.mubr.f32.mxu0 0.0
      %v1280 = vand.u32 %v382, 4294901760
      %v1281 = vsub.f32 %v382, %v1280
      %1282 = vmatmul.mubr.f32.gmra.mrb[0].mxu0 %v1281
      %v1283 = vpop.f32.mrb[0].mxu0
      %v1284 = vadd.f32 %v1002, %v1283
      %v1285 = vpop.f32.mrb[0].mxu0
      %1286 = vmatprep.mubr.f32.mxu0 0.0
      %v1287 = vand.u32 %v385, 4294901760
      %v1288 = vsub.f32 %v385, %v1287
      %1289 = vmatmul.mubr.f32.gmra.mrb[0].mxu0 %v1288
      %v1290 = vpop.f32.mrb[0].mxu0
      %v1291 = vadd.f32 %v1008, %v1290
      %v1292 = vpop.f32.mrb[0].mxu0
      %1293 = vmatprep.mubr.f32.mxu0 0.0
      %v1294 = vand.u32 %v388, 4294901760
      %v1295 = vsub.f32 %v388, %v1294
      %1296 = vmatmul.mubr.f32.gmra.mrb[0].mxu0 %v1295
      %v1297 = vpop.f32.mrb[0].mxu0
      %v1298 = vadd.f32 %v1014, %v1297
      %v1299 = vpop.f32.mrb[0].mxu0
      %1300 = vmatprep.mubr.f32.mxu0 0.0
      %v1301 = vand.u32 %v391, 4294901760
      %v1302 = vsub.f32 %v391, %v1301
      %1303 = vmatmul.mubr.f32.gmra.mrb[0].mxu0 %v1302
      %v1304 = vpop.f32.mrb[0].mxu0
      %v1305 = vadd.f32 %v1020, %v1304
      %v1306 = vpop.f32.mrb[0].mxu0
      %1307 = vmatprep.mubr.f32.mxu0 0.0
      %v1308 = vand.u32 %v394, 4294901760
      %v1309 = vsub.f32 %v394, %v1308
      %1310 = vmatmul.mubr.f32.gmra.mrb[0].mxu0 %v1309
      %v1311 = vpop.f32.mrb[0].mxu0
      %v1312 = vadd.f32 %v1026, %v1311
      %v1313 = vpop.f32.mrb[0].mxu0
      %1314 = vmatprep.mubr.f32.mxu0 0.0
      %v1315 = vand.u32 %v397, 4294901760
      %v1316 = vsub.f32 %v397, %v1315
      %1317 = vmatmul.mubr.f32.gmra.mrb[0].mxu0 %v1316
      %v1318 = vpop.f32.mrb[0].mxu0
      %v1319 = vadd.f32 %v1032, %v1318
      %v1320 = vpop.f32.mrb[0].mxu0
      %1321 = vmatprep.mubr.f32.mxu0 0.0
      %v1322 = vand.u32 %v400, 4294901760
      %v1323 = vsub.f32 %v400, %v1322
      %1324 = vmatmul.mubr.f32.gmra.mrb[0].mxu0 %v1323
      %v1325 = vpop.f32.mrb[0].mxu0
      %v1326 = vadd.f32 %v1038, %v1325
      %v1327 = vpop.f32.mrb[0].mxu0
      %1328 = vmatprep.mubr.f32.mxu0 0.0
      %v1329 = vand.u32 %v403, 4294901760
      %v1330 = vsub.f32 %v403, %v1329
      %1331 = vmatmul.mubr.f32.gmra.mrb[0].mxu0 %v1330
      %v1332 = vpop.f32.mrb[0].mxu0
      %v1333 = vadd.f32 %v1044, %v1332
      %v1334 = vpop.f32.mrb[0].mxu0
      %1335 = vmatprep.mubr.f32.mxu0 0.0
      %v1336 = vand.u32 %v406, 4294901760
      %v1337 = vsub.f32 %v406, %v1336
      %1338 = vmatmul.mubr.f32.gmra.mrb[0].mxu0 %v1337
      %v1339 = vpop.f32.mrb[0].mxu0
      %v1340 = vadd.f32 %v1050, %v1339
      %v1341 = vpop.f32.mrb[0].mxu0
      %1342 = vmatprep.mubr.f32.mxu0 0.0
      %v1343 = vand.u32 %v409, 4294901760
      %v1344 = vsub.f32 %v409, %v1343
      %1345 = vmatmul.mubr.f32.gmra.mrb[0].mxu0 %v1344
      %v1346 = vpop.f32.mrb[0].mxu0
      %v1347 = vadd.f32 %v1056, %v1346
      %v1348 = vpop.f32.mrb[0].mxu0
      %1349 = vmatprep.mubr.f32.mxu0 0.0
      %v1350 = vand.u32 %v412, 4294901760
      %v1351 = vsub.f32 %v412, %v1350
      %1352 = vmatmul.mubr.f32.gmra.mrb[0].mxu0 %v1351
      %v1353 = vpop.f32.mrb[0].mxu0
      %v1354 = vadd.f32 %v1062, %v1353
      %v1355 = vpop.f32.mrb[0].mxu0
      %1356 = vmatprep.mubr.f32.mxu0 0.0
      %v1357 = vand.u32 %v415, 4294901760
      %v1358 = vsub.f32 %v415, %v1357
      %1359 = vmatmul.mubr.f32.gmra.mrb[0].mxu0 %v1358
      %v1360 = vpop.f32.mrb[0].mxu0
      %v1361 = vadd.f32 %v1068, %v1360
      %v1362 = vpop.f32.mrb[0].mxu0
      %1363 = vmatprep.mubr.f32.mxu0 0.0
      %v1364 = vand.u32 %v418, 4294901760
      %v1365 = vsub.f32 %v418, %v1364
      %1366 = vmatmul.mubr.f32.gmra.mrb[0].mxu0 %v1365
      %v1367 = vpop.f32.mrb[0].mxu0
      %v1368 = vadd.f32 %v1074, %v1367
      %v1369 = vpop.f32.mrb[0].mxu0
      %1370 = vmatprep.mubr.f32.mxu0 0.0
      %v1371 = vand.u32 %v421, 4294901760
      %v1372 = vsub.f32 %v421, %v1371
      %1373 = vmatmul.mubr.f32.gmra.mrb[0].mxu0 %v1372
      %v1374 = vpop.f32.mrb[0].mxu0
      %v1375 = vadd.f32 %v1080, %v1374
      %v1376 = vpop.f32.mrb[0].mxu0
      %1377 = vdwg.mxu0
      %1378 = vmatprep.subr.mxu0 0.0
      %v1379 = vand.u32 %v323, 4294901760
      %1380 = vmatpush1.msra.mxu0 %v1379
      %1381 = vmatprep.subr.mxu0 0.0
      %v1382 = vand.u32 %v324, 4294901760
      %1383 = vmatpush1.msra.mxu0 %v1382
      %1384 = vmatprep.subr.mxu0 0.0
      %v1385 = vand.u32 %v325, 4294901760
      %1386 = vmatpush1.msra.mxu0 %v1385
      %1387 = vmatprep.subr.mxu0 0.0
      %1388 = vmatpush1.msra.mxu0 0.0
      %1389 = vmatprep.subr.mxu0 0.0
      %1390 = vmatpush1.msra.mxu0 0.0
      %1391 = vmatprep.subr.mxu0 0.0
      %1392 = vmatpush1.msra.mxu0 0.0
      %1393 = vmatprep.subr.mxu0 0.0
      %1394 = vmatpush1.msra.mxu0 0.0
      %1395 = vmatprep.subr.mxu0 0.0
      %1396 = vmatpush1.msra.mxu0 0.0
      %1397 = vmatprep.subr.mxu0 0.0
      %1398 = vmatpush1.msra.mxu0 0.0
      %1399 = vmatprep.subr.mxu0 0.0
      %1400 = vmatpush1.msra.mxu0 0.0
      %1401 = vmatprep.subr.mxu0 0.0
      %1402 = vmatpush1.msra.mxu0 0.0
      %1403 = vmatprep.subr.mxu0 0.0
      %1404 = vmatpush1.msra.mxu0 0.0
      %1405 = vmatprep.subr.mxu0 0.0
      %1406 = vmatpush1.msra.mxu0 0.0
      %1407 = vmatprep.subr.mxu0 0.0
      %1408 = vmatpush1.msra.mxu0 0.0
      %1409 = vmatprep.subr.mxu0 0.0
      %1410 = vmatpush1.msra.mxu0 0.0
      %1411 = vmatprep.subr.mxu0 0.0
      %1412 = vmatpush1.msra.mxu0 0.0
      %1413 = vmatprep.subr.mxu0 0.0
      %1414 = vmatpush1.msra.mxu0 0.0
      %1415 = vmatprep.subr.mxu0 0.0
      %1416 = vmatpush1.msra.mxu0 0.0
      %1417 = vmatprep.subr.mxu0 0.0
      %1418 = vmatpush1.msra.mxu0 0.0
      %1419 = vmatprep.subr.mxu0 0.0
      %1420 = vmatpush1.msra.mxu0 0.0
      %1421 = vmatprep.subr.mxu0 0.0
      %1422 = vmatpush1.msra.mxu0 0.0
      %1423 = vmatprep.subr.mxu0 0.0
      %1424 = vmatpush1.msra.mxu0 0.0
      %1425 = vmatprep.subr.mxu0 0.0
      %1426 = vmatpush1.msra.mxu0 0.0
      %1427 = vmatprep.subr.mxu0 0.0
      %1428 = vmatpush1.msra.mxu0 0.0
      %1429 = vmatprep.subr.mxu0 0.0
      %1430 = vmatpush1.msra.mxu0 0.0
      %1431 = vmatprep.subr.mxu0 0.0
      %1432 = vmatpush1.msra.mxu0 0.0
      %1433 = vmatprep.subr.mxu0 0.0
      %1434 = vmatpush1.msra.mxu0 0.0
      %1435 = vmatprep.subr.mxu0 0.0
      %1436 = vmatpush1.msra.mxu0 0.0
      %1437 = vmatprep.subr.mxu0 0.0
      %1438 = vmatpush1.msra.mxu0 0.0
      %1439 = vmatprep.subr.mxu0 0.0
      %1440 = vmatpush1.msra.mxu0 0.0
      %1441 = vmatprep.subr.mxu0 0.0
      %1442 = vmatpush1.msra.mxu0 0.0
      %1443 = vmatprep.subr.mxu0 0.0
      %1444 = vmatpush1.msra.mxu0 0.0
      %1445 = vmatprep.mubr.f32.mxu0 0.0
      %v1446 = vand.u32 %v328, 4294901760
      %v1447 = vsub.f32 %v328, %v1446
      %v1448 = vand.u32 %v1447, 4294901760
      %1449 = vmatmul.mubr.f32.gmra.mrb[0].mxu0 %v1448
      %v1450 = vpop.f32.mrb[0].mxu0
      %v1451 = vadd.f32 %v1158, %v1450
      %v1452 = vpop.f32.mrb[0].mxu0
      %1453 = vmatprep.mubr.f32.mxu0 0.0
      %v1454 = vand.u32 %v331, 4294901760
      %v1455 = vsub.f32 %v331, %v1454
      %v1456 = vand.u32 %v1455, 4294901760
      %1457 = vmatmul.mubr.f32.gmra.mrb[0].mxu0 %v1456
      %v1458 = vpop.f32.mrb[0].mxu0
      %v1459 = vadd.f32 %v1165, %v1458
      %v1460 = vpop.f32.mrb[0].mxu0
      %1461 = vmatprep.mubr.f32.mxu0 0.0
      %v1462 = vand.u32 %v334, 4294901760
      %v1463 = vsub.f32 %v334, %v1462
      %v1464 = vand.u32 %v1463, 4294901760
      %1465 = vmatmul.mubr.f32.gmra.mrb[0].mxu0 %v1464
      %v1466 = vpop.f32.mrb[0].mxu0
      %v1467 = vadd.f32 %v1172, %v1466
      %v1468 = vpop.f32.mrb[0].mxu0
      %1469 = vmatprep.mubr.f32.mxu0 0.0
      %v1470 = vand.u32 %v337, 4294901760
      %v1471 = vsub.f32 %v337, %v1470
      %v1472 = vand.u32 %v1471, 4294901760
      %1473 = vmatmul.mubr.f32.gmra.mrb[0].mxu0 %v1472
      %v1474 = vpop.f32.mrb[0].mxu0
      %v1475 = vadd.f32 %v1179, %v1474
      %v1476 = vpop.f32.mrb[0].mxu0
      %1477 = vmatprep.mubr.f32.mxu0 0.0
      %v1478 = vand.u32 %v340, 4294901760
      %v1479 = vsub.f32 %v340, %v1478
      %v1480 = vand.u32 %v1479, 4294901760
      %1481 = vmatmul.mubr.f32.gmra.mrb[0].mxu0 %v1480
      %v1482 = vpop.f32.mrb[0].mxu0
      %v1483 = vadd.f32 %v1186, %v1482
      %v1484 = vpop.f32.mrb[0].mxu0
      %1485 = vmatprep.mubr.f32.mxu0 0.0
      %v1486 = vand.u32 %v343, 4294901760
      %v1487 = vsub.f32 %v343, %v1486
      %v1488 = vand.u32 %v1487, 4294901760
      %1489 = vmatmul.mubr.f32.gmra.mrb[0].mxu0 %v1488
      %v1490 = vpop.f32.mrb[0].mxu0
      %v1491 = vadd.f32 %v1193, %v1490
      %v1492 = vpop.f32.mrb[0].mxu0
      %1493 = vmatprep.mubr.f32.mxu0 0.0
      %v1494 = vand.u32 %v346, 4294901760
      %v1495 = vsub.f32 %v346, %v1494
      %v1496 = vand.u32 %v1495, 4294901760
      %1497 = vmatmul.mubr.f32.gmra.mrb[0].mxu0 %v1496
      %v1498 = vpop.f32.mrb[0].mxu0
      %v1499 = vadd.f32 %v1200, %v1498
      %v1500 = vpop.f32.mrb[0].mxu0
      %1501 = vmatprep.mubr.f32.mxu0 0.0
      %v1502 = vand.u32 %v349, 4294901760
      %v1503 = vsub.f32 %v349, %v1502
      %v1504 = vand.u32 %v1503, 4294901760
      %1505 = vmatmul.mubr.f32.gmra.mrb[0].mxu0 %v1504
      %v1506 = vpop.f32.mrb[0].mxu0
      %v1507 = vadd.f32 %v1207, %v1506
      %v1508 = vpop.f32.mrb[0].mxu0
      %1509 = vmatprep.mubr.f32.mxu0 0.0
      %v1510 = vand.u32 %v352, 4294901760
      %v1511 = vsub.f32 %v352, %v1510
      %v1512 = vand.u32 %v1511, 4294901760
      %1513 = vmatmul.mubr.f32.gmra.mrb[0].mxu0 %v1512
      %v1514 = vpop.f32.mrb[0].mxu0
      %v1515 = vadd.f32 %v1214, %v1514
      %v1516 = vpop.f32.mrb[0].mxu0
      %1517 = vmatprep.mubr.f32.mxu0 0.0
      %v1518 = vand.u32 %v355, 4294901760
      %v1519 = vsub.f32 %v355, %v1518
      %v1520 = vand.u32 %v1519, 4294901760
      %1521 = vmatmul.mubr.f32.gmra.mrb[0].mxu0 %v1520
      %v1522 = vpop.f32.mrb[0].mxu0
      %v1523 = vadd.f32 %v1221, %v1522
      %v1524 = vpop.f32.mrb[0].mxu0
      %1525 = vmatprep.mubr.f32.mxu0 0.0
      %v1526 = vand.u32 %v358, 4294901760
      %v1527 = vsub.f32 %v358, %v1526
      %v1528 = vand.u32 %v1527, 4294901760
      %1529 = vmatmul.mubr.f32.gmra.mrb[0].mxu0 %v1528
      %v1530 = vpop.f32.mrb[0].mxu0
      %v1531 = vadd.f32 %v1228, %v1530
      %v1532 = vpop.f32.mrb[0].mxu0
      %1533 = vmatprep.mubr.f32.mxu0 0.0
      %v1534 = vand.u32 %v361, 4294901760
      %v1535 = vsub.f32 %v361, %v1534
      %v1536 = vand.u32 %v1535, 4294901760
      %1537 = vmatmul.mubr.f32.gmra.mrb[0].mxu0 %v1536
      %v1538 = vpop.f32.mrb[0].mxu0
      %v1539 = vadd.f32 %v1235, %v1538
      %v1540 = vpop.f32.mrb[0].mxu0
      %1541 = vmatprep.mubr.f32.mxu0 0.0
      %v1542 = vand.u32 %v364, 4294901760
      %v1543 = vsub.f32 %v364, %v1542
      %v1544 = vand.u32 %v1543, 4294901760
      %1545 = vmatmul.mubr.f32.gmra.mrb[0].mxu0 %v1544
      %v1546 = vpop.f32.mrb[0].mxu0
      %v1547 = vadd.f32 %v1242, %v1546
      %v1548 = vpop.f32.mrb[0].mxu0
      %1549 = vmatprep.mubr.f32.mxu0 0.0
      %v1550 = vand.u32 %v367, 4294901760
      %v1551 = vsub.f32 %v367, %v1550
      %v1552 = vand.u32 %v1551, 4294901760
      %1553 = vmatmul.mubr.f32.gmra.mrb[0].mxu0 %v1552
      %v1554 = vpop.f32.mrb[0].mxu0
      %v1555 = vadd.f32 %v1249, %v1554
      %v1556 = vpop.f32.mrb[0].mxu0
      %1557 = vmatprep.mubr.f32.mxu0 0.0
      %v1558 = vand.u32 %v370, 4294901760
      %v1559 = vsub.f32 %v370, %v1558
      %v1560 = vand.u32 %v1559, 4294901760
      %1561 = vmatmul.mubr.f32.gmra.mrb[0].mxu0 %v1560
      %v1562 = vpop.f32.mrb[0].mxu0
      %v1563 = vadd.f32 %v1256, %v1562
      %v1564 = vpop.f32.mrb[0].mxu0
      %1565 = vmatprep.mubr.f32.mxu0 0.0
      %v1566 = vand.u32 %v373, 4294901760
      %v1567 = vsub.f32 %v373, %v1566
      %v1568 = vand.u32 %v1567, 4294901760
      %1569 = vmatmul.mubr.f32.gmra.mrb[0].mxu0 %v1568
      %v1570 = vpop.f32.mrb[0].mxu0
      %v1571 = vadd.f32 %v1263, %v1570
      %v1572 = vpop.f32.mrb[0].mxu0
      %1573 = vmatprep.mubr.f32.mxu0 0.0
      %v1574 = vand.u32 %v376, 4294901760
      %v1575 = vsub.f32 %v376, %v1574
      %v1576 = vand.u32 %v1575, 4294901760
      %1577 = vmatmul.mubr.f32.gmra.mrb[0].mxu0 %v1576
      %v1578 = vpop.f32.mrb[0].mxu0
      %v1579 = vadd.f32 %v1270, %v1578
      %v1580 = vpop.f32.mrb[0].mxu0
      %1581 = vmatprep.mubr.f32.mxu0 0.0
      %v1582 = vand.u32 %v379, 4294901760
      %v1583 = vsub.f32 %v379, %v1582
      %v1584 = vand.u32 %v1583, 4294901760
      %1585 = vmatmul.mubr.f32.gmra.mrb[0].mxu0 %v1584
      %v1586 = vpop.f32.mrb[0].mxu0
      %v1587 = vadd.f32 %v1277, %v1586
      %v1588 = vpop.f32.mrb[0].mxu0
      %1589 = vmatprep.mubr.f32.mxu0 0.0
      %v1590 = vand.u32 %v382, 4294901760
      %v1591 = vsub.f32 %v382, %v1590
      %v1592 = vand.u32 %v1591, 4294901760
      %1593 = vmatmul.mubr.f32.gmra.mrb[0].mxu0 %v1592
      %v1594 = vpop.f32.mrb[0].mxu0
      %v1595 = vadd.f32 %v1284, %v1594
      %v1596 = vpop.f32.mrb[0].mxu0
      %1597 = vmatprep.mubr.f32.mxu0 0.0
      %v1598 = vand.u32 %v385, 4294901760
      %v1599 = vsub.f32 %v385, %v1598
      %v1600 = vand.u32 %v1599, 4294901760
      %1601 = vmatmul.mubr.f32.gmra.mrb[0].mxu0 %v1600
      %v1602 = vpop.f32.mrb[0].mxu0
      %v1603 = vadd.f32 %v1291, %v1602
      %v1604 = vpop.f32.mrb[0].mxu0
      %1605 = vmatprep.mubr.f32.mxu0 0.0
      %v1606 = vand.u32 %v388, 4294901760
      %v1607 = vsub.f32 %v388, %v1606
      %v1608 = vand.u32 %v1607, 4294901760
      %1609 = vmatmul.mubr.f32.gmra.mrb[0].mxu0 %v1608
      %v1610 = vpop.f32.mrb[0].mxu0
      %v1611 = vadd.f32 %v1298, %v1610
      %v1612 = vpop.f32.mrb[0].mxu0
      %1613 = vmatprep.mubr.f32.mxu0 0.0
      %v1614 = vand.u32 %v391, 4294901760
      %v1615 = vsub.f32 %v391, %v1614
      %v1616 = vand.u32 %v1615, 4294901760
      %1617 = vmatmul.mubr.f32.gmra.mrb[0].mxu0 %v1616
      %v1618 = vpop.f32.mrb[0].mxu0
      %v1619 = vadd.f32 %v1305, %v1618
      %v1620 = vpop.f32.mrb[0].mxu0
      %1621 = vmatprep.mubr.f32.mxu0 0.0
      %v1622 = vand.u32 %v394, 4294901760
      %v1623 = vsub.f32 %v394, %v1622
      %v1624 = vand.u32 %v1623, 4294901760
      %1625 = vmatmul.mubr.f32.gmra.mrb[0].mxu0 %v1624
      %v1626 = vpop.f32.mrb[0].mxu0
      %v1627 = vadd.f32 %v1312, %v1626
      %v1628 = vpop.f32.mrb[0].mxu0
      %1629 = vmatprep.mubr.f32.mxu0 0.0
      %v1630 = vand.u32 %v397, 4294901760
      %v1631 = vsub.f32 %v397, %v1630
      %v1632 = vand.u32 %v1631, 4294901760
      %1633 = vmatmul.mubr.f32.gmra.mrb[0].mxu0 %v1632
      %v1634 = vpop.f32.mrb[0].mxu0
      %v1635 = vadd.f32 %v1319, %v1634
      %v1636 = vpop.f32.mrb[0].mxu0
      %1637 = vmatprep.mubr.f32.mxu0 0.0
      %v1638 = vand.u32 %v400, 4294901760
      %v1639 = vsub.f32 %v400, %v1638
      %v1640 = vand.u32 %v1639, 4294901760
      %1641 = vmatmul.mubr.f32.gmra.mrb[0].mxu0 %v1640
      %v1642 = vpop.f32.mrb[0].mxu0
      %v1643 = vadd.f32 %v1326, %v1642
      %v1644 = vpop.f32.mrb[0].mxu0
      %1645 = vmatprep.mubr.f32.mxu0 0.0
      %v1646 = vand.u32 %v403, 4294901760
      %v1647 = vsub.f32 %v403, %v1646
      %v1648 = vand.u32 %v1647, 4294901760
      %1649 = vmatmul.mubr.f32.gmra.mrb[0].mxu0 %v1648
      %v1650 = vpop.f32.mrb[0].mxu0
      %v1651 = vadd.f32 %v1333, %v1650
      %v1652 = vpop.f32.mrb[0].mxu0
      %1653 = vmatprep.mubr.f32.mxu0 0.0
      %v1654 = vand.u32 %v406, 4294901760
      %v1655 = vsub.f32 %v406, %v1654
      %v1656 = vand.u32 %v1655, 4294901760
      %1657 = vmatmul.mubr.f32.gmra.mrb[0].mxu0 %v1656
      %v1658 = vpop.f32.mrb[0].mxu0
      %v1659 = vadd.f32 %v1340, %v1658
      %v1660 = vpop.f32.mrb[0].mxu0
      %1661 = vmatprep.mubr.f32.mxu0 0.0
      %v1662 = vand.u32 %v409, 4294901760
      %v1663 = vsub.f32 %v409, %v1662
      %v1664 = vand.u32 %v1663, 4294901760
      %1665 = vmatmul.mubr.f32.gmra.mrb[0].mxu0 %v1664
      %v1666 = vpop.f32.mrb[0].mxu0
      %v1667 = vadd.f32 %v1347, %v1666
      %v1668 = vpop.f32.mrb[0].mxu0
      %1669 = vmatprep.mubr.f32.mxu0 0.0
      %v1670 = vand.u32 %v412, 4294901760
      %v1671 = vsub.f32 %v412, %v1670
      %v1672 = vand.u32 %v1671, 4294901760
      %1673 = vmatmul.mubr.f32.gmra.mrb[0].mxu0 %v1672
      %v1674 = vpop.f32.mrb[0].mxu0
      %v1675 = vadd.f32 %v1354, %v1674
      %v1676 = vpop.f32.mrb[0].mxu0
      %1677 = vmatprep.mubr.f32.mxu0 0.0
      %v1678 = vand.u32 %v415, 4294901760
      %v1679 = vsub.f32 %v415, %v1678
      %v1680 = vand.u32 %v1679, 4294901760
      %1681 = vmatmul.mubr.f32.gmra.mrb[0].mxu0 %v1680
      %v1682 = vpop.f32.mrb[0].mxu0
      %v1683 = vadd.f32 %v1361, %v1682
      %v1684 = vpop.f32.mrb[0].mxu0
      %1685 = vmatprep.mubr.f32.mxu0 0.0
      %v1686 = vand.u32 %v418, 4294901760
      %v1687 = vsub.f32 %v418, %v1686
      %v1688 = vand.u32 %v1687, 4294901760
      %1689 = vmatmul.mubr.f32.gmra.mrb[0].mxu0 %v1688
      %v1690 = vpop.f32.mrb[0].mxu0
      %v1691 = vadd.f32 %v1368, %v1690
      %v1692 = vpop.f32.mrb[0].mxu0
      %1693 = vmatprep.mubr.f32.mxu0 0.0
      %v1694 = vand.u32 %v421, 4294901760
      %v1695 = vsub.f32 %v421, %v1694
      %v1696 = vand.u32 %v1695, 4294901760
      %1697 = vmatmul.mubr.f32.gmra.mrb[0].mxu0 %v1696
      %v1698 = vpop.f32.mrb[0].mxu0
      %v1699 = vadd.f32 %v1375, %v1698
      %v1700 = vpop.f32.mrb[0].mxu0
      %1701 = vdwg.mxu0
      %1702 = vmatprep.subr.mxu0 0.0
      %v1703 = vand.u32 %v323, 4294901760
      %v1704 = vsub.f32 %v323, %v1703
      %v1705 = vand.u32 %v1704, 4294901760
      %1706 = vmatpush1.msra.mxu0 %v1705
      %1707 = vmatprep.subr.mxu0 0.0
      %v1708 = vand.u32 %v324, 4294901760
      %v1709 = vsub.f32 %v324, %v1708
      %v1710 = vand.u32 %v1709, 4294901760
      %1711 = vmatpush1.msra.mxu0 %v1710
      %1712 = vmatprep.subr.mxu0 0.0
      %v1713 = vand.u32 %v325, 4294901760
      %v1714 = vsub.f32 %v325, %v1713
      %v1715 = vand.u32 %v1714, 4294901760
      %1716 = vmatpush1.msra.mxu0 %v1715
      %1717 = vmatprep.subr.mxu0 0.0
      %1718 = vmatpush1.msra.mxu0 0.0
      %1719 = vmatprep.subr.mxu0 0.0
      %1720 = vmatpush1.msra.mxu0 0.0
      %1721 = vmatprep.subr.mxu0 0.0
      %1722 = vmatpush1.msra.mxu0 0.0
      %1723 = vmatprep.subr.mxu0 0.0
      %1724 = vmatpush1.msra.mxu0 0.0
      %1725 = vmatprep.subr.mxu0 0.0
      %1726 = vmatpush1.msra.mxu0 0.0
      %1727 = vmatprep.subr.mxu0 0.0
      %1728 = vmatpush1.msra.mxu0 0.0
      %1729 = vmatprep.subr.mxu0 0.0
      %1730 = vmatpush1.msra.mxu0 0.0
      %1731 = vmatprep.subr.mxu0 0.0
      %1732 = vmatpush1.msra.mxu0 0.0
      %1733 = vmatprep.subr.mxu0 0.0
      %1734 = vmatpush1.msra.mxu0 0.0
      %1735 = vmatprep.subr.mxu0 0.0
      %1736 = vmatpush1.msra.mxu0 0.0
      %1737 = vmatprep.subr.mxu0 0.0
      %1738 = vmatpush1.msra.mxu0 0.0
      %1739 = vmatprep.subr.mxu0 0.0
      %1740 = vmatpush1.msra.mxu0 0.0
      %1741 = vmatprep.subr.mxu0 0.0
      %1742 = vmatpush1.msra.mxu0 0.0
      %1743 = vmatprep.subr.mxu0 0.0
      %1744 = vmatpush1.msra.mxu0 0.0
      %1745 = vmatprep.subr.mxu0 0.0
      %1746 = vmatpush1.msra.mxu0 0.0
      %1747 = vmatprep.subr.mxu0 0.0
      %1748 = vmatpush1.msra.mxu0 0.0
      %1749 = vmatprep.subr.mxu0 0.0
      %1750 = vmatpush1.msra.mxu0 0.0
      %1751 = vmatprep.subr.mxu0 0.0
      %1752 = vmatpush1.msra.mxu0 0.0
      %1753 = vmatprep.subr.mxu0 0.0
      %1754 = vmatpush1.msra.mxu0 0.0
      %1755 = vmatprep.subr.mxu0 0.0
      %1756 = vmatpush1.msra.mxu0 0.0
      %1757 = vmatprep.subr.mxu0 0.0
      %1758 = vmatpush1.msra.mxu0 0.0
      %1759 = vmatprep.subr.mxu0 0.0
      %1760 = vmatpush1.msra.mxu0 0.0
      %1761 = vmatprep.subr.mxu0 0.0
      %1762 = vmatpush1.msra.mxu0 0.0
      %1763 = vmatprep.subr.mxu0 0.0
      %1764 = vmatpush1.msra.mxu0 0.0
      %1765 = vmatprep.subr.mxu0 0.0
      %1766 = vmatpush1.msra.mxu0 0.0
      %1767 = vmatprep.subr.mxu0 0.0
      %1768 = vmatpush1.msra.mxu0 0.0
      %1769 = vmatprep.subr.mxu0 0.0
      %1770 = vmatpush1.msra.mxu0 0.0
      %1771 = vmatprep.subr.mxu0 0.0
      %1772 = vmatpush1.msra.mxu0 0.0
      %1773 = vmatprep.subr.mxu0 0.0
      %1774 = vmatpush1.msra.mxu0 0.0
      %1775 = vmatprep.mubr.f32.mxu0 0.0
      %v1776 = vand.u32 %v328, 4294901760
      %1777 = vmatmul.mubr.f32.gmra.mrb[0].mxu0 %v1776
      %v1778 = vpop.f32.mrb[0].mxu0
      %v1779 = vadd.f32 %v1451, %v1778
      %v1780 = vpop.f32.mrb[0].mxu0
      %1781 = vmatprep.mubr.f32.mxu0 0.0
      %v1782 = vand.u32 %v331, 4294901760
      %1783 = vmatmul.mubr.f32.gmra.mrb[0].mxu0 %v1782
      %v1784 = vpop.f32.mrb[0].mxu0
      %v1785 = vadd.f32 %v1459, %v1784
      %v1786 = vpop.f32.mrb[0].mxu0
      %1787 = vmatprep.mubr.f32.mxu0 0.0
      %v1788 = vand.u32 %v334, 4294901760
      %1789 = vmatmul.mubr.f32.gmra.mrb[0].mxu0 %v1788
      %v1790 = vpop.f32.mrb[0].mxu0
      %v1791 = vadd.f32 %v1467, %v1790
      %v1792 = vpop.f32.mrb[0].mxu0
      %1793 = vmatprep.mubr.f32.mxu0 0.0
      %v1794 = vand.u32 %v337, 4294901760
      %1795 = vmatmul.mubr.f32.gmra.mrb[0].mxu0 %v1794
      %v1796 = vpop.f32.mrb[0].mxu0
      %v1797 = vadd.f32 %v1475, %v1796
      %v1798 = vpop.f32.mrb[0].mxu0
      %1799 = vmatprep.mubr.f32.mxu0 0.0
      %v1800 = vand.u32 %v340, 4294901760
      %1801 = vmatmul.mubr.f32.gmra.mrb[0].mxu0 %v1800
      %v1802 = vpop.f32.mrb[0].mxu0
      %v1803 = vadd.f32 %v1483, %v1802
      %v1804 = vpop.f32.mrb[0].mxu0
      %1805 = vmatprep.mubr.f32.mxu0 0.0
      %v1806 = vand.u32 %v343, 4294901760
      %1807 = vmatmul.mubr.f32.gmra.mrb[0].mxu0 %v1806
      %v1808 = vpop.f32.mrb[0].mxu0
      %v1809 = vadd.f32 %v1491, %v1808
      %v1810 = vpop.f32.mrb[0].mxu0
      %1811 = vmatprep.mubr.f32.mxu0 0.0
      %v1812 = vand.u32 %v346, 4294901760
      %1813 = vmatmul.mubr.f32.gmra.mrb[0].mxu0 %v1812
      %v1814 = vpop.f32.mrb[0].mxu0
      %v1815 = vadd.f32 %v1499, %v1814
      %v1816 = vpop.f32.mrb[0].mxu0
      %1817 = vmatprep.mubr.f32.mxu0 0.0
      %v1818 = vand.u32 %v349, 4294901760
      %1819 = vmatmul.mubr.f32.gmra.mrb[0].mxu0 %v1818
      %v1820 = vpop.f32.mrb[0].mxu0
      %v1821 = vadd.f32 %v1507, %v1820
      %v1822 = vpop.f32.mrb[0].mxu0
      %1823 = vmatprep.mubr.f32.mxu0 0.0
      %v1824 = vand.u32 %v352, 4294901760
      %1825 = vmatmul.mubr.f32.gmra.mrb[0].mxu0 %v1824
      %v1826 = vpop.f32.mrb[0].mxu0
      %v1827 = vadd.f32 %v1515, %v1826
      %v1828 = vpop.f32.mrb[0].mxu0
      %1829 = vmatprep.mubr.f32.mxu0 0.0
      %v1830 = vand.u32 %v355, 4294901760
      %1831 = vmatmul.mubr.f32.gmra.mrb[0].mxu0 %v1830
      %v1832 = vpop.f32.mrb[0].mxu0
      %v1833 = vadd.f32 %v1523, %v1832
      %v1834 = vpop.f32.mrb[0].mxu0
      %1835 = vmatprep.mubr.f32.mxu0 0.0
      %v1836 = vand.u32 %v358, 4294901760
      %1837 = vmatmul.mubr.f32.gmra.mrb[0].mxu0 %v1836
      %v1838 = vpop.f32.mrb[0].mxu0
      %v1839 = vadd.f32 %v1531, %v1838
      %v1840 = vpop.f32.mrb[0].mxu0
      %1841 = vmatprep.mubr.f32.mxu0 0.0
      %v1842 = vand.u32 %v361, 4294901760
      %1843 = vmatmul.mubr.f32.gmra.mrb[0].mxu0 %v1842
      %v1844 = vpop.f32.mrb[0].mxu0
      %v1845 = vadd.f32 %v1539, %v1844
      %v1846 = vpop.f32.mrb[0].mxu0
      %1847 = vmatprep.mubr.f32.mxu0 0.0
      %v1848 = vand.u32 %v364, 4294901760
      %1849 = vmatmul.mubr.f32.gmra.mrb[0].mxu0 %v1848
      %v1850 = vpop.f32.mrb[0].mxu0
      %v1851 = vadd.f32 %v1547, %v1850
      %v1852 = vpop.f32.mrb[0].mxu0
      %1853 = vmatprep.mubr.f32.mxu0 0.0
      %v1854 = vand.u32 %v367, 4294901760
      %1855 = vmatmul.mubr.f32.gmra.mrb[0].mxu0 %v1854
      %v1856 = vpop.f32.mrb[0].mxu0
      %v1857 = vadd.f32 %v1555, %v1856
      %v1858 = vpop.f32.mrb[0].mxu0
      %1859 = vmatprep.mubr.f32.mxu0 0.0
      %v1860 = vand.u32 %v370, 4294901760
      %1861 = vmatmul.mubr.f32.gmra.mrb[0].mxu0 %v1860
      %v1862 = vpop.f32.mrb[0].mxu0
      %v1863 = vadd.f32 %v1563, %v1862
      %v1864 = vpop.f32.mrb[0].mxu0
      %1865 = vmatprep.mubr.f32.mxu0 0.0
      %v1866 = vand.u32 %v373, 4294901760
      %1867 = vmatmul.mubr.f32.gmra.mrb[0].mxu0 %v1866
      %v1868 = vpop.f32.mrb[0].mxu0
      %v1869 = vadd.f32 %v1571, %v1868
      %v1870 = vpop.f32.mrb[0].mxu0
      %1871 = vmatprep.mubr.f32.mxu0 0.0
      %v1872 = vand.u32 %v376, 4294901760
      %1873 = vmatmul.mubr.f32.gmra.mrb[0].mxu0 %v1872
      %v1874 = vpop.f32.mrb[0].mxu0
      %v1875 = vadd.f32 %v1579, %v1874
      %v1876 = vpop.f32.mrb[0].mxu0
      %1877 = vmatprep.mubr.f32.mxu0 0.0
      %v1878 = vand.u32 %v379, 4294901760
      %1879 = vmatmul.mubr.f32.gmra.mrb[0].mxu0 %v1878
      %v1880 = vpop.f32.mrb[0].mxu0
      %v1881 = vadd.f32 %v1587, %v1880
      %v1882 = vpop.f32.mrb[0].mxu0
      %1883 = vmatprep.mubr.f32.mxu0 0.0
      %v1884 = vand.u32 %v382, 4294901760
      %1885 = vmatmul.mubr.f32.gmra.mrb[0].mxu0 %v1884
      %v1886 = vpop.f32.mrb[0].mxu0
      %v1887 = vadd.f32 %v1595, %v1886
      %v1888 = vpop.f32.mrb[0].mxu0
      %1889 = vmatprep.mubr.f32.mxu0 0.0
      %v1890 = vand.u32 %v385, 4294901760
      %1891 = vmatmul.mubr.f32.gmra.mrb[0].mxu0 %v1890
      %v1892 = vpop.f32.mrb[0].mxu0
      %v1893 = vadd.f32 %v1603, %v1892
      %v1894 = vpop.f32.mrb[0].mxu0
      %1895 = vmatprep.mubr.f32.mxu0 0.0
      %v1896 = vand.u32 %v388, 4294901760
      %1897 = vmatmul.mubr.f32.gmra.mrb[0].mxu0 %v1896
      %v1898 = vpop.f32.mrb[0].mxu0
      %v1899 = vadd.f32 %v1611, %v1898
      %v1900 = vpop.f32.mrb[0].mxu0
      %1901 = vmatprep.mubr.f32.mxu0 0.0
      %v1902 = vand.u32 %v391, 4294901760
      %1903 = vmatmul.mubr.f32.gmra.mrb[0].mxu0 %v1902
      %v1904 = vpop.f32.mrb[0].mxu0
      %v1905 = vadd.f32 %v1619, %v1904
      %v1906 = vpop.f32.mrb[0].mxu0
      %1907 = vmatprep.mubr.f32.mxu0 0.0
      %v1908 = vand.u32 %v394, 4294901760
      %1909 = vmatmul.mubr.f32.gmra.mrb[0].mxu0 %v1908
      %v1910 = vpop.f32.mrb[0].mxu0
      %v1911 = vadd.f32 %v1627, %v1910
      %v1912 = vpop.f32.mrb[0].mxu0
      %1913 = vmatprep.mubr.f32.mxu0 0.0
      %v1914 = vand.u32 %v397, 4294901760
      %1915 = vmatmul.mubr.f32.gmra.mrb[0].mxu0 %v1914
      %v1916 = vpop.f32.mrb[0].mxu0
      %v1917 = vadd.f32 %v1635, %v1916
      %v1918 = vpop.f32.mrb[0].mxu0
      %1919 = vmatprep.mubr.f32.mxu0 0.0
      %v1920 = vand.u32 %v400, 4294901760
      %1921 = vmatmul.mubr.f32.gmra.mrb[0].mxu0 %v1920
      %v1922 = vpop.f32.mrb[0].mxu0
      %v1923 = vadd.f32 %v1643, %v1922
      %v1924 = vpop.f32.mrb[0].mxu0
      %1925 = vmatprep.mubr.f32.mxu0 0.0
      %v1926 = vand.u32 %v403, 4294901760
      %1927 = vmatmul.mubr.f32.gmra.mrb[0].mxu0 %v1926
      %v1928 = vpop.f32.mrb[0].mxu0
      %v1929 = vadd.f32 %v1651, %v1928
      %v1930 = vpop.f32.mrb[0].mxu0
      %1931 = vmatprep.mubr.f32.mxu0 0.0
      %v1932 = vand.u32 %v406, 4294901760
      %1933 = vmatmul.mubr.f32.gmra.mrb[0].mxu0 %v1932
      %v1934 = vpop.f32.mrb[0].mxu0
      %v1935 = vadd.f32 %v1659, %v1934
      %v1936 = vpop.f32.mrb[0].mxu0
      %1937 = vmatprep.mubr.f32.mxu0 0.0
      %v1938 = vand.u32 %v409, 4294901760
      %1939 = vmatmul.mubr.f32.gmra.mrb[0].mxu0 %v1938
      %v1940 = vpop.f32.mrb[0].mxu0
      %v1941 = vadd.f32 %v1667, %v1940
      %v1942 = vpop.f32.mrb[0].mxu0
      %1943 = vmatprep.mubr.f32.mxu0 0.0
      %v1944 = vand.u32 %v412, 4294901760
      %1945 = vmatmul.mubr.f32.gmra.mrb[0].mxu0 %v1944
      %v1946 = vpop.f32.mrb[0].mxu0
      %v1947 = vadd.f32 %v1675, %v1946
      %v1948 = vpop.f32.mrb[0].mxu0
      %1949 = vmatprep.mubr.f32.mxu0 0.0
      %v1950 = vand.u32 %v415, 4294901760
      %1951 = vmatmul.mubr.f32.gmra.mrb[0].mxu0 %v1950
      %v1952 = vpop.f32.mrb[0].mxu0
      %v1953 = vadd.f32 %v1683, %v1952
      %v1954 = vpop.f32.mrb[0].mxu0
      %1955 = vmatprep.mubr.f32.mxu0 0.0
      %v1956 = vand.u32 %v418, 4294901760
      %1957 = vmatmul.mubr.f32.gmra.mrb[0].mxu0 %v1956
      %v1958 = vpop.f32.mrb[0].mxu0
      %v1959 = vadd.f32 %v1691, %v1958
      %v1960 = vpop.f32.mrb[0].mxu0
      %1961 = vmatprep.mubr.f32.mxu0 0.0
      %v1962 = vand.u32 %v421, 4294901760
      %1963 = vmatmul.mubr.f32.gmra.mrb[0].mxu0 %v1962
      %v1964 = vpop.f32.mrb[0].mxu0
      %v1965 = vadd.f32 %v1699, %v1964
      %v1966 = vpop.f32.mrb[0].mxu0
      %1967 = vdwg.mxu0
      %1968 = vmatprep.subr.mxu0 0.0
      %v1969 = vand.u32 %v323, 4294901760
      %1970 = vmatpush1.msra.mxu0 %v1969
      %1971 = vmatprep.subr.mxu0 0.0
      %v1972 = vand.u32 %v324, 4294901760
      %1973 = vmatpush1.msra.mxu0 %v1972
      %1974 = vmatprep.subr.mxu0 0.0
      %v1975 = vand.u32 %v325, 4294901760
      %1976 = vmatpush1.msra.mxu0 %v1975
      %1977 = vmatprep.subr.mxu0 0.0
      %1978 = vmatpush1.msra.mxu0 0.0
      %1979 = vmatprep.subr.mxu0 0.0
      %1980 = vmatpush1.msra.mxu0 0.0
      %1981 = vmatprep.subr.mxu0 0.0
      %1982 = vmatpush1.msra.mxu0 0.0
      %1983 = vmatprep.subr.mxu0 0.0
      %1984 = vmatpush1.msra.mxu0 0.0
      %1985 = vmatprep.subr.mxu0 0.0
      %1986 = vmatpush1.msra.mxu0 0.0
      %1987 = vmatprep.subr.mxu0 0.0
      %1988 = vmatpush1.msra.mxu0 0.0
      %1989 = vmatprep.subr.mxu0 0.0
      %1990 = vmatpush1.msra.mxu0 0.0
      %1991 = vmatprep.subr.mxu0 0.0
      %1992 = vmatpush1.msra.mxu0 0.0
      %1993 = vmatprep.subr.mxu0 0.0
      %1994 = vmatpush1.msra.mxu0 0.0
      %1995 = vmatprep.subr.mxu0 0.0
      %1996 = vmatpush1.msra.mxu0 0.0
      %1997 = vmatprep.subr.mxu0 0.0
      %1998 = vmatpush1.msra.mxu0 0.0
      %1999 = vmatprep.subr.mxu0 0.0
      %2000 = vmatpush1.msra.mxu0 0.0
      %2001 = vmatprep.subr.mxu0 0.0
      %2002 = vmatpush1.msra.mxu0 0.0
      %2003 = vmatprep.subr.mxu0 0.0
      %2004 = vmatpush1.msra.mxu0 0.0
      %2005 = vmatprep.subr.mxu0 0.0
      %2006 = vmatpush1.msra.mxu0 0.0
      %2007 = vmatprep.subr.mxu0 0.0
      %2008 = vmatpush1.msra.mxu0 0.0
      %2009 = vmatprep.subr.mxu0 0.0
      %2010 = vmatpush1.msra.mxu0 0.0
      %2011 = vmatprep.subr.mxu0 0.0
      %2012 = vmatpush1.msra.mxu0 0.0
      %2013 = vmatprep.subr.mxu0 0.0
      %2014 = vmatpush1.msra.mxu0 0.0
      %2015 = vmatprep.subr.mxu0 0.0
      %2016 = vmatpush1.msra.mxu0 0.0
      %2017 = vmatprep.subr.mxu0 0.0
      %2018 = vmatpush1.msra.mxu0 0.0
      %2019 = vmatprep.subr.mxu0 0.0
      %2020 = vmatpush1.msra.mxu0 0.0
      %2021 = vmatprep.subr.mxu0 0.0
      %2022 = vmatpush1.msra.mxu0 0.0
      %2023 = vmatprep.subr.mxu0 0.0
      %2024 = vmatpush1.msra.mxu0 0.0
      %2025 = vmatprep.subr.mxu0 0.0
      %2026 = vmatpush1.msra.mxu0 0.0
      %2027 = vmatprep.subr.mxu0 0.0
      %2028 = vmatpush1.msra.mxu0 0.0
      %2029 = vmatprep.subr.mxu0 0.0
      %2030 = vmatpush1.msra.mxu0 0.0
      %2031 = vmatprep.subr.mxu0 0.0
      %2032 = vmatpush1.msra.mxu0 0.0
      %2033 = vmatprep.subr.mxu0 0.0
      %2034 = vmatpush1.msra.mxu0 0.0
      %2035 = vmatprep.mubr.f32.mxu0 0.0
      %v2036 = vand.u32 %v328, 4294901760
      %2037 = vmatmul.mubr.f32.gmra.mrb[0].mxu0 %v2036
      %v2038 = vpop.f32.mrb[0].mxu0
      %v2039 = vadd.f32 %v1779, %v2038
      %v2040 = vpop.f32.mrb[0].mxu0
      %2041 = vmatprep.mubr.f32.mxu0 0.0
      %v2042 = vand.u32 %v331, 4294901760
      %2043 = vmatmul.mubr.f32.gmra.mrb[0].mxu0 %v2042
      %v2044 = vpop.f32.mrb[0].mxu0
      %v2045 = vadd.f32 %v1785, %v2044
      %v2046 = vpop.f32.mrb[0].mxu0
      %2047 = vmatprep.mubr.f32.mxu0 0.0
      %v2048 = vand.u32 %v334, 4294901760
      %2049 = vmatmul.mubr.f32.gmra.mrb[0].mxu0 %v2048
      %v2050 = vpop.f32.mrb[0].mxu0
      %v2051 = vadd.f32 %v1791, %v2050
      %v2052 = vpop.f32.mrb[0].mxu0
      %2053 = vmatprep.mubr.f32.mxu0 0.0
      %v2054 = vand.u32 %v337, 4294901760
      %2055 = vmatmul.mubr.f32.gmra.mrb[0].mxu0 %v2054
      %v2056 = vpop.f32.mrb[0].mxu0
      %v2057 = vadd.f32 %v1797, %v2056
      %v2058 = vpop.f32.mrb[0].mxu0
      %2059 = vmatprep.mubr.f32.mxu0 0.0
      %v2060 = vand.u32 %v340, 4294901760
      %2061 = vmatmul.mubr.f32.gmra.mrb[0].mxu0 %v2060
      %v2062 = vpop.f32.mrb[0].mxu0
      %v2063 = vadd.f32 %v1803, %v2062
      %v2064 = vpop.f32.mrb[0].mxu0
      %2065 = vmatprep.mubr.f32.mxu0 0.0
      %v2066 = vand.u32 %v343, 4294901760
      %2067 = vmatmul.mubr.f32.gmra.mrb[0].mxu0 %v2066
      %v2068 = vpop.f32.mrb[0].mxu0
      %v2069 = vadd.f32 %v1809, %v2068
      %v2070 = vpop.f32.mrb[0].mxu0
      %2071 = vmatprep.mubr.f32.mxu0 0.0
      %v2072 = vand.u32 %v346, 4294901760
      %2073 = vmatmul.mubr.f32.gmra.mrb[0].mxu0 %v2072
      %v2074 = vpop.f32.mrb[0].mxu0
      %v2075 = vadd.f32 %v1815, %v2074
      %v2076 = vpop.f32.mrb[0].mxu0
      %2077 = vmatprep.mubr.f32.mxu0 0.0
      %v2078 = vand.u32 %v349, 4294901760
      %2079 = vmatmul.mubr.f32.gmra.mrb[0].mxu0 %v2078
      %v2080 = vpop.f32.mrb[0].mxu0
      %v2081 = vadd.f32 %v1821, %v2080
      %v2082 = vpop.f32.mrb[0].mxu0
      %2083 = vmatprep.mubr.f32.mxu0 0.0
      %v2084 = vand.u32 %v352, 4294901760
      %2085 = vmatmul.mubr.f32.gmra.mrb[0].mxu0 %v2084
      %v2086 = vpop.f32.mrb[0].mxu0
      %v2087 = vadd.f32 %v1827, %v2086
      %v2088 = vpop.f32.mrb[0].mxu0
      %2089 = vmatprep.mubr.f32.mxu0 0.0
      %v2090 = vand.u32 %v355, 4294901760
      %2091 = vmatmul.mubr.f32.gmra.mrb[0].mxu0 %v2090
      %v2092 = vpop.f32.mrb[0].mxu0
      %v2093 = vadd.f32 %v1833, %v2092
      %v2094 = vpop.f32.mrb[0].mxu0
      %2095 = vmatprep.mubr.f32.mxu0 0.0
      %v2096 = vand.u32 %v358, 4294901760
      %2097 = vmatmul.mubr.f32.gmra.mrb[0].mxu0 %v2096
      %v2098 = vpop.f32.mrb[0].mxu0
      %v2099 = vadd.f32 %v1839, %v2098
      %v2100 = vpop.f32.mrb[0].mxu0
      %2101 = vmatprep.mubr.f32.mxu0 0.0
      %v2102 = vand.u32 %v361, 4294901760
      %2103 = vmatmul.mubr.f32.gmra.mrb[0].mxu0 %v2102
      %v2104 = vpop.f32.mrb[0].mxu0
      %v2105 = vadd.f32 %v1845, %v2104
      %v2106 = vpop.f32.mrb[0].mxu0
      %2107 = vmatprep.mubr.f32.mxu0 0.0
      %v2108 = vand.u32 %v364, 4294901760
      %2109 = vmatmul.mubr.f32.gmra.mrb[0].mxu0 %v2108
      %v2110 = vpop.f32.mrb[0].mxu0
      %v2111 = vadd.f32 %v1851, %v2110
      %v2112 = vpop.f32.mrb[0].mxu0
      %2113 = vmatprep.mubr.f32.mxu0 0.0
      %v2114 = vand.u32 %v367, 4294901760
      %2115 = vmatmul.mubr.f32.gmra.mrb[0].mxu0 %v2114
      %v2116 = vpop.f32.mrb[0].mxu0
      %v2117 = vadd.f32 %v1857, %v2116
      %v2118 = vpop.f32.mrb[0].mxu0
      %2119 = vmatprep.mubr.f32.mxu0 0.0
      %v2120 = vand.u32 %v370, 4294901760
      %2121 = vmatmul.mubr.f32.gmra.mrb[0].mxu0 %v2120
      %v2122 = vpop.f32.mrb[0].mxu0
      %v2123 = vadd.f32 %v1863, %v2122
      %v2124 = vpop.f32.mrb[0].mxu0
      %2125 = vmatprep.mubr.f32.mxu0 0.0
      %v2126 = vand.u32 %v373, 4294901760
      %2127 = vmatmul.mubr.f32.gmra.mrb[0].mxu0 %v2126
      %v2128 = vpop.f32.mrb[0].mxu0
      %v2129 = vadd.f32 %v1869, %v2128
      %v2130 = vpop.f32.mrb[0].mxu0
      %2131 = vmatprep.mubr.f32.mxu0 0.0
      %v2132 = vand.u32 %v376, 4294901760
      %2133 = vmatmul.mubr.f32.gmra.mrb[0].mxu0 %v2132
      %v2134 = vpop.f32.mrb[0].mxu0
      %v2135 = vadd.f32 %v1875, %v2134
      %v2136 = vpop.f32.mrb[0].mxu0
      %2137 = vmatprep.mubr.f32.mxu0 0.0
      %v2138 = vand.u32 %v379, 4294901760
      %2139 = vmatmul.mubr.f32.gmra.mrb[0].mxu0 %v2138
      %v2140 = vpop.f32.mrb[0].mxu0
      %v2141 = vadd.f32 %v1881, %v2140
      %v2142 = vpop.f32.mrb[0].mxu0
      %2143 = vmatprep.mubr.f32.mxu0 0.0
      %v2144 = vand.u32 %v382, 4294901760
      %2145 = vmatmul.mubr.f32.gmra.mrb[0].mxu0 %v2144
      %v2146 = vpop.f32.mrb[0].mxu0
      %v2147 = vadd.f32 %v1887, %v2146
      %v2148 = vpop.f32.mrb[0].mxu0
      %2149 = vmatprep.mubr.f32.mxu0 0.0
      %v2150 = vand.u32 %v385, 4294901760
      %2151 = vmatmul.mubr.f32.gmra.mrb[0].mxu0 %v2150
      %v2152 = vpop.f32.mrb[0].mxu0
      %v2153 = vadd.f32 %v1893, %v2152
      %v2154 = vpop.f32.mrb[0].mxu0
      %2155 = vmatprep.mubr.f32.mxu0 0.0
      %v2156 = vand.u32 %v388, 4294901760
      %2157 = vmatmul.mubr.f32.gmra.mrb[0].mxu0 %v2156
      %v2158 = vpop.f32.mrb[0].mxu0
      %v2159 = vadd.f32 %v1899, %v2158
      %v2160 = vpop.f32.mrb[0].mxu0
      %2161 = vmatprep.mubr.f32.mxu0 0.0
      %v2162 = vand.u32 %v391, 4294901760
      %2163 = vmatmul.mubr.f32.gmra.mrb[0].mxu0 %v2162
      %v2164 = vpop.f32.mrb[0].mxu0
      %v2165 = vadd.f32 %v1905, %v2164
      %v2166 = vpop.f32.mrb[0].mxu0
      %2167 = vmatprep.mubr.f32.mxu0 0.0
      %v2168 = vand.u32 %v394, 4294901760
      %2169 = vmatmul.mubr.f32.gmra.mrb[0].mxu0 %v2168
      %v2170 = vpop.f32.mrb[0].mxu0
      %v2171 = vadd.f32 %v1911, %v2170
      %v2172 = vpop.f32.mrb[0].mxu0
      %2173 = vmatprep.mubr.f32.mxu0 0.0
      %v2174 = vand.u32 %v397, 4294901760
      %2175 = vmatmul.mubr.f32.gmra.mrb[0].mxu0 %v2174
      %v2176 = vpop.f32.mrb[0].mxu0
      %v2177 = vadd.f32 %v1917, %v2176
      %v2178 = vpop.f32.mrb[0].mxu0
      %2179 = vmatprep.mubr.f32.mxu0 0.0
      %v2180 = vand.u32 %v400, 4294901760
      %2181 = vmatmul.mubr.f32.gmra.mrb[0].mxu0 %v2180
      %v2182 = vpop.f32.mrb[0].mxu0
      %v2183 = vadd.f32 %v1923, %v2182
      %v2184 = vpop.f32.mrb[0].mxu0
      %2185 = vmatprep.mubr.f32.mxu0 0.0
      %v2186 = vand.u32 %v403, 4294901760
      %2187 = vmatmul.mubr.f32.gmra.mrb[0].mxu0 %v2186
      %v2188 = vpop.f32.mrb[0].mxu0
      %v2189 = vadd.f32 %v1929, %v2188
      %v2190 = vpop.f32.mrb[0].mxu0
      %2191 = vmatprep.mubr.f32.mxu0 0.0
      %v2192 = vand.u32 %v406, 4294901760
      %2193 = vmatmul.mubr.f32.gmra.mrb[0].mxu0 %v2192
      %v2194 = vpop.f32.mrb[0].mxu0
      %v2195 = vadd.f32 %v1935, %v2194
      %v2196 = vpop.f32.mrb[0].mxu0
      %2197 = vmatprep.mubr.f32.mxu0 0.0
      %v2198 = vand.u32 %v409, 4294901760
      %2199 = vmatmul.mubr.f32.gmra.mrb[0].mxu0 %v2198
      %v2200 = vpop.f32.mrb[0].mxu0
      %v2201 = vadd.f32 %v1941, %v2200
      %v2202 = vpop.f32.mrb[0].mxu0
      %2203 = vmatprep.mubr.f32.mxu0 0.0
      %v2204 = vand.u32 %v412, 4294901760
      %2205 = vmatmul.mubr.f32.gmra.mrb[0].mxu0 %v2204
      %v2206 = vpop.f32.mrb[0].mxu0
      %v2207 = vadd.f32 %v1947, %v2206
      %v2208 = vpop.f32.mrb[0].mxu0
      %2209 = vmatprep.mubr.f32.mxu0 0.0
      %v2210 = vand.u32 %v415, 4294901760
      %2211 = vmatmul.mubr.f32.gmra.mrb[0].mxu0 %v2210
      %v2212 = vpop.f32.mrb[0].mxu0
      %v2213 = vadd.f32 %v1953, %v2212
      %v2214 = vpop.f32.mrb[0].mxu0
      %2215 = vmatprep.mubr.f32.mxu0 0.0
      %v2216 = vand.u32 %v418, 4294901760
      %2217 = vmatmul.mubr.f32.gmra.mrb[0].mxu0 %v2216
      %v2218 = vpop.f32.mrb[0].mxu0
      %v2219 = vadd.f32 %v1959, %v2218
      %v2220 = vpop.f32.mrb[0].mxu0
      %2221 = vmatprep.mubr.f32.mxu0 0.0
      %v2222 = vand.u32 %v421, 4294901760
      %2223 = vmatmul.mubr.f32.gmra.mrb[0].mxu0 %v2222
      %v2224 = vpop.f32.mrb[0].mxu0
      %v2225 = vadd.f32 %v1965, %v2224
      %v2226 = vpop.f32.mrb[0].mxu0
      %2227 = vdwg.mxu0
      %vm2228 = vcmask 146432
      %2229 = vst.msk [vmem:[%s283] sm:$0xff] %vm2228, %v2039
      %2230 = vst.msk [vmem:[%s283 + $0x8] sm:$0xff] %vm2228, %v2045
      %2231 = vst.msk [vmem:[%s283 + $0x10] sm:$0xff] %vm2228, %v2051
      %2232 = vst.msk [vmem:[%s283 + $0x18] sm:$0xff] %vm2228, %v2057
      %2233 = vst.msk [vmem:[%s283 + $0x20] sm:$0xff] %vm2228, %v2063
      %2234 = vst.msk [vmem:[%s283 + $0x28] sm:$0xff] %vm2228, %v2069
      %2235 = vst.msk [vmem:[%s283 + $0x30] sm:$0xff] %vm2228, %v2075
      %2236 = vst.msk [vmem:[%s283 + $0x38] sm:$0xff] %vm2228, %v2081
      %2237 = vst.msk [vmem:[%s283 + $0x40] sm:$0xff] %vm2228, %v2087
      %2238 = vst.msk [vmem:[%s283 + $0x48] sm:$0xff] %vm2228, %v2093
      %2239 = vst.msk [vmem:[%s283 + $0x50] sm:$0xff] %vm2228, %v2099
      %2240 = vst.msk [vmem:[%s283 + $0x58] sm:$0xff] %vm2228, %v2105
      %2241 = vst.msk [vmem:[%s283 + $0x60] sm:$0xff] %vm2228, %v2111
      %2242 = vst.msk [vmem:[%s283 + $0x68] sm:$0xff] %vm2228, %v2117
      %2243 = vst.msk [vmem:[%s283 + $0x70] sm:$0xff] %vm2228, %v2123
      %2244 = vst.msk [vmem:[%s283 + $0x78] sm:$0xff] %vm2228, %v2129
      %2245 = vst.msk [vmem:[%s283 + $0x80] sm:$0xff] %vm2228, %v2135
      %2246 = vst.msk [vmem:[%s283 + $0x88] sm:$0xff] %vm2228, %v2141
      %2247 = vst.msk [vmem:[%s283 + $0x90] sm:$0xff] %vm2228, %v2147
      %2248 = vst.msk [vmem:[%s283 + $0x98] sm:$0xff] %vm2228, %v2153
      %2249 = vst.msk [vmem:[%s283 + $0xa0] sm:$0xff] %vm2228, %v2159
      %2250 = vst.msk [vmem:[%s283 + $0xa8] sm:$0xff] %vm2228, %v2165
      %2251 = vst.msk [vmem:[%s283 + $0xb0] sm:$0xff] %vm2228, %v2171
      %2252 = vst.msk [vmem:[%s283 + $0xb8] sm:$0xff] %vm2228, %v2177
      %2253 = vst.msk [vmem:[%s283 + $0xc0] sm:$0xff] %vm2228, %v2183
      %2254 = vst.msk [vmem:[%s283 + $0xc8] sm:$0xff] %vm2228, %v2189
      %2255 = vst.msk [vmem:[%s283 + $0xd0] sm:$0xff] %vm2228, %v2195
      %2256 = vst.msk [vmem:[%s283 + $0xd8] sm:$0xff] %vm2228, %v2201
      %2257 = vst.msk [vmem:[%s283 + $0xe0] sm:$0xff] %vm2228, %v2207
      %2258 = vst.msk [vmem:[%s283 + $0xe8] sm:$0xff] %vm2228, %v2213
      %2259 = vst.msk [vmem:[%s283 + $0xf0] sm:$0xff] %vm2228, %v2219
      %2260 = vst.msk [vmem:[%s283 + $0xf8] sm:$0xff] %vm2228, %v2225
      %v2261 = vld [vmem:[%s277] sm:$0xff]
      %v2262 = vld [vmem:[%s277 + $0x8] sm:$0xff]
      %v2263 = vld [vmem:[%s277 + $0x10] sm:$0xff]
      %v2264 = vld [vmem:[%s277 + $0x18] sm:$0xff]
      %v2265 = vld [vmem:[%s277 + $0x20] sm:$0xff]
      %v2266 = vld [vmem:[%s277 + $0x28] sm:$0xff]
      %v2267 = vld [vmem:[%s277 + $0x30] sm:$0xff]
      %v2268 = vld [vmem:[%s277 + $0x38] sm:$0xff]
      %v2269 = vld [vmem:[%s277 + $0x40] sm:$0xff]
      %v2270 = vld [vmem:[%s277 + $0x48] sm:$0xff]
      %v2271 = vld [vmem:[%s277 + $0x50] sm:$0xff]
      %v2272 = vld [vmem:[%s277 + $0x58] sm:$0xff]
      %v2273 = vld [vmem:[%s277 + $0x60] sm:$0xff]
      %v2274 = vld [vmem:[%s277 + $0x68] sm:$0xff]
      %v2275 = vld [vmem:[%s277 + $0x70] sm:$0xff]
      %v2276 = vld [vmem:[%s277 + $0x78] sm:$0xff]
      %v2277 = vld [vmem:[%s277 + $0x80] sm:$0xff]
      %v2278 = vld [vmem:[%s277 + $0x88] sm:$0xff]
      %v2279 = vld [vmem:[%s277 + $0x90] sm:$0xff]
      %v2280 = vld [vmem:[%s277 + $0x98] sm:$0xff]
      %v2281 = vld [vmem:[%s277 + $0xa0] sm:$0xff]
      %v2282 = vld [vmem:[%s277 + $0xa8] sm:$0xff]
      %v2283 = vld [vmem:[%s277 + $0xb0] sm:$0xff]
      %v2284 = vld [vmem:[%s277 + $0xb8] sm:$0xff]
      %v2285 = vld [vmem:[%s277 + $0xc0] sm:$0xff]
      %v2286 = vld [vmem:[%s277 + $0xc8] sm:$0xff]
      %v2287 = vld [vmem:[%s277 + $0xd0] sm:$0xff]
      %v2288 = vld [vmem:[%s277 + $0xd8] sm:$0xff]
      %v2289 = vld [vmem:[%s277 + $0xe0] sm:$0xff]
      %v2290 = vld [vmem:[%s277 + $0xe8] sm:$0xff]
      %v2291 = vld [vmem:[%s277 + $0xf0] sm:$0xff]
      %v2292 = vld [vmem:[%s277 + $0xf8] sm:$0xff]
      %v2293 = vld [vmem:[%s1] sm:$0xff]
      %v2294 = vld [vmem:[%s1 + $0x8] sm:$0xff]
      %v2295 = vld [vmem:[%s1 + $0x10] sm:$0xff]
      %v2296 = vld [vmem:[%s1 + $0x18] sm:$0xff]
      %v2297 = vld [vmem:[%s1 + $0x20] sm:$0xff]
      %v2298 = vld [vmem:[%s1 + $0x28] sm:$0xff]
      %v2299 = vld [vmem:[%s2] sm:$0x1]
      %v2301 = vlaneseq
      %v2302 = vshrl.u32 %v2301, 7
      %v2303 = vsub.s32 0, %v2302
      %v2304 = vrot.slane %v2299, %v2303
      %vm2306 = vcmask 392192
      %v2308 = vsel %vm2306, %v2261, 0
      %v2311 = vsel %vm2306, %v2262, 0
      %v2314 = vsel %vm2306, %v2263, 0
      %v2317 = vsel %vm2306, %v2264, 0
      %v2320 = vsel %vm2306, %v2265, 0
      %v2323 = vsel %vm2306, %v2266, 0
      %v2326 = vsel %vm2306, %v2267, 0
      %v2329 = vsel %vm2306, %v2268, 0
      %v2332 = vsel %vm2306, %v2269, 0
      %v2335 = vsel %vm2306, %v2270, 0
      %v2338 = vsel %vm2306, %v2271, 0
      %v2341 = vsel %vm2306, %v2272, 0
      %v2344 = vsel %vm2306, %v2273, 0
      %v2347 = vsel %vm2306, %v2274, 0
      %v2350 = vsel %vm2306, %v2275, 0
      %v2353 = vsel %vm2306, %v2276, 0
      %v2356 = vsel %vm2306, %v2277, 0
      %v2359 = vsel %vm2306, %v2278, 0
      %v2362 = vsel %vm2306, %v2279, 0
      %v2365 = vsel %vm2306, %v2280, 0
      %v2368 = vsel %vm2306, %v2281, 0
      %v2371 = vsel %vm2306, %v2282, 0
      %v2374 = vsel %vm2306, %v2283, 0
      %v2377 = vsel %vm2306, %v2284, 0
      %v2380 = vsel %vm2306, %v2285, 0
      %v2383 = vsel %vm2306, %v2286, 0
      %v2386 = vsel %vm2306, %v2287, 0
      %v2389 = vsel %vm2306, %v2288, 0
      %v2392 = vsel %vm2306, %v2289, 0
      %v2395 = vsel %vm2306, %v2290, 0
      %v2398 = vsel %vm2306, %v2291, 0
      %v2401 = vsel %vm2306, %v2292, 0
      %2403 = vmatprep.subr.mxu0 0.0
      %v2404 = vand.u32 %v2293, 4294901760
      %2405 = vmatpush1.msra.mxu0 %v2404
      %2406 = vmatprep.subr.mxu0 0.0
      %v2407 = vand.u32 %v2294, 4294901760
      %2408 = vmatpush1.msra.mxu0 %v2407
      %2409 = vmatprep.subr.mxu0 0.0
      %v2410 = vand.u32 %v2295, 4294901760
      %2411 = vmatpush1.msra.mxu0 %v2410
      %2412 = vmatprep.subr.mxu0 0.0
      %v2413 = vand.u32 %v2296, 4294901760
      %2414 = vmatpush1.msra.mxu0 %v2413
      %2415 = vmatprep.subr.mxu0 0.0
      %v2416 = vand.u32 %v2297, 4294901760
      %2417 = vmatpush1.msra.mxu0 %v2416
      %2418 = vmatprep.subr.mxu0 0.0
      %v2419 = vand.u32 %v2298, 4294901760
      %2420 = vmatpush1.msra.mxu0 %v2419
      %2421 = vmatprep.subr.mxu0 0.0
      %2422 = vmatpush1.msra.mxu0 0.0
      %2423 = vmatprep.subr.mxu0 0.0
      %2424 = vmatpush1.msra.mxu0 0.0
      %2425 = vmatprep.subr.mxu0 0.0
      %2426 = vmatpush1.msra.mxu0 0.0
      %2427 = vmatprep.subr.mxu0 0.0
      %2428 = vmatpush1.msra.mxu0 0.0
      %2429 = vmatprep.subr.mxu0 0.0
      %2430 = vmatpush1.msra.mxu0 0.0
      %2431 = vmatprep.subr.mxu0 0.0
      %2432 = vmatpush1.msra.mxu0 0.0
      %2433 = vmatprep.subr.mxu0 0.0
      %2434 = vmatpush1.msra.mxu0 0.0
      %2435 = vmatprep.subr.mxu0 0.0
      %2436 = vmatpush1.msra.mxu0 0.0
      %2437 = vmatprep.subr.mxu0 0.0
      %2438 = vmatpush1.msra.mxu0 0.0
      %2439 = vmatprep.subr.mxu0 0.0
      %2440 = vmatpush1.msra.mxu0 0.0
      %2441 = vmatprep.subr.mxu0 0.0
      %2442 = vmatpush1.msra.mxu0 0.0
      %2443 = vmatprep.subr.mxu0 0.0
      %2444 = vmatpush1.msra.mxu0 0.0
      %2445 = vmatprep.subr.mxu0 0.0
      %2446 = vmatpush1.msra.mxu0 0.0
      %2447 = vmatprep.subr.mxu0 0.0
      %2448 = vmatpush1.msra.mxu0 0.0
      %2449 = vmatprep.subr.mxu0 0.0
      %2450 = vmatpush1.msra.mxu0 0.0
      %2451 = vmatprep.subr.mxu0 0.0
      %2452 = vmatpush1.msra.mxu0 0.0
      %2453 = vmatprep.subr.mxu0 0.0
      %2454 = vmatpush1.msra.mxu0 0.0
      %2455 = vmatprep.subr.mxu0 0.0
      %2456 = vmatpush1.msra.mxu0 0.0
      %2457 = vmatprep.subr.mxu0 0.0
      %2458 = vmatpush1.msra.mxu0 0.0
      %2459 = vmatprep.subr.mxu0 0.0
      %2460 = vmatpush1.msra.mxu0 0.0
      %2461 = vmatprep.subr.mxu0 0.0
      %2462 = vmatpush1.msra.mxu0 0.0
      %2463 = vmatprep.subr.mxu0 0.0
      %2464 = vmatpush1.msra.mxu0 0.0
      %2465 = vmatprep.subr.mxu0 0.0
      %2466 = vmatpush1.msra.mxu0 0.0
      %2467 = vmatprep.subr.mxu0 0.0
      %2468 = vmatpush1.msra.mxu0 0.0
      %2469 = vmatprep.subr.mxu0 0.0
      %2470 = vmatpush1.msra.mxu0 0.0
      %2471 = vmatprep.subr.mxu0 0.0
      %2472 = vmatpush1.msra.mxu0 0.0
      %2473 = vmatprep.mubr.f32.mxu0 0.0
      %v2474 = vand.u32 %v2308, 4294901760
      %v2475 = vsub.f32 %v2308, %v2474
      %v2476 = vand.u32 %v2475, 4294901760
      %v2477 = vsub.f32 %v2475, %v2476
      %v2478 = vand.u32 %v2477, 4294901760
      %2479 = vmatmul.mubr.f32.gmra.mrb[0].mxu0 %v2478
      %v2480 = vpop.f32.mrb[0].mxu0
      %v2481 = vadd.f32 %v2304, %v2480
      %v2482 = vpop.f32.mrb[0].mxu0
      %2483 = vmatprep.mubr.f32.mxu0 0.0
      %v2484 = vand.u32 %v2311, 4294901760
      %v2485 = vsub.f32 %v2311, %v2484
      %v2486 = vand.u32 %v2485, 4294901760
      %v2487 = vsub.f32 %v2485, %v2486
      %v2488 = vand.u32 %v2487, 4294901760
      %2489 = vmatmul.mubr.f32.gmra.mrb[0].mxu0 %v2488
      %v2490 = vpop.f32.mrb[0].mxu0
      %v2491 = vadd.f32 %v2304, %v2490
      %v2492 = vpop.f32.mrb[0].mxu0
      %2493 = vmatprep.mubr.f32.mxu0 0.0
      %v2494 = vand.u32 %v2314, 4294901760
      %v2495 = vsub.f32 %v2314, %v2494
      %v2496 = vand.u32 %v2495, 4294901760
      %v2497 = vsub.f32 %v2495, %v2496
      %v2498 = vand.u32 %v2497, 4294901760
      %2499 = vmatmul.mubr.f32.gmra.mrb[0].mxu0 %v2498
      %v2500 = vpop.f32.mrb[0].mxu0
      %v2501 = vadd.f32 %v2304, %v2500
      %v2502 = vpop.f32.mrb[0].mxu0
      %2503 = vmatprep.mubr.f32.mxu0 0.0
      %v2504 = vand.u32 %v2317, 4294901760
      %v2505 = vsub.f32 %v2317, %v2504
      %v2506 = vand.u32 %v2505, 4294901760
      %v2507 = vsub.f32 %v2505, %v2506
      %v2508 = vand.u32 %v2507, 4294901760
      %2509 = vmatmul.mubr.f32.gmra.mrb[0].mxu0 %v2508
      %v2510 = vpop.f32.mrb[0].mxu0
      %v2511 = vadd.f32 %v2304, %v2510
      %v2512 = vpop.f32.mrb[0].mxu0
      %2513 = vmatprep.mubr.f32.mxu0 0.0
      %v2514 = vand.u32 %v2320, 4294901760
      %v2515 = vsub.f32 %v2320, %v2514
      %v2516 = vand.u32 %v2515, 4294901760
      %v2517 = vsub.f32 %v2515, %v2516
      %v2518 = vand.u32 %v2517, 4294901760
      %2519 = vmatmul.mubr.f32.gmra.mrb[0].mxu0 %v2518
      %v2520 = vpop.f32.mrb[0].mxu0
      %v2521 = vadd.f32 %v2304, %v2520
      %v2522 = vpop.f32.mrb[0].mxu0
      %2523 = vmatprep.mubr.f32.mxu0 0.0
      %v2524 = vand.u32 %v2323, 4294901760
      %v2525 = vsub.f32 %v2323, %v2524
      %v2526 = vand.u32 %v2525, 4294901760
      %v2527 = vsub.f32 %v2525, %v2526
      %v2528 = vand.u32 %v2527, 4294901760
      %2529 = vmatmul.mubr.f32.gmra.mrb[0].mxu0 %v2528
      %v2530 = vpop.f32.mrb[0].mxu0
      %v2531 = vadd.f32 %v2304, %v2530
      %v2532 = vpop.f32.mrb[0].mxu0
      %2533 = vmatprep.mubr.f32.mxu0 0.0
      %v2534 = vand.u32 %v2326, 4294901760
      %v2535 = vsub.f32 %v2326, %v2534
      %v2536 = vand.u32 %v2535, 4294901760
      %v2537 = vsub.f32 %v2535, %v2536
      %v2538 = vand.u32 %v2537, 4294901760
      %2539 = vmatmul.mubr.f32.gmra.mrb[0].mxu0 %v2538
      %v2540 = vpop.f32.mrb[0].mxu0
      %v2541 = vadd.f32 %v2304, %v2540
      %v2542 = vpop.f32.mrb[0].mxu0
      %2543 = vmatprep.mubr.f32.mxu0 0.0
      %v2544 = vand.u32 %v2329, 4294901760
      %v2545 = vsub.f32 %v2329, %v2544
      %v2546 = vand.u32 %v2545, 4294901760
      %v2547 = vsub.f32 %v2545, %v2546
      %v2548 = vand.u32 %v2547, 4294901760
      %2549 = vmatmul.mubr.f32.gmra.mrb[0].mxu0 %v2548
      %v2550 = vpop.f32.mrb[0].mxu0
      %v2551 = vadd.f32 %v2304, %v2550
      %v2552 = vpop.f32.mrb[0].mxu0
      %2553 = vmatprep.mubr.f32.mxu0 0.0
      %v2554 = vand.u32 %v2332, 4294901760
      %v2555 = vsub.f32 %v2332, %v2554
      %v2556 = vand.u32 %v2555, 4294901760
      %v2557 = vsub.f32 %v2555, %v2556
      %v2558 = vand.u32 %v2557, 4294901760
      %2559 = vmatmul.mubr.f32.gmra.mrb[0].mxu0 %v2558
      %v2560 = vpop.f32.mrb[0].mxu0
      %v2561 = vadd.f32 %v2304, %v2560
      %v2562 = vpop.f32.mrb[0].mxu0
      %2563 = vmatprep.mubr.f32.mxu0 0.0
      %v2564 = vand.u32 %v2335, 4294901760
      %v2565 = vsub.f32 %v2335, %v2564
      %v2566 = vand.u32 %v2565, 4294901760
      %v2567 = vsub.f32 %v2565, %v2566
      %v2568 = vand.u32 %v2567, 4294901760
      %2569 = vmatmul.mubr.f32.gmra.mrb[0].mxu0 %v2568
      %v2570 = vpop.f32.mrb[0].mxu0
      %v2571 = vadd.f32 %v2304, %v2570
      %v2572 = vpop.f32.mrb[0].mxu0
      %2573 = vmatprep.mubr.f32.mxu0 0.0
      %v2574 = vand.u32 %v2338, 4294901760
      %v2575 = vsub.f32 %v2338, %v2574
      %v2576 = vand.u32 %v2575, 4294901760
      %v2577 = vsub.f32 %v2575, %v2576
      %v2578 = vand.u32 %v2577, 4294901760
      %2579 = vmatmul.mubr.f32.gmra.mrb[0].mxu0 %v2578
      %v2580 = vpop.f32.mrb[0].mxu0
      %v2581 = vadd.f32 %v2304, %v2580
      %v2582 = vpop.f32.mrb[0].mxu0
      %2583 = vmatprep.mubr.f32.mxu0 0.0
      %v2584 = vand.u32 %v2341, 4294901760
      %v2585 = vsub.f32 %v2341, %v2584
      %v2586 = vand.u32 %v2585, 4294901760
      %v2587 = vsub.f32 %v2585, %v2586
      %v2588 = vand.u32 %v2587, 4294901760
      %2589 = vmatmul.mubr.f32.gmra.mrb[0].mxu0 %v2588
      %v2590 = vpop.f32.mrb[0].mxu0
      %v2591 = vadd.f32 %v2304, %v2590
      %v2592 = vpop.f32.mrb[0].mxu0
      %2593 = vmatprep.mubr.f32.mxu0 0.0
      %v2594 = vand.u32 %v2344, 4294901760
      %v2595 = vsub.f32 %v2344, %v2594
      %v2596 = vand.u32 %v2595, 4294901760
      %v2597 = vsub.f32 %v2595, %v2596
      %v2598 = vand.u32 %v2597, 4294901760
      %2599 = vmatmul.mubr.f32.gmra.mrb[0].mxu0 %v2598
      %v2600 = vpop.f32.mrb[0].mxu0
      %v2601 = vadd.f32 %v2304, %v2600
      %v2602 = vpop.f32.mrb[0].mxu0
      %2603 = vmatprep.mubr.f32.mxu0 0.0
      %v2604 = vand.u32 %v2347, 4294901760
      %v2605 = vsub.f32 %v2347, %v2604
      %v2606 = vand.u32 %v2605, 4294901760
      %v2607 = vsub.f32 %v2605, %v2606
      %v2608 = vand.u32 %v2607, 4294901760
      %2609 = vmatmul.mubr.f32.gmra.mrb[0].mxu0 %v2608
      %v2610 = vpop.f32.mrb[0].mxu0
      %v2611 = vadd.f32 %v2304, %v2610
      %v2612 = vpop.f32.mrb[0].mxu0
      %2613 = vmatprep.mubr.f32.mxu0 0.0
      %v2614 = vand.u32 %v2350, 4294901760
      %v2615 = vsub.f32 %v2350, %v2614
      %v2616 = vand.u32 %v2615, 4294901760
      %v2617 = vsub.f32 %v2615, %v2616
      %v2618 = vand.u32 %v2617, 4294901760
      %2619 = vmatmul.mubr.f32.gmra.mrb[0].mxu0 %v2618
      %v2620 = vpop.f32.mrb[0].mxu0
      %v2621 = vadd.f32 %v2304, %v2620
      %v2622 = vpop.f32.mrb[0].mxu0
      %2623 = vmatprep.mubr.f32.mxu0 0.0
      %v2624 = vand.u32 %v2353, 4294901760
      %v2625 = vsub.f32 %v2353, %v2624
      %v2626 = vand.u32 %v2625, 4294901760
      %v2627 = vsub.f32 %v2625, %v2626
      %v2628 = vand.u32 %v2627, 4294901760
      %2629 = vmatmul.mubr.f32.gmra.mrb[0].mxu0 %v2628
      %v2630 = vpop.f32.mrb[0].mxu0
      %v2631 = vadd.f32 %v2304, %v2630
      %v2632 = vpop.f32.mrb[0].mxu0
      %2633 = vmatprep.mubr.f32.mxu0 0.0
      %v2634 = vand.u32 %v2356, 4294901760
      %v2635 = vsub.f32 %v2356, %v2634
      %v2636 = vand.u32 %v2635, 4294901760
      %v2637 = vsub.f32 %v2635, %v2636
      %v2638 = vand.u32 %v2637, 4294901760
      %2639 = vmatmul.mubr.f32.gmra.mrb[0].mxu0 %v2638
      %v2640 = vpop.f32.mrb[0].mxu0
      %v2641 = vadd.f32 %v2304, %v2640
      %v2642 = vpop.f32.mrb[0].mxu0
      %2643 = vmatprep.mubr.f32.mxu0 0.0
      %v2644 = vand.u32 %v2359, 4294901760
      %v2645 = vsub.f32 %v2359, %v2644
      %v2646 = vand.u32 %v2645, 4294901760
      %v2647 = vsub.f32 %v2645, %v2646
      %v2648 = vand.u32 %v2647, 4294901760
      %2649 = vmatmul.mubr.f32.gmra.mrb[0].mxu0 %v2648
      %v2650 = vpop.f32.mrb[0].mxu0
      %v2651 = vadd.f32 %v2304, %v2650
      %v2652 = vpop.f32.mrb[0].mxu0
      %2653 = vmatprep.mubr.f32.mxu0 0.0
      %v2654 = vand.u32 %v2362, 4294901760
      %v2655 = vsub.f32 %v2362, %v2654
      %v2656 = vand.u32 %v2655, 4294901760
      %v2657 = vsub.f32 %v2655, %v2656
      %v2658 = vand.u32 %v2657, 4294901760
      %2659 = vmatmul.mubr.f32.gmra.mrb[0].mxu0 %v2658
      %v2660 = vpop.f32.mrb[0].mxu0
      %v2661 = vadd.f32 %v2304, %v2660
      %v2662 = vpop.f32.mrb[0].mxu0
      %2663 = vmatprep.mubr.f32.mxu0 0.0
      %v2664 = vand.u32 %v2365, 4294901760
      %v2665 = vsub.f32 %v2365, %v2664
      %v2666 = vand.u32 %v2665, 4294901760
      %v2667 = vsub.f32 %v2665, %v2666
      %v2668 = vand.u32 %v2667, 4294901760
      %2669 = vmatmul.mubr.f32.gmra.mrb[0].mxu0 %v2668
      %v2670 = vpop.f32.mrb[0].mxu0
      %v2671 = vadd.f32 %v2304, %v2670
      %v2672 = vpop.f32.mrb[0].mxu0
      %2673 = vmatprep.mubr.f32.mxu0 0.0
      %v2674 = vand.u32 %v2368, 4294901760
      %v2675 = vsub.f32 %v2368, %v2674
      %v2676 = vand.u32 %v2675, 4294901760
      %v2677 = vsub.f32 %v2675, %v2676
      %v2678 = vand.u32 %v2677, 4294901760
      %2679 = vmatmul.mubr.f32.gmra.mrb[0].mxu0 %v2678
      %v2680 = vpop.f32.mrb[0].mxu0
      %v2681 = vadd.f32 %v2304, %v2680
      %v2682 = vpop.f32.mrb[0].mxu0
      %2683 = vmatprep.mubr.f32.mxu0 0.0
      %v2684 = vand.u32 %v2371, 4294901760
      %v2685 = vsub.f32 %v2371, %v2684
      %v2686 = vand.u32 %v2685, 4294901760
      %v2687 = vsub.f32 %v2685, %v2686
      %v2688 = vand.u32 %v2687, 4294901760
      %2689 = vmatmul.mubr.f32.gmra.mrb[0].mxu0 %v2688
      %v2690 = vpop.f32.mrb[0].mxu0
      %v2691 = vadd.f32 %v2304, %v2690
      %v2692 = vpop.f32.mrb[0].mxu0
      %2693 = vmatprep.mubr.f32.mxu0 0.0
      %v2694 = vand.u32 %v2374, 4294901760
      %v2695 = vsub.f32 %v2374, %v2694
      %v2696 = vand.u32 %v2695, 4294901760
      %v2697 = vsub.f32 %v2695, %v2696
      %v2698 = vand.u32 %v2697, 4294901760
      %2699 = vmatmul.mubr.f32.gmra.mrb[0].mxu0 %v2698
      %v2700 = vpop.f32.mrb[0].mxu0
      %v2701 = vadd.f32 %v2304, %v2700
      %v2702 = vpop.f32.mrb[0].mxu0
      %2703 = vmatprep.mubr.f32.mxu0 0.0
      %v2704 = vand.u32 %v2377, 4294901760
      %v2705 = vsub.f32 %v2377, %v2704
      %v2706 = vand.u32 %v2705, 4294901760
      %v2707 = vsub.f32 %v2705, %v2706
      %v2708 = vand.u32 %v2707, 4294901760
      %2709 = vmatmul.mubr.f32.gmra.mrb[0].mxu0 %v2708
      %v2710 = vpop.f32.mrb[0].mxu0
      %v2711 = vadd.f32 %v2304, %v2710
      %v2712 = vpop.f32.mrb[0].mxu0
      %2713 = vmatprep.mubr.f32.mxu0 0.0
      %v2714 = vand.u32 %v2380, 4294901760
      %v2715 = vsub.f32 %v2380, %v2714
      %v2716 = vand.u32 %v2715, 4294901760
      %v2717 = vsub.f32 %v2715, %v2716
      %v2718 = vand.u32 %v2717, 4294901760
      %2719 = vmatmul.mubr.f32.gmra.mrb[0].mxu0 %v2718
      %v2720 = vpop.f32.mrb[0].mxu0
      %v2721 = vadd.f32 %v2304, %v2720
      %v2722 = vpop.f32.mrb[0].mxu0
      %2723 = vmatprep.mubr.f32.mxu0 0.0
      %v2724 = vand.u32 %v2383, 4294901760
      %v2725 = vsub.f32 %v2383, %v2724
      %v2726 = vand.u32 %v2725, 4294901760
      %v2727 = vsub.f32 %v2725, %v2726
      %v2728 = vand.u32 %v2727, 4294901760
      %2729 = vmatmul.mubr.f32.gmra.mrb[0].mxu0 %v2728
      %v2730 = vpop.f32.mrb[0].mxu0
      %v2731 = vadd.f32 %v2304, %v2730
      %v2732 = vpop.f32.mrb[0].mxu0
      %2733 = vmatprep.mubr.f32.mxu0 0.0
      %v2734 = vand.u32 %v2386, 4294901760
      %v2735 = vsub.f32 %v2386, %v2734
      %v2736 = vand.u32 %v2735, 4294901760
      %v2737 = vsub.f32 %v2735, %v2736
      %v2738 = vand.u32 %v2737, 4294901760
      %2739 = vmatmul.mubr.f32.gmra.mrb[0].mxu0 %v2738
      %v2740 = vpop.f32.mrb[0].mxu0
      %v2741 = vadd.f32 %v2304, %v2740
      %v2742 = vpop.f32.mrb[0].mxu0
      %2743 = vmatprep.mubr.f32.mxu0 0.0
      %v2744 = vand.u32 %v2389, 4294901760
      %v2745 = vsub.f32 %v2389, %v2744
      %v2746 = vand.u32 %v2745, 4294901760
      %v2747 = vsub.f32 %v2745, %v2746
      %v2748 = vand.u32 %v2747, 4294901760
      %2749 = vmatmul.mubr.f32.gmra.mrb[0].mxu0 %v2748
      %v2750 = vpop.f32.mrb[0].mxu0
      %v2751 = vadd.f32 %v2304, %v2750
      %v2752 = vpop.f32.mrb[0].mxu0
      %2753 = vmatprep.mubr.f32.mxu0 0.0
      %v2754 = vand.u32 %v2392, 4294901760
      %v2755 = vsub.f32 %v2392, %v2754
      %v2756 = vand.u32 %v2755, 4294901760
      %v2757 = vsub.f32 %v2755, %v2756
      %v2758 = vand.u32 %v2757, 4294901760
      %2759 = vmatmul.mubr.f32.gmra.mrb[0].mxu0 %v2758
      %v2760 = vpop.f32.mrb[0].mxu0
      %v2761 = vadd.f32 %v2304, %v2760
      %v2762 = vpop.f32.mrb[0].mxu0
      %2763 = vmatprep.mubr.f32.mxu0 0.0
      %v2764 = vand.u32 %v2395, 4294901760
      %v2765 = vsub.f32 %v2395, %v2764
      %v2766 = vand.u32 %v2765, 4294901760
      %v2767 = vsub.f32 %v2765, %v2766
      %v2768 = vand.u32 %v2767, 4294901760
      %2769 = vmatmul.mubr.f32.gmra.mrb[0].mxu0 %v2768
      %v2770 = vpop.f32.mrb[0].mxu0
      %v2771 = vadd.f32 %v2304, %v2770
      %v2772 = vpop.f32.mrb[0].mxu0
      %2773 = vmatprep.mubr.f32.mxu0 0.0
      %v2774 = vand.u32 %v2398, 4294901760
      %v2775 = vsub.f32 %v2398, %v2774
      %v2776 = vand.u32 %v2775, 4294901760
      %v2777 = vsub.f32 %v2775, %v2776
      %v2778 = vand.u32 %v2777, 4294901760
      %2779 = vmatmul.mubr.f32.gmra.mrb[0].mxu0 %v2778
      %v2780 = vpop.f32.mrb[0].mxu0
      %v2781 = vadd.f32 %v2304, %v2780
      %v2782 = vpop.f32.mrb[0].mxu0
      %2783 = vmatprep.mubr.f32.mxu0 0.0
      %v2784 = vand.u32 %v2401, 4294901760
      %v2785 = vsub.f32 %v2401, %v2784
      %v2786 = vand.u32 %v2785, 4294901760
      %v2787 = vsub.f32 %v2785, %v2786
      %v2788 = vand.u32 %v2787, 4294901760
      %2789 = vmatmul.mubr.f32.gmra.mrb[0].mxu0 %v2788
      %v2790 = vpop.f32.mrb[0].mxu0
      %v2791 = vadd.f32 %v2304, %v2790
      %v2792 = vpop.f32.mrb[0].mxu0
      %2793 = vdwg.mxu0
      %2794 = vmatprep.subr.mxu0 0.0
      %v2795 = vand.u32 %v2293, 4294901760
      %v2796 = vsub.f32 %v2293, %v2795
      %v2797 = vand.u32 %v2796, 4294901760
      %v2798 = vsub.f32 %v2796, %v2797
      %v2799 = vand.u32 %v2798, 4294901760
      %2800 = vmatpush1.msra.mxu0 %v2799
      %2801 = vmatprep.subr.mxu0 0.0
      %v2802 = vand.u32 %v2294, 4294901760
      %v2803 = vsub.f32 %v2294, %v2802
      %v2804 = vand.u32 %v2803, 4294901760
      %v2805 = vsub.f32 %v2803, %v2804
      %v2806 = vand.u32 %v2805, 4294901760
      %2807 = vmatpush1.msra.mxu0 %v2806
      %2808 = vmatprep.subr.mxu0 0.0
      %v2809 = vand.u32 %v2295, 4294901760
      %v2810 = vsub.f32 %v2295, %v2809
      %v2811 = vand.u32 %v2810, 4294901760
      %v2812 = vsub.f32 %v2810, %v2811
      %v2813 = vand.u32 %v2812, 4294901760
      %2814 = vmatpush1.msra.mxu0 %v2813
      %2815 = vmatprep.subr.mxu0 0.0
      %v2816 = vand.u32 %v2296, 4294901760
      %v2817 = vsub.f32 %v2296, %v2816
      %v2818 = vand.u32 %v2817, 4294901760
      %v2819 = vsub.f32 %v2817, %v2818
      %v2820 = vand.u32 %v2819, 4294901760
      %2821 = vmatpush1.msra.mxu0 %v2820
      %2822 = vmatprep.subr.mxu0 0.0
      %v2823 = vand.u32 %v2297, 4294901760
      %v2824 = vsub.f32 %v2297, %v2823
      %v2825 = vand.u32 %v2824, 4294901760
      %v2826 = vsub.f32 %v2824, %v2825
      %v2827 = vand.u32 %v2826, 4294901760
      %2828 = vmatpush1.msra.mxu0 %v2827
      %2829 = vmatprep.subr.mxu0 0.0
      %v2830 = vand.u32 %v2298, 4294901760
      %v2831 = vsub.f32 %v2298, %v2830
      %v2832 = vand.u32 %v2831, 4294901760
      %v2833 = vsub.f32 %v2831, %v2832
      %v2834 = vand.u32 %v2833, 4294901760
      %2835 = vmatpush1.msra.mxu0 %v2834
      %2836 = vmatprep.subr.mxu0 0.0
      %2837 = vmatpush1.msra.mxu0 0.0
      %2838 = vmatprep.subr.mxu0 0.0
      %2839 = vmatpush1.msra.mxu0 0.0
      %2840 = vmatprep.subr.mxu0 0.0
      %2841 = vmatpush1.msra.mxu0 0.0
      %2842 = vmatprep.subr.mxu0 0.0
      %2843 = vmatpush1.msra.mxu0 0.0
      %2844 = vmatprep.subr.mxu0 0.0
      %2845 = vmatpush1.msra.mxu0 0.0
      %2846 = vmatprep.subr.mxu0 0.0
      %2847 = vmatpush1.msra.mxu0 0.0
      %2848 = vmatprep.subr.mxu0 0.0
      %2849 = vmatpush1.msra.mxu0 0.0
      %2850 = vmatprep.subr.mxu0 0.0
      %2851 = vmatpush1.msra.mxu0 0.0
      %2852 = vmatprep.subr.mxu0 0.0
      %2853 = vmatpush1.msra.mxu0 0.0
      %2854 = vmatprep.subr.mxu0 0.0
      %2855 = vmatpush1.msra.mxu0 0.0
      %2856 = vmatprep.subr.mxu0 0.0
      %2857 = vmatpush1.msra.mxu0 0.0
      %2858 = vmatprep.subr.mxu0 0.0
      %2859 = vmatpush1.msra.mxu0 0.0
      %2860 = vmatprep.subr.mxu0 0.0
      %2861 = vmatpush1.msra.mxu0 0.0
      %2862 = vmatprep.subr.mxu0 0.0
      %2863 = vmatpush1.msra.mxu0 0.0
      %2864 = vmatprep.subr.mxu0 0.0
      %2865 = vmatpush1.msra.mxu0 0.0
      %2866 = vmatprep.subr.mxu0 0.0
      %2867 = vmatpush1.msra.mxu0 0.0
      %2868 = vmatprep.subr.mxu0 0.0
      %2869 = vmatpush1.msra.mxu0 0.0
      %2870 = vmatprep.subr.mxu0 0.0
      %2871 = vmatpush1.msra.mxu0 0.0
      %2872 = vmatprep.subr.mxu0 0.0
      %2873 = vmatpush1.msra.mxu0 0.0
      %2874 = vmatprep.subr.mxu0 0.0
      %2875 = vmatpush1.msra.mxu0 0.0
      %2876 = vmatprep.subr.mxu0 0.0
      %2877 = vmatpush1.msra.mxu0 0.0
      %2878 = vmatprep.subr.mxu0 0.0
      %2879 = vmatpush1.msra.mxu0 0.0
      %2880 = vmatprep.subr.mxu0 0.0
      %2881 = vmatpush1.msra.mxu0 0.0
      %2882 = vmatprep.subr.mxu0 0.0
      %2883 = vmatpush1.msra.mxu0 0.0
      %2884 = vmatprep.subr.mxu0 0.0
      %2885 = vmatpush1.msra.mxu0 0.0
      %2886 = vmatprep.subr.mxu0 0.0
      %2887 = vmatpush1.msra.mxu0 0.0
      %2888 = vmatprep.mubr.f32.mxu0 0.0
      %v2889 = vand.u32 %v2308, 4294901760
      %2890 = vmatmul.mubr.f32.gmra.mrb[0].mxu0 %v2889
      %v2891 = vpop.f32.mrb[0].mxu0
      %v2892 = vadd.f32 %v2481, %v2891
      %v2893 = vpop.f32.mrb[0].mxu0
      %2894 = vmatprep.mubr.f32.mxu0 0.0
      %v2895 = vand.u32 %v2311, 4294901760
      %2896 = vmatmul.mubr.f32.gmra.mrb[0].mxu0 %v2895
      %v2897 = vpop.f32.mrb[0].mxu0
      %v2898 = vadd.f32 %v2491, %v2897
      %v2899 = vpop.f32.mrb[0].mxu0
      %2900 = vmatprep.mubr.f32.mxu0 0.0
      %v2901 = vand.u32 %v2314, 4294901760
      %2902 = vmatmul.mubr.f32.gmra.mrb[0].mxu0 %v2901
      %v2903 = vpop.f32.mrb[0].mxu0
      %v2904 = vadd.f32 %v2501, %v2903
      %v2905 = vpop.f32.mrb[0].mxu0
      %2906 = vmatprep.mubr.f32.mxu0 0.0
      %v2907 = vand.u32 %v2317, 4294901760
      %2908 = vmatmul.mubr.f32.gmra.mrb[0].mxu0 %v2907
      %v2909 = vpop.f32.mrb[0].mxu0
      %v2910 = vadd.f32 %v2511, %v2909
      %v2911 = vpop.f32.mrb[0].mxu0
      %2912 = vmatprep.mubr.f32.mxu0 0.0
      %v2913 = vand.u32 %v2320, 4294901760
      %2914 = vmatmul.mubr.f32.gmra.mrb[0].mxu0 %v2913
      %v2915 = vpop.f32.mrb[0].mxu0
      %v2916 = vadd.f32 %v2521, %v2915
      %v2917 = vpop.f32.mrb[0].mxu0
      %2918 = vmatprep.mubr.f32.mxu0 0.0
      %v2919 = vand.u32 %v2323, 4294901760
      %2920 = vmatmul.mubr.f32.gmra.mrb[0].mxu0 %v2919
      %v2921 = vpop.f32.mrb[0].mxu0
      %v2922 = vadd.f32 %v2531, %v2921
      %v2923 = vpop.f32.mrb[0].mxu0
      %2924 = vmatprep.mubr.f32.mxu0 0.0
      %v2925 = vand.u32 %v2326, 4294901760
      %2926 = vmatmul.mubr.f32.gmra.mrb[0].mxu0 %v2925
      %v2927 = vpop.f32.mrb[0].mxu0
      %v2928 = vadd.f32 %v2541, %v2927
      %v2929 = vpop.f32.mrb[0].mxu0
      %2930 = vmatprep.mubr.f32.mxu0 0.0
      %v2931 = vand.u32 %v2329, 4294901760
      %2932 = vmatmul.mubr.f32.gmra.mrb[0].mxu0 %v2931
      %v2933 = vpop.f32.mrb[0].mxu0
      %v2934 = vadd.f32 %v2551, %v2933
      %v2935 = vpop.f32.mrb[0].mxu0
      %2936 = vmatprep.mubr.f32.mxu0 0.0
      %v2937 = vand.u32 %v2332, 4294901760
      %2938 = vmatmul.mubr.f32.gmra.mrb[0].mxu0 %v2937
      %v2939 = vpop.f32.mrb[0].mxu0
      %v2940 = vadd.f32 %v2561, %v2939
      %v2941 = vpop.f32.mrb[0].mxu0
      %2942 = vmatprep.mubr.f32.mxu0 0.0
      %v2943 = vand.u32 %v2335, 4294901760
      %2944 = vmatmul.mubr.f32.gmra.mrb[0].mxu0 %v2943
      %v2945 = vpop.f32.mrb[0].mxu0
      %v2946 = vadd.f32 %v2571, %v2945
      %v2947 = vpop.f32.mrb[0].mxu0
      %2948 = vmatprep.mubr.f32.mxu0 0.0
      %v2949 = vand.u32 %v2338, 4294901760
      %2950 = vmatmul.mubr.f32.gmra.mrb[0].mxu0 %v2949
      %v2951 = vpop.f32.mrb[0].mxu0
      %v2952 = vadd.f32 %v2581, %v2951
      %v2953 = vpop.f32.mrb[0].mxu0
      %2954 = vmatprep.mubr.f32.mxu0 0.0
      %v2955 = vand.u32 %v2341, 4294901760
      %2956 = vmatmul.mubr.f32.gmra.mrb[0].mxu0 %v2955
      %v2957 = vpop.f32.mrb[0].mxu0
      %v2958 = vadd.f32 %v2591, %v2957
      %v2959 = vpop.f32.mrb[0].mxu0
      %2960 = vmatprep.mubr.f32.mxu0 0.0
      %v2961 = vand.u32 %v2344, 4294901760
      %2962 = vmatmul.mubr.f32.gmra.mrb[0].mxu0 %v2961
      %v2963 = vpop.f32.mrb[0].mxu0
      %v2964 = vadd.f32 %v2601, %v2963
      %v2965 = vpop.f32.mrb[0].mxu0
      %2966 = vmatprep.mubr.f32.mxu0 0.0
      %v2967 = vand.u32 %v2347, 4294901760
      %2968 = vmatmul.mubr.f32.gmra.mrb[0].mxu0 %v2967
      %v2969 = vpop.f32.mrb[0].mxu0
      %v2970 = vadd.f32 %v2611, %v2969
      %v2971 = vpop.f32.mrb[0].mxu0
      %2972 = vmatprep.mubr.f32.mxu0 0.0
      %v2973 = vand.u32 %v2350, 4294901760
      %2974 = vmatmul.mubr.f32.gmra.mrb[0].mxu0 %v2973
      %v2975 = vpop.f32.mrb[0].mxu0
      %v2976 = vadd.f32 %v2621, %v2975
      %v2977 = vpop.f32.mrb[0].mxu0
      %2978 = vmatprep.mubr.f32.mxu0 0.0
      %v2979 = vand.u32 %v2353, 4294901760
      %2980 = vmatmul.mubr.f32.gmra.mrb[0].mxu0 %v2979
      %v2981 = vpop.f32.mrb[0].mxu0
      %v2982 = vadd.f32 %v2631, %v2981
      %v2983 = vpop.f32.mrb[0].mxu0
      %2984 = vmatprep.mubr.f32.mxu0 0.0
      %v2985 = vand.u32 %v2356, 4294901760
      %2986 = vmatmul.mubr.f32.gmra.mrb[0].mxu0 %v2985
      %v2987 = vpop.f32.mrb[0].mxu0
      %v2988 = vadd.f32 %v2641, %v2987
      %v2989 = vpop.f32.mrb[0].mxu0
      %2990 = vmatprep.mubr.f32.mxu0 0.0
      %v2991 = vand.u32 %v2359, 4294901760
      %2992 = vmatmul.mubr.f32.gmra.mrb[0].mxu0 %v2991
      %v2993 = vpop.f32.mrb[0].mxu0
      %v2994 = vadd.f32 %v2651, %v2993
      %v2995 = vpop.f32.mrb[0].mxu0
      %2996 = vmatprep.mubr.f32.mxu0 0.0
      %v2997 = vand.u32 %v2362, 4294901760
      %2998 = vmatmul.mubr.f32.gmra.mrb[0].mxu0 %v2997
      %v2999 = vpop.f32.mrb[0].mxu0
      %v3000 = vadd.f32 %v2661, %v2999
      %v3001 = vpop.f32.mrb[0].mxu0
      %3002 = vmatprep.mubr.f32.mxu0 0.0
      %v3003 = vand.u32 %v2365, 4294901760
      %3004 = vmatmul.mubr.f32.gmra.mrb[0].mxu0 %v3003
      %v3005 = vpop.f32.mrb[0].mxu0
      %v3006 = vadd.f32 %v2671, %v3005
      %v3007 = vpop.f32.mrb[0].mxu0
      %3008 = vmatprep.mubr.f32.mxu0 0.0
      %v3009 = vand.u32 %v2368, 4294901760
      %3010 = vmatmul.mubr.f32.gmra.mrb[0].mxu0 %v3009
      %v3011 = vpop.f32.mrb[0].mxu0
      %v3012 = vadd.f32 %v2681, %v3011
      %v3013 = vpop.f32.mrb[0].mxu0
      %3014 = vmatprep.mubr.f32.mxu0 0.0
      %v3015 = vand.u32 %v2371, 4294901760
      %3016 = vmatmul.mubr.f32.gmra.mrb[0].mxu0 %v3015
      %v3017 = vpop.f32.mrb[0].mxu0
      %v3018 = vadd.f32 %v2691, %v3017
      %v3019 = vpop.f32.mrb[0].mxu0
      %3020 = vmatprep.mubr.f32.mxu0 0.0
      %v3021 = vand.u32 %v2374, 4294901760
      %3022 = vmatmul.mubr.f32.gmra.mrb[0].mxu0 %v3021
      %v3023 = vpop.f32.mrb[0].mxu0
      %v3024 = vadd.f32 %v2701, %v3023
      %v3025 = vpop.f32.mrb[0].mxu0
      %3026 = vmatprep.mubr.f32.mxu0 0.0
      %v3027 = vand.u32 %v2377, 4294901760
      %3028 = vmatmul.mubr.f32.gmra.mrb[0].mxu0 %v3027
      %v3029 = vpop.f32.mrb[0].mxu0
      %v3030 = vadd.f32 %v2711, %v3029
      %v3031 = vpop.f32.mrb[0].mxu0
      %3032 = vmatprep.mubr.f32.mxu0 0.0
      %v3033 = vand.u32 %v2380, 4294901760
      %3034 = vmatmul.mubr.f32.gmra.mrb[0].mxu0 %v3033
      %v3035 = vpop.f32.mrb[0].mxu0
      %v3036 = vadd.f32 %v2721, %v3035
      %v3037 = vpop.f32.mrb[0].mxu0
      %3038 = vmatprep.mubr.f32.mxu0 0.0
      %v3039 = vand.u32 %v2383, 4294901760
      %3040 = vmatmul.mubr.f32.gmra.mrb[0].mxu0 %v3039
      %v3041 = vpop.f32.mrb[0].mxu0
      %v3042 = vadd.f32 %v2731, %v3041
      %v3043 = vpop.f32.mrb[0].mxu0
      %3044 = vmatprep.mubr.f32.mxu0 0.0
      %v3045 = vand.u32 %v2386, 4294901760
      %3046 = vmatmul.mubr.f32.gmra.mrb[0].mxu0 %v3045
      %v3047 = vpop.f32.mrb[0].mxu0
      %v3048 = vadd.f32 %v2741, %v3047
      %v3049 = vpop.f32.mrb[0].mxu0
      %3050 = vmatprep.mubr.f32.mxu0 0.0
      %v3051 = vand.u32 %v2389, 4294901760
      %3052 = vmatmul.mubr.f32.gmra.mrb[0].mxu0 %v3051
      %v3053 = vpop.f32.mrb[0].mxu0
      %v3054 = vadd.f32 %v2751, %v3053
      %v3055 = vpop.f32.mrb[0].mxu0
      %3056 = vmatprep.mubr.f32.mxu0 0.0
      %v3057 = vand.u32 %v2392, 4294901760
      %3058 = vmatmul.mubr.f32.gmra.mrb[0].mxu0 %v3057
      %v3059 = vpop.f32.mrb[0].mxu0
      %v3060 = vadd.f32 %v2761, %v3059
      %v3061 = vpop.f32.mrb[0].mxu0
      %3062 = vmatprep.mubr.f32.mxu0 0.0
      %v3063 = vand.u32 %v2395, 4294901760
      %3064 = vmatmul.mubr.f32.gmra.mrb[0].mxu0 %v3063
      %v3065 = vpop.f32.mrb[0].mxu0
      %v3066 = vadd.f32 %v2771, %v3065
      %v3067 = vpop.f32.mrb[0].mxu0
      %3068 = vmatprep.mubr.f32.mxu0 0.0
      %v3069 = vand.u32 %v2398, 4294901760
      %3070 = vmatmul.mubr.f32.gmra.mrb[0].mxu0 %v3069
      %v3071 = vpop.f32.mrb[0].mxu0
      %v3072 = vadd.f32 %v2781, %v3071
      %v3073 = vpop.f32.mrb[0].mxu0
      %3074 = vmatprep.mubr.f32.mxu0 0.0
      %v3075 = vand.u32 %v2401, 4294901760
      %3076 = vmatmul.mubr.f32.gmra.mrb[0].mxu0 %v3075
      %v3077 = vpop.f32.mrb[0].mxu0
      %v3078 = vadd.f32 %v2791, %v3077
      %v3079 = vpop.f32.mrb[0].mxu0
      %3080 = vdwg.mxu0
      %3081 = vmatprep.subr.mxu0 0.0
      %v3082 = vand.u32 %v2293, 4294901760
      %v3083 = vsub.f32 %v2293, %v3082
      %3084 = vmatpush1.msra.mxu0 %v3083
      %3085 = vmatprep.subr.mxu0 0.0
      %v3086 = vand.u32 %v2294, 4294901760
      %v3087 = vsub.f32 %v2294, %v3086
      %3088 = vmatpush1.msra.mxu0 %v3087
      %3089 = vmatprep.subr.mxu0 0.0
      %v3090 = vand.u32 %v2295, 4294901760
      %v3091 = vsub.f32 %v2295, %v3090
      %3092 = vmatpush1.msra.mxu0 %v3091
      %3093 = vmatprep.subr.mxu0 0.0
      %v3094 = vand.u32 %v2296, 4294901760
      %v3095 = vsub.f32 %v2296, %v3094
      %3096 = vmatpush1.msra.mxu0 %v3095
      %3097 = vmatprep.subr.mxu0 0.0
      %v3098 = vand.u32 %v2297, 4294901760
      %v3099 = vsub.f32 %v2297, %v3098
      %3100 = vmatpush1.msra.mxu0 %v3099
      %3101 = vmatprep.subr.mxu0 0.0
      %v3102 = vand.u32 %v2298, 4294901760
      %v3103 = vsub.f32 %v2298, %v3102
      %3104 = vmatpush1.msra.mxu0 %v3103
      %3105 = vmatprep.subr.mxu0 0.0
      %3106 = vmatpush1.msra.mxu0 0.0
      %3107 = vmatprep.subr.mxu0 0.0
      %3108 = vmatpush1.msra.mxu0 0.0
      %3109 = vmatprep.subr.mxu0 0.0
      %3110 = vmatpush1.msra.mxu0 0.0
      %3111 = vmatprep.subr.mxu0 0.0
      %3112 = vmatpush1.msra.mxu0 0.0
      %3113 = vmatprep.subr.mxu0 0.0
      %3114 = vmatpush1.msra.mxu0 0.0
      %3115 = vmatprep.subr.mxu0 0.0
      %3116 = vmatpush1.msra.mxu0 0.0
      %3117 = vmatprep.subr.mxu0 0.0
      %3118 = vmatpush1.msra.mxu0 0.0
      %3119 = vmatprep.subr.mxu0 0.0
      %3120 = vmatpush1.msra.mxu0 0.0
      %3121 = vmatprep.subr.mxu0 0.0
      %3122 = vmatpush1.msra.mxu0 0.0
      %3123 = vmatprep.subr.mxu0 0.0
      %3124 = vmatpush1.msra.mxu0 0.0
      %3125 = vmatprep.subr.mxu0 0.0
      %3126 = vmatpush1.msra.mxu0 0.0
      %3127 = vmatprep.subr.mxu0 0.0
      %3128 = vmatpush1.msra.mxu0 0.0
      %3129 = vmatprep.subr.mxu0 0.0
      %3130 = vmatpush1.msra.mxu0 0.0
      %3131 = vmatprep.subr.mxu0 0.0
      %3132 = vmatpush1.msra.mxu0 0.0
      %3133 = vmatprep.subr.mxu0 0.0
      %3134 = vmatpush1.msra.mxu0 0.0
      %3135 = vmatprep.subr.mxu0 0.0
      %3136 = vmatpush1.msra.mxu0 0.0
      %3137 = vmatprep.subr.mxu0 0.0
      %3138 = vmatpush1.msra.mxu0 0.0
      %3139 = vmatprep.subr.mxu0 0.0
      %3140 = vmatpush1.msra.mxu0 0.0
      %3141 = vmatprep.subr.mxu0 0.0
      %3142 = vmatpush1.msra.mxu0 0.0
      %3143 = vmatprep.subr.mxu0 0.0
      %3144 = vmatpush1.msra.mxu0 0.0
      %3145 = vmatprep.subr.mxu0 0.0
      %3146 = vmatpush1.msra.mxu0 0.0
      %3147 = vmatprep.subr.mxu0 0.0
      %3148 = vmatpush1.msra.mxu0 0.0
      %3149 = vmatprep.subr.mxu0 0.0
      %3150 = vmatpush1.msra.mxu0 0.0
      %3151 = vmatprep.subr.mxu0 0.0
      %3152 = vmatpush1.msra.mxu0 0.0
      %3153 = vmatprep.subr.mxu0 0.0
      %3154 = vmatpush1.msra.mxu0 0.0
      %3155 = vmatprep.subr.mxu0 0.0
      %3156 = vmatpush1.msra.mxu0 0.0
      %3157 = vmatprep.mubr.f32.mxu0 0.0
      %v3158 = vand.u32 %v2308, 4294901760
      %v3159 = vsub.f32 %v2308, %v3158
      %3160 = vmatmul.mubr.f32.gmra.mrb[0].mxu0 %v3159
      %v3161 = vpop.f32.mrb[0].mxu0
      %v3162 = vadd.f32 %v2892, %v3161
      %v3163 = vpop.f32.mrb[0].mxu0
      %3164 = vmatprep.mubr.f32.mxu0 0.0
      %v3165 = vand.u32 %v2311, 4294901760
      %v3166 = vsub.f32 %v2311, %v3165
      %3167 = vmatmul.mubr.f32.gmra.mrb[0].mxu0 %v3166
      %v3168 = vpop.f32.mrb[0].mxu0
      %v3169 = vadd.f32 %v2898, %v3168
      %v3170 = vpop.f32.mrb[0].mxu0
      %3171 = vmatprep.mubr.f32.mxu0 0.0
      %v3172 = vand.u32 %v2314, 4294901760
      %v3173 = vsub.f32 %v2314, %v3172
      %3174 = vmatmul.mubr.f32.gmra.mrb[0].mxu0 %v3173
      %v3175 = vpop.f32.mrb[0].mxu0
      %v3176 = vadd.f32 %v2904, %v3175
      %v3177 = vpop.f32.mrb[0].mxu0
      %3178 = vmatprep.mubr.f32.mxu0 0.0
      %v3179 = vand.u32 %v2317, 4294901760
      %v3180 = vsub.f32 %v2317, %v3179
      %3181 = vmatmul.mubr.f32.gmra.mrb[0].mxu0 %v3180
      %v3182 = vpop.f32.mrb[0].mxu0
      %v3183 = vadd.f32 %v2910, %v3182
      %v3184 = vpop.f32.mrb[0].mxu0
      %3185 = vmatprep.mubr.f32.mxu0 0.0
      %v3186 = vand.u32 %v2320, 4294901760
      %v3187 = vsub.f32 %v2320, %v3186
      %3188 = vmatmul.mubr.f32.gmra.mrb[0].mxu0 %v3187
      %v3189 = vpop.f32.mrb[0].mxu0
      %v3190 = vadd.f32 %v2916, %v3189
      %v3191 = vpop.f32.mrb[0].mxu0
      %3192 = vmatprep.mubr.f32.mxu0 0.0
      %v3193 = vand.u32 %v2323, 4294901760
      %v3194 = vsub.f32 %v2323, %v3193
      %3195 = vmatmul.mubr.f32.gmra.mrb[0].mxu0 %v3194
      %v3196 = vpop.f32.mrb[0].mxu0
      %v3197 = vadd.f32 %v2922, %v3196
      %v3198 = vpop.f32.mrb[0].mxu0
      %3199 = vmatprep.mubr.f32.mxu0 0.0
      %v3200 = vand.u32 %v2326, 4294901760
      %v3201 = vsub.f32 %v2326, %v3200
      %3202 = vmatmul.mubr.f32.gmra.mrb[0].mxu0 %v3201
      %v3203 = vpop.f32.mrb[0].mxu0
      %v3204 = vadd.f32 %v2928, %v3203
      %v3205 = vpop.f32.mrb[0].mxu0
      %3206 = vmatprep.mubr.f32.mxu0 0.0
      %v3207 = vand.u32 %v2329, 4294901760
      %v3208 = vsub.f32 %v2329, %v3207
      %3209 = vmatmul.mubr.f32.gmra.mrb[0].mxu0 %v3208
      %v3210 = vpop.f32.mrb[0].mxu0
      %v3211 = vadd.f32 %v2934, %v3210
      %v3212 = vpop.f32.mrb[0].mxu0
      %3213 = vmatprep.mubr.f32.mxu0 0.0
      %v3214 = vand.u32 %v2332, 4294901760
      %v3215 = vsub.f32 %v2332, %v3214
      %3216 = vmatmul.mubr.f32.gmra.mrb[0].mxu0 %v3215
      %v3217 = vpop.f32.mrb[0].mxu0
      %v3218 = vadd.f32 %v2940, %v3217
      %v3219 = vpop.f32.mrb[0].mxu0
      %3220 = vmatprep.mubr.f32.mxu0 0.0
      %v3221 = vand.u32 %v2335, 4294901760
      %v3222 = vsub.f32 %v2335, %v3221
      %3223 = vmatmul.mubr.f32.gmra.mrb[0].mxu0 %v3222
      %v3224 = vpop.f32.mrb[0].mxu0
      %v3225 = vadd.f32 %v2946, %v3224
      %v3226 = vpop.f32.mrb[0].mxu0
      %3227 = vmatprep.mubr.f32.mxu0 0.0
      %v3228 = vand.u32 %v2338, 4294901760
      %v3229 = vsub.f32 %v2338, %v3228
      %3230 = vmatmul.mubr.f32.gmra.mrb[0].mxu0 %v3229
      %v3231 = vpop.f32.mrb[0].mxu0
      %v3232 = vadd.f32 %v2952, %v3231
      %v3233 = vpop.f32.mrb[0].mxu0
      %3234 = vmatprep.mubr.f32.mxu0 0.0
      %v3235 = vand.u32 %v2341, 4294901760
      %v3236 = vsub.f32 %v2341, %v3235
      %3237 = vmatmul.mubr.f32.gmra.mrb[0].mxu0 %v3236
      %v3238 = vpop.f32.mrb[0].mxu0
      %v3239 = vadd.f32 %v2958, %v3238
      %v3240 = vpop.f32.mrb[0].mxu0
      %3241 = vmatprep.mubr.f32.mxu0 0.0
      %v3242 = vand.u32 %v2344, 4294901760
      %v3243 = vsub.f32 %v2344, %v3242
      %3244 = vmatmul.mubr.f32.gmra.mrb[0].mxu0 %v3243
      %v3245 = vpop.f32.mrb[0].mxu0
      %v3246 = vadd.f32 %v2964, %v3245
      %v3247 = vpop.f32.mrb[0].mxu0
      %3248 = vmatprep.mubr.f32.mxu0 0.0
      %v3249 = vand.u32 %v2347, 4294901760
      %v3250 = vsub.f32 %v2347, %v3249
      %3251 = vmatmul.mubr.f32.gmra.mrb[0].mxu0 %v3250
      %v3252 = vpop.f32.mrb[0].mxu0
      %v3253 = vadd.f32 %v2970, %v3252
      %v3254 = vpop.f32.mrb[0].mxu0
      %3255 = vmatprep.mubr.f32.mxu0 0.0
      %v3256 = vand.u32 %v2350, 4294901760
      %v3257 = vsub.f32 %v2350, %v3256
      %3258 = vmatmul.mubr.f32.gmra.mrb[0].mxu0 %v3257
      %v3259 = vpop.f32.mrb[0].mxu0
      %v3260 = vadd.f32 %v2976, %v3259
      %v3261 = vpop.f32.mrb[0].mxu0
      %3262 = vmatprep.mubr.f32.mxu0 0.0
      %v3263 = vand.u32 %v2353, 4294901760
      %v3264 = vsub.f32 %v2353, %v3263
      %3265 = vmatmul.mubr.f32.gmra.mrb[0].mxu0 %v3264
      %v3266 = vpop.f32.mrb[0].mxu0
      %v3267 = vadd.f32 %v2982, %v3266
      %v3268 = vpop.f32.mrb[0].mxu0
      %3269 = vmatprep.mubr.f32.mxu0 0.0
      %v3270 = vand.u32 %v2356, 4294901760
      %v3271 = vsub.f32 %v2356, %v3270
      %3272 = vmatmul.mubr.f32.gmra.mrb[0].mxu0 %v3271
      %v3273 = vpop.f32.mrb[0].mxu0
      %v3274 = vadd.f32 %v2988, %v3273
      %v3275 = vpop.f32.mrb[0].mxu0
      %3276 = vmatprep.mubr.f32.mxu0 0.0
      %v3277 = vand.u32 %v2359, 4294901760
      %v3278 = vsub.f32 %v2359, %v3277
      %3279 = vmatmul.mubr.f32.gmra.mrb[0].mxu0 %v3278
      %v3280 = vpop.f32.mrb[0].mxu0
      %v3281 = vadd.f32 %v2994, %v3280
      %v3282 = vpop.f32.mrb[0].mxu0
      %3283 = vmatprep.mubr.f32.mxu0 0.0
      %v3284 = vand.u32 %v2362, 4294901760
      %v3285 = vsub.f32 %v2362, %v3284
      %3286 = vmatmul.mubr.f32.gmra.mrb[0].mxu0 %v3285
      %v3287 = vpop.f32.mrb[0].mxu0
      %v3288 = vadd.f32 %v3000, %v3287
      %v3289 = vpop.f32.mrb[0].mxu0
      %3290 = vmatprep.mubr.f32.mxu0 0.0
      %v3291 = vand.u32 %v2365, 4294901760
      %v3292 = vsub.f32 %v2365, %v3291
      %3293 = vmatmul.mubr.f32.gmra.mrb[0].mxu0 %v3292
      %v3294 = vpop.f32.mrb[0].mxu0
      %v3295 = vadd.f32 %v3006, %v3294
      %v3296 = vpop.f32.mrb[0].mxu0
      %3297 = vmatprep.mubr.f32.mxu0 0.0
      %v3298 = vand.u32 %v2368, 4294901760
      %v3299 = vsub.f32 %v2368, %v3298
      %3300 = vmatmul.mubr.f32.gmra.mrb[0].mxu0 %v3299
      %v3301 = vpop.f32.mrb[0].mxu0
      %v3302 = vadd.f32 %v3012, %v3301
      %v3303 = vpop.f32.mrb[0].mxu0
      %3304 = vmatprep.mubr.f32.mxu0 0.0
      %v3305 = vand.u32 %v2371, 4294901760
      %v3306 = vsub.f32 %v2371, %v3305
      %3307 = vmatmul.mubr.f32.gmra.mrb[0].mxu0 %v3306
      %v3308 = vpop.f32.mrb[0].mxu0
      %v3309 = vadd.f32 %v3018, %v3308
      %v3310 = vpop.f32.mrb[0].mxu0
      %3311 = vmatprep.mubr.f32.mxu0 0.0
      %v3312 = vand.u32 %v2374, 4294901760
      %v3313 = vsub.f32 %v2374, %v3312
      %3314 = vmatmul.mubr.f32.gmra.mrb[0].mxu0 %v3313
      %v3315 = vpop.f32.mrb[0].mxu0
      %v3316 = vadd.f32 %v3024, %v3315
      %v3317 = vpop.f32.mrb[0].mxu0
      %3318 = vmatprep.mubr.f32.mxu0 0.0
      %v3319 = vand.u32 %v2377, 4294901760
      %v3320 = vsub.f32 %v2377, %v3319
      %3321 = vmatmul.mubr.f32.gmra.mrb[0].mxu0 %v3320
      %v3322 = vpop.f32.mrb[0].mxu0
      %v3323 = vadd.f32 %v3030, %v3322
      %v3324 = vpop.f32.mrb[0].mxu0
      %3325 = vmatprep.mubr.f32.mxu0 0.0
      %v3326 = vand.u32 %v2380, 4294901760
      %v3327 = vsub.f32 %v2380, %v3326
      %3328 = vmatmul.mubr.f32.gmra.mrb[0].mxu0 %v3327
      %v3329 = vpop.f32.mrb[0].mxu0
      %v3330 = vadd.f32 %v3036, %v3329
      %v3331 = vpop.f32.mrb[0].mxu0
      %3332 = vmatprep.mubr.f32.mxu0 0.0
      %v3333 = vand.u32 %v2383, 4294901760
      %v3334 = vsub.f32 %v2383, %v3333
      %3335 = vmatmul.mubr.f32.gmra.mrb[0].mxu0 %v3334
      %v3336 = vpop.f32.mrb[0].mxu0
      %v3337 = vadd.f32 %v3042, %v3336
      %v3338 = vpop.f32.mrb[0].mxu0
      %3339 = vmatprep.mubr.f32.mxu0 0.0
      %v3340 = vand.u32 %v2386, 4294901760
      %v3341 = vsub.f32 %v2386, %v3340
      %3342 = vmatmul.mubr.f32.gmra.mrb[0].mxu0 %v3341
      %v3343 = vpop.f32.mrb[0].mxu0
      %v3344 = vadd.f32 %v3048, %v3343
      %v3345 = vpop.f32.mrb[0].mxu0
      %3346 = vmatprep.mubr.f32.mxu0 0.0
      %v3347 = vand.u32 %v2389, 4294901760
      %v3348 = vsub.f32 %v2389, %v3347
      %3349 = vmatmul.mubr.f32.gmra.mrb[0].mxu0 %v3348
      %v3350 = vpop.f32.mrb[0].mxu0
      %v3351 = vadd.f32 %v3054, %v3350
      %v3352 = vpop.f32.mrb[0].mxu0
      %3353 = vmatprep.mubr.f32.mxu0 0.0
      %v3354 = vand.u32 %v2392, 4294901760
      %v3355 = vsub.f32 %v2392, %v3354
      %3356 = vmatmul.mubr.f32.gmra.mrb[0].mxu0 %v3355
      %v3357 = vpop.f32.mrb[0].mxu0
      %v3358 = vadd.f32 %v3060, %v3357
      %v3359 = vpop.f32.mrb[0].mxu0
      %3360 = vmatprep.mubr.f32.mxu0 0.0
      %v3361 = vand.u32 %v2395, 4294901760
      %v3362 = vsub.f32 %v2395, %v3361
      %3363 = vmatmul.mubr.f32.gmra.mrb[0].mxu0 %v3362
      %v3364 = vpop.f32.mrb[0].mxu0
      %v3365 = vadd.f32 %v3066, %v3364
      %v3366 = vpop.f32.mrb[0].mxu0
      %3367 = vmatprep.mubr.f32.mxu0 0.0
      %v3368 = vand.u32 %v2398, 4294901760
      %v3369 = vsub.f32 %v2398, %v3368
      %3370 = vmatmul.mubr.f32.gmra.mrb[0].mxu0 %v3369
      %v3371 = vpop.f32.mrb[0].mxu0
      %v3372 = vadd.f32 %v3072, %v3371
      %v3373 = vpop.f32.mrb[0].mxu0
      %3374 = vmatprep.mubr.f32.mxu0 0.0
      %v3375 = vand.u32 %v2401, 4294901760
      %v3376 = vsub.f32 %v2401, %v3375
      %3377 = vmatmul.mubr.f32.gmra.mrb[0].mxu0 %v3376
      %v3378 = vpop.f32.mrb[0].mxu0
      %v3379 = vadd.f32 %v3078, %v3378
      %v3380 = vpop.f32.mrb[0].mxu0
      %3381 = vdwg.mxu0
      %3382 = vmatprep.subr.mxu0 0.0
      %v3383 = vand.u32 %v2293, 4294901760
      %3384 = vmatpush1.msra.mxu0 %v3383
      %3385 = vmatprep.subr.mxu0 0.0
      %v3386 = vand.u32 %v2294, 4294901760
      %3387 = vmatpush1.msra.mxu0 %v3386
      %3388 = vmatprep.subr.mxu0 0.0
      %v3389 = vand.u32 %v2295, 4294901760
      %3390 = vmatpush1.msra.mxu0 %v3389
      %3391 = vmatprep.subr.mxu0 0.0
      %v3392 = vand.u32 %v2296, 4294901760
      %3393 = vmatpush1.msra.mxu0 %v3392
      %3394 = vmatprep.subr.mxu0 0.0
      %v3395 = vand.u32 %v2297, 4294901760
      %3396 = vmatpush1.msra.mxu0 %v3395
      %3397 = vmatprep.subr.mxu0 0.0
      %v3398 = vand.u32 %v2298, 4294901760
      %3399 = vmatpush1.msra.mxu0 %v3398
      %3400 = vmatprep.subr.mxu0 0.0
      %3401 = vmatpush1.msra.mxu0 0.0
      %3402 = vmatprep.subr.mxu0 0.0
      %3403 = vmatpush1.msra.mxu0 0.0
      %3404 = vmatprep.subr.mxu0 0.0
      %3405 = vmatpush1.msra.mxu0 0.0
      %3406 = vmatprep.subr.mxu0 0.0
      %3407 = vmatpush1.msra.mxu0 0.0
      %3408 = vmatprep.subr.mxu0 0.0
      %3409 = vmatpush1.msra.mxu0 0.0
      %3410 = vmatprep.subr.mxu0 0.0
      %3411 = vmatpush1.msra.mxu0 0.0
      %3412 = vmatprep.subr.mxu0 0.0
      %3413 = vmatpush1.msra.mxu0 0.0
      %3414 = vmatprep.subr.mxu0 0.0
      %3415 = vmatpush1.msra.mxu0 0.0
      %3416 = vmatprep.subr.mxu0 0.0
      %3417 = vmatpush1.msra.mxu0 0.0
      %3418 = vmatprep.subr.mxu0 0.0
      %3419 = vmatpush1.msra.mxu0 0.0
      %3420 = vmatprep.subr.mxu0 0.0
      %3421 = vmatpush1.msra.mxu0 0.0
      %3422 = vmatprep.subr.mxu0 0.0
      %3423 = vmatpush1.msra.mxu0 0.0
      %3424 = vmatprep.subr.mxu0 0.0
      %3425 = vmatpush1.msra.mxu0 0.0
      %3426 = vmatprep.subr.mxu0 0.0
      %3427 = vmatpush1.msra.mxu0 0.0
      %3428 = vmatprep.subr.mxu0 0.0
      %3429 = vmatpush1.msra.mxu0 0.0
      %3430 = vmatprep.subr.mxu0 0.0
      %3431 = vmatpush1.msra.mxu0 0.0
      %3432 = vmatprep.subr.mxu0 0.0
      %3433 = vmatpush1.msra.mxu0 0.0
      %3434 = vmatprep.subr.mxu0 0.0
      %3435 = vmatpush1.msra.mxu0 0.0
      %3436 = vmatprep.subr.mxu0 0.0
      %3437 = vmatpush1.msra.mxu0 0.0
      %3438 = vmatprep.subr.mxu0 0.0
      %3439 = vmatpush1.msra.mxu0 0.0
      %3440 = vmatprep.subr.mxu0 0.0
      %3441 = vmatpush1.msra.mxu0 0.0
      %3442 = vmatprep.subr.mxu0 0.0
      %3443 = vmatpush1.msra.mxu0 0.0
      %3444 = vmatprep.subr.mxu0 0.0
      %3445 = vmatpush1.msra.mxu0 0.0
      %3446 = vmatprep.subr.mxu0 0.0
      %3447 = vmatpush1.msra.mxu0 0.0
      %3448 = vmatprep.subr.mxu0 0.0
      %3449 = vmatpush1.msra.mxu0 0.0
      %3450 = vmatprep.subr.mxu0 0.0
      %3451 = vmatpush1.msra.mxu0 0.0
      %3452 = vmatprep.mubr.f32.mxu0 0.0
      %v3453 = vand.u32 %v2308, 4294901760
      %v3454 = vsub.f32 %v2308, %v3453
      %v3455 = vand.u32 %v3454, 4294901760
      %3456 = vmatmul.mubr.f32.gmra.mrb[0].mxu0 %v3455
      %v3457 = vpop.f32.mrb[0].mxu0
      %v3458 = vadd.f32 %v3162, %v3457
      %v3459 = vpop.f32.mrb[0].mxu0
      %3460 = vmatprep.mubr.f32.mxu0 0.0
      %v3461 = vand.u32 %v2311, 4294901760
      %v3462 = vsub.f32 %v2311, %v3461
      %v3463 = vand.u32 %v3462, 4294901760
      %3464 = vmatmul.mubr.f32.gmra.mrb[0].mxu0 %v3463
      %v3465 = vpop.f32.mrb[0].mxu0
      %v3466 = vadd.f32 %v3169, %v3465
      %v3467 = vpop.f32.mrb[0].mxu0
      %3468 = vmatprep.mubr.f32.mxu0 0.0
      %v3469 = vand.u32 %v2314, 4294901760
      %v3470 = vsub.f32 %v2314, %v3469
      %v3471 = vand.u32 %v3470, 4294901760
      %3472 = vmatmul.mubr.f32.gmra.mrb[0].mxu0 %v3471
      %v3473 = vpop.f32.mrb[0].mxu0
      %v3474 = vadd.f32 %v3176, %v3473
      %v3475 = vpop.f32.mrb[0].mxu0
      %3476 = vmatprep.mubr.f32.mxu0 0.0
      %v3477 = vand.u32 %v2317, 4294901760
      %v3478 = vsub.f32 %v2317, %v3477
      %v3479 = vand.u32 %v3478, 4294901760
      %3480 = vmatmul.mubr.f32.gmra.mrb[0].mxu0 %v3479
      %v3481 = vpop.f32.mrb[0].mxu0
      %v3482 = vadd.f32 %v3183, %v3481
      %v3483 = vpop.f32.mrb[0].mxu0
      %3484 = vmatprep.mubr.f32.mxu0 0.0
      %v3485 = vand.u32 %v2320, 4294901760
      %v3486 = vsub.f32 %v2320, %v3485
      %v3487 = vand.u32 %v3486, 4294901760
      %3488 = vmatmul.mubr.f32.gmra.mrb[0].mxu0 %v3487
      %v3489 = vpop.f32.mrb[0].mxu0
      %v3490 = vadd.f32 %v3190, %v3489
      %v3491 = vpop.f32.mrb[0].mxu0
      %3492 = vmatprep.mubr.f32.mxu0 0.0
      %v3493 = vand.u32 %v2323, 4294901760
      %v3494 = vsub.f32 %v2323, %v3493
      %v3495 = vand.u32 %v3494, 4294901760
      %3496 = vmatmul.mubr.f32.gmra.mrb[0].mxu0 %v3495
      %v3497 = vpop.f32.mrb[0].mxu0
      %v3498 = vadd.f32 %v3197, %v3497
      %v3499 = vpop.f32.mrb[0].mxu0
      %3500 = vmatprep.mubr.f32.mxu0 0.0
      %v3501 = vand.u32 %v2326, 4294901760
      %v3502 = vsub.f32 %v2326, %v3501
      %v3503 = vand.u32 %v3502, 4294901760
      %3504 = vmatmul.mubr.f32.gmra.mrb[0].mxu0 %v3503
      %v3505 = vpop.f32.mrb[0].mxu0
      %v3506 = vadd.f32 %v3204, %v3505
      %v3507 = vpop.f32.mrb[0].mxu0
      %3508 = vmatprep.mubr.f32.mxu0 0.0
      %v3509 = vand.u32 %v2329, 4294901760
      %v3510 = vsub.f32 %v2329, %v3509
      %v3511 = vand.u32 %v3510, 4294901760
      %3512 = vmatmul.mubr.f32.gmra.mrb[0].mxu0 %v3511
      %v3513 = vpop.f32.mrb[0].mxu0
      %v3514 = vadd.f32 %v3211, %v3513
      %v3515 = vpop.f32.mrb[0].mxu0
      %3516 = vmatprep.mubr.f32.mxu0 0.0
      %v3517 = vand.u32 %v2332, 4294901760
      %v3518 = vsub.f32 %v2332, %v3517
      %v3519 = vand.u32 %v3518, 4294901760
      %3520 = vmatmul.mubr.f32.gmra.mrb[0].mxu0 %v3519
      %v3521 = vpop.f32.mrb[0].mxu0
      %v3522 = vadd.f32 %v3218, %v3521
      %v3523 = vpop.f32.mrb[0].mxu0
      %3524 = vmatprep.mubr.f32.mxu0 0.0
      %v3525 = vand.u32 %v2335, 4294901760
      %v3526 = vsub.f32 %v2335, %v3525
      %v3527 = vand.u32 %v3526, 4294901760
      %3528 = vmatmul.mubr.f32.gmra.mrb[0].mxu0 %v3527
      %v3529 = vpop.f32.mrb[0].mxu0
      %v3530 = vadd.f32 %v3225, %v3529
      %v3531 = vpop.f32.mrb[0].mxu0
      %3532 = vmatprep.mubr.f32.mxu0 0.0
      %v3533 = vand.u32 %v2338, 4294901760
      %v3534 = vsub.f32 %v2338, %v3533
      %v3535 = vand.u32 %v3534, 4294901760
      %3536 = vmatmul.mubr.f32.gmra.mrb[0].mxu0 %v3535
      %v3537 = vpop.f32.mrb[0].mxu0
      %v3538 = vadd.f32 %v3232, %v3537
      %v3539 = vpop.f32.mrb[0].mxu0
      %3540 = vmatprep.mubr.f32.mxu0 0.0
      %v3541 = vand.u32 %v2341, 4294901760
      %v3542 = vsub.f32 %v2341, %v3541
      %v3543 = vand.u32 %v3542, 4294901760
      %3544 = vmatmul.mubr.f32.gmra.mrb[0].mxu0 %v3543
      %v3545 = vpop.f32.mrb[0].mxu0
      %v3546 = vadd.f32 %v3239, %v3545
      %v3547 = vpop.f32.mrb[0].mxu0
      %3548 = vmatprep.mubr.f32.mxu0 0.0
      %v3549 = vand.u32 %v2344, 4294901760
      %v3550 = vsub.f32 %v2344, %v3549
      %v3551 = vand.u32 %v3550, 4294901760
      %3552 = vmatmul.mubr.f32.gmra.mrb[0].mxu0 %v3551
      %v3553 = vpop.f32.mrb[0].mxu0
      %v3554 = vadd.f32 %v3246, %v3553
      %v3555 = vpop.f32.mrb[0].mxu0
      %3556 = vmatprep.mubr.f32.mxu0 0.0
      %v3557 = vand.u32 %v2347, 4294901760
      %v3558 = vsub.f32 %v2347, %v3557
      %v3559 = vand.u32 %v3558, 4294901760
      %3560 = vmatmul.mubr.f32.gmra.mrb[0].mxu0 %v3559
      %v3561 = vpop.f32.mrb[0].mxu0
      %v3562 = vadd.f32 %v3253, %v3561
      %v3563 = vpop.f32.mrb[0].mxu0
      %3564 = vmatprep.mubr.f32.mxu0 0.0
      %v3565 = vand.u32 %v2350, 4294901760
      %v3566 = vsub.f32 %v2350, %v3565
      %v3567 = vand.u32 %v3566, 4294901760
      %3568 = vmatmul.mubr.f32.gmra.mrb[0].mxu0 %v3567
      %v3569 = vpop.f32.mrb[0].mxu0
      %v3570 = vadd.f32 %v3260, %v3569
      %v3571 = vpop.f32.mrb[0].mxu0
      %3572 = vmatprep.mubr.f32.mxu0 0.0
      %v3573 = vand.u32 %v2353, 4294901760
      %v3574 = vsub.f32 %v2353, %v3573
      %v3575 = vand.u32 %v3574, 4294901760
      %3576 = vmatmul.mubr.f32.gmra.mrb[0].mxu0 %v3575
      %v3577 = vpop.f32.mrb[0].mxu0
      %v3578 = vadd.f32 %v3267, %v3577
      %v3579 = vpop.f32.mrb[0].mxu0
      %3580 = vmatprep.mubr.f32.mxu0 0.0
      %v3581 = vand.u32 %v2356, 4294901760
      %v3582 = vsub.f32 %v2356, %v3581
      %v3583 = vand.u32 %v3582, 4294901760
      %3584 = vmatmul.mubr.f32.gmra.mrb[0].mxu0 %v3583
      %v3585 = vpop.f32.mrb[0].mxu0
      %v3586 = vadd.f32 %v3274, %v3585
      %v3587 = vpop.f32.mrb[0].mxu0
      %3588 = vmatprep.mubr.f32.mxu0 0.0
      %v3589 = vand.u32 %v2359, 4294901760
      %v3590 = vsub.f32 %v2359, %v3589
      %v3591 = vand.u32 %v3590, 4294901760
      %3592 = vmatmul.mubr.f32.gmra.mrb[0].mxu0 %v3591
      %v3593 = vpop.f32.mrb[0].mxu0
      %v3594 = vadd.f32 %v3281, %v3593
      %v3595 = vpop.f32.mrb[0].mxu0
      %3596 = vmatprep.mubr.f32.mxu0 0.0
      %v3597 = vand.u32 %v2362, 4294901760
      %v3598 = vsub.f32 %v2362, %v3597
      %v3599 = vand.u32 %v3598, 4294901760
      %3600 = vmatmul.mubr.f32.gmra.mrb[0].mxu0 %v3599
      %v3601 = vpop.f32.mrb[0].mxu0
      %v3602 = vadd.f32 %v3288, %v3601
      %v3603 = vpop.f32.mrb[0].mxu0
      %3604 = vmatprep.mubr.f32.mxu0 0.0
      %v3605 = vand.u32 %v2365, 4294901760
      %v3606 = vsub.f32 %v2365, %v3605
      %v3607 = vand.u32 %v3606, 4294901760
      %3608 = vmatmul.mubr.f32.gmra.mrb[0].mxu0 %v3607
      %v3609 = vpop.f32.mrb[0].mxu0
      %v3610 = vadd.f32 %v3295, %v3609
      %v3611 = vpop.f32.mrb[0].mxu0
      %3612 = vmatprep.mubr.f32.mxu0 0.0
      %v3613 = vand.u32 %v2368, 4294901760
      %v3614 = vsub.f32 %v2368, %v3613
      %v3615 = vand.u32 %v3614, 4294901760
      %3616 = vmatmul.mubr.f32.gmra.mrb[0].mxu0 %v3615
      %v3617 = vpop.f32.mrb[0].mxu0
      %v3618 = vadd.f32 %v3302, %v3617
      %v3619 = vpop.f32.mrb[0].mxu0
      %3620 = vmatprep.mubr.f32.mxu0 0.0
      %v3621 = vand.u32 %v2371, 4294901760
      %v3622 = vsub.f32 %v2371, %v3621
      %v3623 = vand.u32 %v3622, 4294901760
      %3624 = vmatmul.mubr.f32.gmra.mrb[0].mxu0 %v3623
      %v3625 = vpop.f32.mrb[0].mxu0
      %v3626 = vadd.f32 %v3309, %v3625
      %v3627 = vpop.f32.mrb[0].mxu0
      %3628 = vmatprep.mubr.f32.mxu0 0.0
      %v3629 = vand.u32 %v2374, 4294901760
      %v3630 = vsub.f32 %v2374, %v3629
      %v3631 = vand.u32 %v3630, 4294901760
      %3632 = vmatmul.mubr.f32.gmra.mrb[0].mxu0 %v3631
      %v3633 = vpop.f32.mrb[0].mxu0
      %v3634 = vadd.f32 %v3316, %v3633
      %v3635 = vpop.f32.mrb[0].mxu0
      %3636 = vmatprep.mubr.f32.mxu0 0.0
      %v3637 = vand.u32 %v2377, 4294901760
      %v3638 = vsub.f32 %v2377, %v3637
      %v3639 = vand.u32 %v3638, 4294901760
      %3640 = vmatmul.mubr.f32.gmra.mrb[0].mxu0 %v3639
      %v3641 = vpop.f32.mrb[0].mxu0
      %v3642 = vadd.f32 %v3323, %v3641
      %v3643 = vpop.f32.mrb[0].mxu0
      %3644 = vmatprep.mubr.f32.mxu0 0.0
      %v3645 = vand.u32 %v2380, 4294901760
      %v3646 = vsub.f32 %v2380, %v3645
      %v3647 = vand.u32 %v3646, 4294901760
      %3648 = vmatmul.mubr.f32.gmra.mrb[0].mxu0 %v3647
      %v3649 = vpop.f32.mrb[0].mxu0
      %v3650 = vadd.f32 %v3330, %v3649
      %v3651 = vpop.f32.mrb[0].mxu0
      %3652 = vmatprep.mubr.f32.mxu0 0.0
      %v3653 = vand.u32 %v2383, 4294901760
      %v3654 = vsub.f32 %v2383, %v3653
      %v3655 = vand.u32 %v3654, 4294901760
      %3656 = vmatmul.mubr.f32.gmra.mrb[0].mxu0 %v3655
      %v3657 = vpop.f32.mrb[0].mxu0
      %v3658 = vadd.f32 %v3337, %v3657
      %v3659 = vpop.f32.mrb[0].mxu0
      %3660 = vmatprep.mubr.f32.mxu0 0.0
      %v3661 = vand.u32 %v2386, 4294901760
      %v3662 = vsub.f32 %v2386, %v3661
      %v3663 = vand.u32 %v3662, 4294901760
      %3664 = vmatmul.mubr.f32.gmra.mrb[0].mxu0 %v3663
      %v3665 = vpop.f32.mrb[0].mxu0
      %v3666 = vadd.f32 %v3344, %v3665
      %v3667 = vpop.f32.mrb[0].mxu0
      %3668 = vmatprep.mubr.f32.mxu0 0.0
      %v3669 = vand.u32 %v2389, 4294901760
      %v3670 = vsub.f32 %v2389, %v3669
      %v3671 = vand.u32 %v3670, 4294901760
      %3672 = vmatmul.mubr.f32.gmra.mrb[0].mxu0 %v3671
      %v3673 = vpop.f32.mrb[0].mxu0
      %v3674 = vadd.f32 %v3351, %v3673
      %v3675 = vpop.f32.mrb[0].mxu0
      %3676 = vmatprep.mubr.f32.mxu0 0.0
      %v3677 = vand.u32 %v2392, 4294901760
      %v3678 = vsub.f32 %v2392, %v3677
      %v3679 = vand.u32 %v3678, 4294901760
      %3680 = vmatmul.mubr.f32.gmra.mrb[0].mxu0 %v3679
      %v3681 = vpop.f32.mrb[0].mxu0
      %v3682 = vadd.f32 %v3358, %v3681
      %v3683 = vpop.f32.mrb[0].mxu0
      %3684 = vmatprep.mubr.f32.mxu0 0.0
      %v3685 = vand.u32 %v2395, 4294901760
      %v3686 = vsub.f32 %v2395, %v3685
      %v3687 = vand.u32 %v3686, 4294901760
      %3688 = vmatmul.mubr.f32.gmra.mrb[0].mxu0 %v3687
      %v3689 = vpop.f32.mrb[0].mxu0
      %v3690 = vadd.f32 %v3365, %v3689
      %v3691 = vpop.f32.mrb[0].mxu0
      %3692 = vmatprep.mubr.f32.mxu0 0.0
      %v3693 = vand.u32 %v2398, 4294901760
      %v3694 = vsub.f32 %v2398, %v3693
      %v3695 = vand.u32 %v3694, 4294901760
      %3696 = vmatmul.mubr.f32.gmra.mrb[0].mxu0 %v3695
      %v3697 = vpop.f32.mrb[0].mxu0
      %v3698 = vadd.f32 %v3372, %v3697
      %v3699 = vpop.f32.mrb[0].mxu0
      %3700 = vmatprep.mubr.f32.mxu0 0.0
      %v3701 = vand.u32 %v2401, 4294901760
      %v3702 = vsub.f32 %v2401, %v3701
      %v3703 = vand.u32 %v3702, 4294901760
      %3704 = vmatmul.mubr.f32.gmra.mrb[0].mxu0 %v3703
      %v3705 = vpop.f32.mrb[0].mxu0
      %v3706 = vadd.f32 %v3379, %v3705
      %v3707 = vpop.f32.mrb[0].mxu0
      %3708 = vdwg.mxu0
      %3709 = vmatprep.subr.mxu0 0.0
      %v3710 = vand.u32 %v2293, 4294901760
      %v3711 = vsub.f32 %v2293, %v3710
      %v3712 = vand.u32 %v3711, 4294901760
      %3713 = vmatpush1.msra.mxu0 %v3712
      %3714 = vmatprep.subr.mxu0 0.0
      %v3715 = vand.u32 %v2294, 4294901760
      %v3716 = vsub.f32 %v2294, %v3715
      %v3717 = vand.u32 %v3716, 4294901760
      %3718 = vmatpush1.msra.mxu0 %v3717
      %3719 = vmatprep.subr.mxu0 0.0
      %v3720 = vand.u32 %v2295, 4294901760
      %v3721 = vsub.f32 %v2295, %v3720
      %v3722 = vand.u32 %v3721, 4294901760
      %3723 = vmatpush1.msra.mxu0 %v3722
      %3724 = vmatprep.subr.mxu0 0.0
      %v3725 = vand.u32 %v2296, 4294901760
      %v3726 = vsub.f32 %v2296, %v3725
      %v3727 = vand.u32 %v3726, 4294901760
      %3728 = vmatpush1.msra.mxu0 %v3727
      %3729 = vmatprep.subr.mxu0 0.0
      %v3730 = vand.u32 %v2297, 4294901760
      %v3731 = vsub.f32 %v2297, %v3730
      %v3732 = vand.u32 %v3731, 4294901760
      %3733 = vmatpush1.msra.mxu0 %v3732
      %3734 = vmatprep.subr.mxu0 0.0
      %v3735 = vand.u32 %v2298, 4294901760
      %v3736 = vsub.f32 %v2298, %v3735
      %v3737 = vand.u32 %v3736, 4294901760
      %3738 = vmatpush1.msra.mxu0 %v3737
      %3739 = vmatprep.subr.mxu0 0.0
      %3740 = vmatpush1.msra.mxu0 0.0
      %3741 = vmatprep.subr.mxu0 0.0
      %3742 = vmatpush1.msra.mxu0 0.0
      %3743 = vmatprep.subr.mxu0 0.0
      %3744 = vmatpush1.msra.mxu0 0.0
      %3745 = vmatprep.subr.mxu0 0.0
      %3746 = vmatpush1.msra.mxu0 0.0
      %3747 = vmatprep.subr.mxu0 0.0
      %3748 = vmatpush1.msra.mxu0 0.0
      %3749 = vmatprep.subr.mxu0 0.0
      %3750 = vmatpush1.msra.mxu0 0.0
      %3751 = vmatprep.subr.mxu0 0.0
      %3752 = vmatpush1.msra.mxu0 0.0
      %3753 = vmatprep.subr.mxu0 0.0
      %3754 = vmatpush1.msra.mxu0 0.0
      %3755 = vmatprep.subr.mxu0 0.0
      %3756 = vmatpush1.msra.mxu0 0.0
      %3757 = vmatprep.subr.mxu0 0.0
      %3758 = vmatpush1.msra.mxu0 0.0
      %3759 = vmatprep.subr.mxu0 0.0
      %3760 = vmatpush1.msra.mxu0 0.0
      %3761 = vmatprep.subr.mxu0 0.0
      %3762 = vmatpush1.msra.mxu0 0.0
      %3763 = vmatprep.subr.mxu0 0.0
      %3764 = vmatpush1.msra.mxu0 0.0
      %3765 = vmatprep.subr.mxu0 0.0
      %3766 = vmatpush1.msra.mxu0 0.0
      %3767 = vmatprep.subr.mxu0 0.0
      %3768 = vmatpush1.msra.mxu0 0.0
      %3769 = vmatprep.subr.mxu0 0.0
      %3770 = vmatpush1.msra.mxu0 0.0
      %3771 = vmatprep.subr.mxu0 0.0
      %3772 = vmatpush1.msra.mxu0 0.0
      %3773 = vmatprep.subr.mxu0 0.0
      %3774 = vmatpush1.msra.mxu0 0.0
      %3775 = vmatprep.subr.mxu0 0.0
      %3776 = vmatpush1.msra.mxu0 0.0
      %3777 = vmatprep.subr.mxu0 0.0
      %3778 = vmatpush1.msra.mxu0 0.0
      %3779 = vmatprep.subr.mxu0 0.0
      %3780 = vmatpush1.msra.mxu0 0.0
      %3781 = vmatprep.subr.mxu0 0.0
      %3782 = vmatpush1.msra.mxu0 0.0
      %3783 = vmatprep.subr.mxu0 0.0
      %3784 = vmatpush1.msra.mxu0 0.0
      %3785 = vmatprep.subr.mxu0 0.0
      %3786 = vmatpush1.msra.mxu0 0.0
      %3787 = vmatprep.subr.mxu0 0.0
      %3788 = vmatpush1.msra.mxu0 0.0
      %3789 = vmatprep.subr.mxu0 0.0
      %3790 = vmatpush1.msra.mxu0 0.0
      %3791 = vmatprep.mubr.f32.mxu0 0.0
      %v3792 = vand.u32 %v2308, 4294901760
      %3793 = vmatmul.mubr.f32.gmra.mrb[0].mxu0 %v3792
      %v3794 = vpop.f32.mrb[0].mxu0
      %v3795 = vadd.f32 %v3458, %v3794
      %v3796 = vpop.f32.mrb[0].mxu0
      %3797 = vmatprep.mubr.f32.mxu0 0.0
      %v3798 = vand.u32 %v2311, 4294901760
      %3799 = vmatmul.mubr.f32.gmra.mrb[0].mxu0 %v3798
      %v3800 = vpop.f32.mrb[0].mxu0
      %v3801 = vadd.f32 %v3466, %v3800
      %v3802 = vpop.f32.mrb[0].mxu0
      %3803 = vmatprep.mubr.f32.mxu0 0.0
      %v3804 = vand.u32 %v2314, 4294901760
      %3805 = vmatmul.mubr.f32.gmra.mrb[0].mxu0 %v3804
      %v3806 = vpop.f32.mrb[0].mxu0
      %v3807 = vadd.f32 %v3474, %v3806
      %v3808 = vpop.f32.mrb[0].mxu0
      %3809 = vmatprep.mubr.f32.mxu0 0.0
      %v3810 = vand.u32 %v2317, 4294901760
      %3811 = vmatmul.mubr.f32.gmra.mrb[0].mxu0 %v3810
      %v3812 = vpop.f32.mrb[0].mxu0
      %v3813 = vadd.f32 %v3482, %v3812
      %v3814 = vpop.f32.mrb[0].mxu0
      %3815 = vmatprep.mubr.f32.mxu0 0.0
      %v3816 = vand.u32 %v2320, 4294901760
      %3817 = vmatmul.mubr.f32.gmra.mrb[0].mxu0 %v3816
      %v3818 = vpop.f32.mrb[0].mxu0
      %v3819 = vadd.f32 %v3490, %v3818
      %v3820 = vpop.f32.mrb[0].mxu0
      %3821 = vmatprep.mubr.f32.mxu0 0.0
      %v3822 = vand.u32 %v2323, 4294901760
      %3823 = vmatmul.mubr.f32.gmra.mrb[0].mxu0 %v3822
      %v3824 = vpop.f32.mrb[0].mxu0
      %v3825 = vadd.f32 %v3498, %v3824
      %v3826 = vpop.f32.mrb[0].mxu0
      %3827 = vmatprep.mubr.f32.mxu0 0.0
      %v3828 = vand.u32 %v2326, 4294901760
      %3829 = vmatmul.mubr.f32.gmra.mrb[0].mxu0 %v3828
      %v3830 = vpop.f32.mrb[0].mxu0
      %v3831 = vadd.f32 %v3506, %v3830
      %v3832 = vpop.f32.mrb[0].mxu0
      %3833 = vmatprep.mubr.f32.mxu0 0.0
      %v3834 = vand.u32 %v2329, 4294901760
      %3835 = vmatmul.mubr.f32.gmra.mrb[0].mxu0 %v3834
      %v3836 = vpop.f32.mrb[0].mxu0
      %v3837 = vadd.f32 %v3514, %v3836
      %v3838 = vpop.f32.mrb[0].mxu0
      %3839 = vmatprep.mubr.f32.mxu0 0.0
      %v3840 = vand.u32 %v2332, 4294901760
      %3841 = vmatmul.mubr.f32.gmra.mrb[0].mxu0 %v3840
      %v3842 = vpop.f32.mrb[0].mxu0
      %v3843 = vadd.f32 %v3522, %v3842
      %v3844 = vpop.f32.mrb[0].mxu0
      %3845 = vmatprep.mubr.f32.mxu0 0.0
      %v3846 = vand.u32 %v2335, 4294901760
      %3847 = vmatmul.mubr.f32.gmra.mrb[0].mxu0 %v3846
      %v3848 = vpop.f32.mrb[0].mxu0
      %v3849 = vadd.f32 %v3530, %v3848
      %v3850 = vpop.f32.mrb[0].mxu0
      %3851 = vmatprep.mubr.f32.mxu0 0.0
      %v3852 = vand.u32 %v2338, 4294901760
      %3853 = vmatmul.mubr.f32.gmra.mrb[0].mxu0 %v3852
      %v3854 = vpop.f32.mrb[0].mxu0
      %v3855 = vadd.f32 %v3538, %v3854
      %v3856 = vpop.f32.mrb[0].mxu0
      %3857 = vmatprep.mubr.f32.mxu0 0.0
      %v3858 = vand.u32 %v2341, 4294901760
      %3859 = vmatmul.mubr.f32.gmra.mrb[0].mxu0 %v3858
      %v3860 = vpop.f32.mrb[0].mxu0
      %v3861 = vadd.f32 %v3546, %v3860
      %v3862 = vpop.f32.mrb[0].mxu0
      %3863 = vmatprep.mubr.f32.mxu0 0.0
      %v3864 = vand.u32 %v2344, 4294901760
      %3865 = vmatmul.mubr.f32.gmra.mrb[0].mxu0 %v3864
      %v3866 = vpop.f32.mrb[0].mxu0
      %v3867 = vadd.f32 %v3554, %v3866
      %v3868 = vpop.f32.mrb[0].mxu0
      %3869 = vmatprep.mubr.f32.mxu0 0.0
      %v3870 = vand.u32 %v2347, 4294901760
      %3871 = vmatmul.mubr.f32.gmra.mrb[0].mxu0 %v3870
      %v3872 = vpop.f32.mrb[0].mxu0
      %v3873 = vadd.f32 %v3562, %v3872
      %v3874 = vpop.f32.mrb[0].mxu0
      %3875 = vmatprep.mubr.f32.mxu0 0.0
      %v3876 = vand.u32 %v2350, 4294901760
      %3877 = vmatmul.mubr.f32.gmra.mrb[0].mxu0 %v3876
      %v3878 = vpop.f32.mrb[0].mxu0
      %v3879 = vadd.f32 %v3570, %v3878
      %v3880 = vpop.f32.mrb[0].mxu0
      %3881 = vmatprep.mubr.f32.mxu0 0.0
      %v3882 = vand.u32 %v2353, 4294901760
      %3883 = vmatmul.mubr.f32.gmra.mrb[0].mxu0 %v3882
      %v3884 = vpop.f32.mrb[0].mxu0
      %v3885 = vadd.f32 %v3578, %v3884
      %v3886 = vpop.f32.mrb[0].mxu0
      %3887 = vmatprep.mubr.f32.mxu0 0.0
      %v3888 = vand.u32 %v2356, 4294901760
      %3889 = vmatmul.mubr.f32.gmra.mrb[0].mxu0 %v3888
      %v3890 = vpop.f32.mrb[0].mxu0
      %v3891 = vadd.f32 %v3586, %v3890
      %v3892 = vpop.f32.mrb[0].mxu0
      %3893 = vmatprep.mubr.f32.mxu0 0.0
      %v3894 = vand.u32 %v2359, 4294901760
      %3895 = vmatmul.mubr.f32.gmra.mrb[0].mxu0 %v3894
      %v3896 = vpop.f32.mrb[0].mxu0
      %v3897 = vadd.f32 %v3594, %v3896
      %v3898 = vpop.f32.mrb[0].mxu0
      %3899 = vmatprep.mubr.f32.mxu0 0.0
      %v3900 = vand.u32 %v2362, 4294901760
      %3901 = vmatmul.mubr.f32.gmra.mrb[0].mxu0 %v3900
      %v3902 = vpop.f32.mrb[0].mxu0
      %v3903 = vadd.f32 %v3602, %v3902
      %v3904 = vpop.f32.mrb[0].mxu0
      %3905 = vmatprep.mubr.f32.mxu0 0.0
      %v3906 = vand.u32 %v2365, 4294901760
      %3907 = vmatmul.mubr.f32.gmra.mrb[0].mxu0 %v3906
      %v3908 = vpop.f32.mrb[0].mxu0
      %v3909 = vadd.f32 %v3610, %v3908
      %v3910 = vpop.f32.mrb[0].mxu0
      %3911 = vmatprep.mubr.f32.mxu0 0.0
      %v3912 = vand.u32 %v2368, 4294901760
      %3913 = vmatmul.mubr.f32.gmra.mrb[0].mxu0 %v3912
      %v3914 = vpop.f32.mrb[0].mxu0
      %v3915 = vadd.f32 %v3618, %v3914
      %v3916 = vpop.f32.mrb[0].mxu0
      %3917 = vmatprep.mubr.f32.mxu0 0.0
      %v3918 = vand.u32 %v2371, 4294901760
      %3919 = vmatmul.mubr.f32.gmra.mrb[0].mxu0 %v3918
      %v3920 = vpop.f32.mrb[0].mxu0
      %v3921 = vadd.f32 %v3626, %v3920
      %v3922 = vpop.f32.mrb[0].mxu0
      %3923 = vmatprep.mubr.f32.mxu0 0.0
      %v3924 = vand.u32 %v2374, 4294901760
      %3925 = vmatmul.mubr.f32.gmra.mrb[0].mxu0 %v3924
      %v3926 = vpop.f32.mrb[0].mxu0
      %v3927 = vadd.f32 %v3634, %v3926
      %v3928 = vpop.f32.mrb[0].mxu0
      %3929 = vmatprep.mubr.f32.mxu0 0.0
      %v3930 = vand.u32 %v2377, 4294901760
      %3931 = vmatmul.mubr.f32.gmra.mrb[0].mxu0 %v3930
      %v3932 = vpop.f32.mrb[0].mxu0
      %v3933 = vadd.f32 %v3642, %v3932
      %v3934 = vpop.f32.mrb[0].mxu0
      %3935 = vmatprep.mubr.f32.mxu0 0.0
      %v3936 = vand.u32 %v2380, 4294901760
      %3937 = vmatmul.mubr.f32.gmra.mrb[0].mxu0 %v3936
      %v3938 = vpop.f32.mrb[0].mxu0
      %v3939 = vadd.f32 %v3650, %v3938
      %v3940 = vpop.f32.mrb[0].mxu0
      %3941 = vmatprep.mubr.f32.mxu0 0.0
      %v3942 = vand.u32 %v2383, 4294901760
      %3943 = vmatmul.mubr.f32.gmra.mrb[0].mxu0 %v3942
      %v3944 = vpop.f32.mrb[0].mxu0
      %v3945 = vadd.f32 %v3658, %v3944
      %v3946 = vpop.f32.mrb[0].mxu0
      %3947 = vmatprep.mubr.f32.mxu0 0.0
      %v3948 = vand.u32 %v2386, 4294901760
      %3949 = vmatmul.mubr.f32.gmra.mrb[0].mxu0 %v3948
      %v3950 = vpop.f32.mrb[0].mxu0
      %v3951 = vadd.f32 %v3666, %v3950
      %v3952 = vpop.f32.mrb[0].mxu0
      %3953 = vmatprep.mubr.f32.mxu0 0.0
      %v3954 = vand.u32 %v2389, 4294901760
      %3955 = vmatmul.mubr.f32.gmra.mrb[0].mxu0 %v3954
      %v3956 = vpop.f32.mrb[0].mxu0
      %v3957 = vadd.f32 %v3674, %v3956
      %v3958 = vpop.f32.mrb[0].mxu0
      %3959 = vmatprep.mubr.f32.mxu0 0.0
      %v3960 = vand.u32 %v2392, 4294901760
      %3961 = vmatmul.mubr.f32.gmra.mrb[0].mxu0 %v3960
      %v3962 = vpop.f32.mrb[0].mxu0
      %v3963 = vadd.f32 %v3682, %v3962
      %v3964 = vpop.f32.mrb[0].mxu0
      %3965 = vmatprep.mubr.f32.mxu0 0.0
      %v3966 = vand.u32 %v2395, 4294901760
      %3967 = vmatmul.mubr.f32.gmra.mrb[0].mxu0 %v3966
      %v3968 = vpop.f32.mrb[0].mxu0
      %v3969 = vadd.f32 %v3690, %v3968
      %v3970 = vpop.f32.mrb[0].mxu0
      %3971 = vmatprep.mubr.f32.mxu0 0.0
      %v3972 = vand.u32 %v2398, 4294901760
      %3973 = vmatmul.mubr.f32.gmra.mrb[0].mxu0 %v3972
      %v3974 = vpop.f32.mrb[0].mxu0
      %v3975 = vadd.f32 %v3698, %v3974
      %v3976 = vpop.f32.mrb[0].mxu0
      %3977 = vmatprep.mubr.f32.mxu0 0.0
      %v3978 = vand.u32 %v2401, 4294901760
      %3979 = vmatmul.mubr.f32.gmra.mrb[0].mxu0 %v3978
      %v3980 = vpop.f32.mrb[0].mxu0
      %v3981 = vadd.f32 %v3706, %v3980
      %v3982 = vpop.f32.mrb[0].mxu0
      %3983 = vdwg.mxu0
      %3984 = vmatprep.subr.mxu0 0.0
      %v3985 = vand.u32 %v2293, 4294901760
      %3986 = vmatpush1.msra.mxu0 %v3985
      %3987 = vmatprep.subr.mxu0 0.0
      %v3988 = vand.u32 %v2294, 4294901760
      %3989 = vmatpush1.msra.mxu0 %v3988
      %3990 = vmatprep.subr.mxu0 0.0
      %v3991 = vand.u32 %v2295, 4294901760
      %3992 = vmatpush1.msra.mxu0 %v3991
      %3993 = vmatprep.subr.mxu0 0.0
      %v3994 = vand.u32 %v2296, 4294901760
      %3995 = vmatpush1.msra.mxu0 %v3994
      %3996 = vmatprep.subr.mxu0 0.0
      %v3997 = vand.u32 %v2297, 4294901760
      %3998 = vmatpush1.msra.mxu0 %v3997
      %3999 = vmatprep.subr.mxu0 0.0
      %v4000 = vand.u32 %v2298, 4294901760
      %4001 = vmatpush1.msra.mxu0 %v4000
      %4002 = vmatprep.subr.mxu0 0.0
      %4003 = vmatpush1.msra.mxu0 0.0
      %4004 = vmatprep.subr.mxu0 0.0
      %4005 = vmatpush1.msra.mxu0 0.0
      %4006 = vmatprep.subr.mxu0 0.0
      %4007 = vmatpush1.msra.mxu0 0.0
      %4008 = vmatprep.subr.mxu0 0.0
      %4009 = vmatpush1.msra.mxu0 0.0
      %4010 = vmatprep.subr.mxu0 0.0
      %4011 = vmatpush1.msra.mxu0 0.0
      %4012 = vmatprep.subr.mxu0 0.0
      %4013 = vmatpush1.msra.mxu0 0.0
      %4014 = vmatprep.subr.mxu0 0.0
      %4015 = vmatpush1.msra.mxu0 0.0
      %4016 = vmatprep.subr.mxu0 0.0
      %4017 = vmatpush1.msra.mxu0 0.0
      %4018 = vmatprep.subr.mxu0 0.0
      %4019 = vmatpush1.msra.mxu0 0.0
      %4020 = vmatprep.subr.mxu0 0.0
      %4021 = vmatpush1.msra.mxu0 0.0
      %4022 = vmatprep.subr.mxu0 0.0
      %4023 = vmatpush1.msra.mxu0 0.0
      %4024 = vmatprep.subr.mxu0 0.0
      %4025 = vmatpush1.msra.mxu0 0.0
      %4026 = vmatprep.subr.mxu0 0.0
      %4027 = vmatpush1.msra.mxu0 0.0
      %4028 = vmatprep.subr.mxu0 0.0
      %4029 = vmatpush1.msra.mxu0 0.0
      %4030 = vmatprep.subr.mxu0 0.0
      %4031 = vmatpush1.msra.mxu0 0.0
      %4032 = vmatprep.subr.mxu0 0.0
      %4033 = vmatpush1.msra.mxu0 0.0
      %4034 = vmatprep.subr.mxu0 0.0
      %4035 = vmatpush1.msra.mxu0 0.0
      %4036 = vmatprep.subr.mxu0 0.0
      %4037 = vmatpush1.msra.mxu0 0.0
      %4038 = vmatprep.subr.mxu0 0.0
      %4039 = vmatpush1.msra.mxu0 0.0
      %4040 = vmatprep.subr.mxu0 0.0
      %4041 = vmatpush1.msra.mxu0 0.0
      %4042 = vmatprep.subr.mxu0 0.0
      %4043 = vmatpush1.msra.mxu0 0.0
      %4044 = vmatprep.subr.mxu0 0.0
      %4045 = vmatpush1.msra.mxu0 0.0
      %4046 = vmatprep.subr.mxu0 0.0
      %4047 = vmatpush1.msra.mxu0 0.0
      %4048 = vmatprep.subr.mxu0 0.0
      %4049 = vmatpush1.msra.mxu0 0.0
      %4050 = vmatprep.subr.mxu0 0.0
      %4051 = vmatpush1.msra.mxu0 0.0
      %4052 = vmatprep.subr.mxu0 0.0
      %4053 = vmatpush1.msra.mxu0 0.0
      %4054 = vmatprep.mubr.f32.mxu0 0.0
      %v4055 = vand.u32 %v2308, 4294901760
      %4056 = vmatmul.mubr.f32.gmra.mrb[0].mxu0 %v4055
      %v4057 = vpop.f32.mrb[0].mxu0
      %v4058 = vadd.f32 %v3795, %v4057
      %v4059 = vpop.f32.mrb[0].mxu0
      %4060 = vmatprep.mubr.f32.mxu0 0.0
      %v4061 = vand.u32 %v2311, 4294901760
      %4062 = vmatmul.mubr.f32.gmra.mrb[0].mxu0 %v4061
      %v4063 = vpop.f32.mrb[0].mxu0
      %v4064 = vadd.f32 %v3801, %v4063
      %v4065 = vpop.f32.mrb[0].mxu0
      %4066 = vmatprep.mubr.f32.mxu0 0.0
      %v4067 = vand.u32 %v2314, 4294901760
      %4068 = vmatmul.mubr.f32.gmra.mrb[0].mxu0 %v4067
      %v4069 = vpop.f32.mrb[0].mxu0
      %v4070 = vadd.f32 %v3807, %v4069
      %v4071 = vpop.f32.mrb[0].mxu0
      %4072 = vmatprep.mubr.f32.mxu0 0.0
      %v4073 = vand.u32 %v2317, 4294901760
      %4074 = vmatmul.mubr.f32.gmra.mrb[0].mxu0 %v4073
      %v4075 = vpop.f32.mrb[0].mxu0
      %v4076 = vadd.f32 %v3813, %v4075
      %v4077 = vpop.f32.mrb[0].mxu0
      %4078 = vmatprep.mubr.f32.mxu0 0.0
      %v4079 = vand.u32 %v2320, 4294901760
      %4080 = vmatmul.mubr.f32.gmra.mrb[0].mxu0 %v4079
      %v4081 = vpop.f32.mrb[0].mxu0
      %v4082 = vadd.f32 %v3819, %v4081
      %v4083 = vpop.f32.mrb[0].mxu0
      %4084 = vmatprep.mubr.f32.mxu0 0.0
      %v4085 = vand.u32 %v2323, 4294901760
      %4086 = vmatmul.mubr.f32.gmra.mrb[0].mxu0 %v4085
      %v4087 = vpop.f32.mrb[0].mxu0
      %v4088 = vadd.f32 %v3825, %v4087
      %v4089 = vpop.f32.mrb[0].mxu0
      %4090 = vmatprep.mubr.f32.mxu0 0.0
      %v4091 = vand.u32 %v2326, 4294901760
      %4092 = vmatmul.mubr.f32.gmra.mrb[0].mxu0 %v4091
      %v4093 = vpop.f32.mrb[0].mxu0
      %v4094 = vadd.f32 %v3831, %v4093
      %v4095 = vpop.f32.mrb[0].mxu0
      %4096 = vmatprep.mubr.f32.mxu0 0.0
      %v4097 = vand.u32 %v2329, 4294901760
      %4098 = vmatmul.mubr.f32.gmra.mrb[0].mxu0 %v4097
      %v4099 = vpop.f32.mrb[0].mxu0
      %v4100 = vadd.f32 %v3837, %v4099
      %v4101 = vpop.f32.mrb[0].mxu0
      %4102 = vmatprep.mubr.f32.mxu0 0.0
      %v4103 = vand.u32 %v2332, 4294901760
      %4104 = vmatmul.mubr.f32.gmra.mrb[0].mxu0 %v4103
      %v4105 = vpop.f32.mrb[0].mxu0
      %v4106 = vadd.f32 %v3843, %v4105
      %v4107 = vpop.f32.mrb[0].mxu0
      %4108 = vmatprep.mubr.f32.mxu0 0.0
      %v4109 = vand.u32 %v2335, 4294901760
      %4110 = vmatmul.mubr.f32.gmra.mrb[0].mxu0 %v4109
      %v4111 = vpop.f32.mrb[0].mxu0
      %v4112 = vadd.f32 %v3849, %v4111
      %v4113 = vpop.f32.mrb[0].mxu0
      %4114 = vmatprep.mubr.f32.mxu0 0.0
      %v4115 = vand.u32 %v2338, 4294901760
      %4116 = vmatmul.mubr.f32.gmra.mrb[0].mxu0 %v4115
      %v4117 = vpop.f32.mrb[0].mxu0
      %v4118 = vadd.f32 %v3855, %v4117
      %v4119 = vpop.f32.mrb[0].mxu0
      %4120 = vmatprep.mubr.f32.mxu0 0.0
      %v4121 = vand.u32 %v2341, 4294901760
      %4122 = vmatmul.mubr.f32.gmra.mrb[0].mxu0 %v4121
      %v4123 = vpop.f32.mrb[0].mxu0
      %v4124 = vadd.f32 %v3861, %v4123
      %v4125 = vpop.f32.mrb[0].mxu0
      %4126 = vmatprep.mubr.f32.mxu0 0.0
      %v4127 = vand.u32 %v2344, 4294901760
      %4128 = vmatmul.mubr.f32.gmra.mrb[0].mxu0 %v4127
      %v4129 = vpop.f32.mrb[0].mxu0
      %v4130 = vadd.f32 %v3867, %v4129
      %v4131 = vpop.f32.mrb[0].mxu0
      %4132 = vmatprep.mubr.f32.mxu0 0.0
      %v4133 = vand.u32 %v2347, 4294901760
      %4134 = vmatmul.mubr.f32.gmra.mrb[0].mxu0 %v4133
      %v4135 = vpop.f32.mrb[0].mxu0
      %v4136 = vadd.f32 %v3873, %v4135
      %v4137 = vpop.f32.mrb[0].mxu0
      %4138 = vmatprep.mubr.f32.mxu0 0.0
      %v4139 = vand.u32 %v2350, 4294901760
      %4140 = vmatmul.mubr.f32.gmra.mrb[0].mxu0 %v4139
      %v4141 = vpop.f32.mrb[0].mxu0
      %v4142 = vadd.f32 %v3879, %v4141
      %v4143 = vpop.f32.mrb[0].mxu0
      %4144 = vmatprep.mubr.f32.mxu0 0.0
      %v4145 = vand.u32 %v2353, 4294901760
      %4146 = vmatmul.mubr.f32.gmra.mrb[0].mxu0 %v4145
      %v4147 = vpop.f32.mrb[0].mxu0
      %v4148 = vadd.f32 %v3885, %v4147
      %v4149 = vpop.f32.mrb[0].mxu0
      %4150 = vmatprep.mubr.f32.mxu0 0.0
      %v4151 = vand.u32 %v2356, 4294901760
      %4152 = vmatmul.mubr.f32.gmra.mrb[0].mxu0 %v4151
      %v4153 = vpop.f32.mrb[0].mxu0
      %v4154 = vadd.f32 %v3891, %v4153
      %v4155 = vpop.f32.mrb[0].mxu0
      %4156 = vmatprep.mubr.f32.mxu0 0.0
      %v4157 = vand.u32 %v2359, 4294901760
      %4158 = vmatmul.mubr.f32.gmra.mrb[0].mxu0 %v4157
      %v4159 = vpop.f32.mrb[0].mxu0
      %v4160 = vadd.f32 %v3897, %v4159
      %v4161 = vpop.f32.mrb[0].mxu0
      %4162 = vmatprep.mubr.f32.mxu0 0.0
      %v4163 = vand.u32 %v2362, 4294901760
      %4164 = vmatmul.mubr.f32.gmra.mrb[0].mxu0 %v4163
      %v4165 = vpop.f32.mrb[0].mxu0
      %v4166 = vadd.f32 %v3903, %v4165
      %v4167 = vpop.f32.mrb[0].mxu0
      %4168 = vmatprep.mubr.f32.mxu0 0.0
      %v4169 = vand.u32 %v2365, 4294901760
      %4170 = vmatmul.mubr.f32.gmra.mrb[0].mxu0 %v4169
      %v4171 = vpop.f32.mrb[0].mxu0
      %v4172 = vadd.f32 %v3909, %v4171
      %v4173 = vpop.f32.mrb[0].mxu0
      %4174 = vmatprep.mubr.f32.mxu0 0.0
      %v4175 = vand.u32 %v2368, 4294901760
      %4176 = vmatmul.mubr.f32.gmra.mrb[0].mxu0 %v4175
      %v4177 = vpop.f32.mrb[0].mxu0
      %v4178 = vadd.f32 %v3915, %v4177
      %v4179 = vpop.f32.mrb[0].mxu0
      %4180 = vmatprep.mubr.f32.mxu0 0.0
      %v4181 = vand.u32 %v2371, 4294901760
      %4182 = vmatmul.mubr.f32.gmra.mrb[0].mxu0 %v4181
      %v4183 = vpop.f32.mrb[0].mxu0
      %v4184 = vadd.f32 %v3921, %v4183
      %v4185 = vpop.f32.mrb[0].mxu0
      %4186 = vmatprep.mubr.f32.mxu0 0.0
      %v4187 = vand.u32 %v2374, 4294901760
      %4188 = vmatmul.mubr.f32.gmra.mrb[0].mxu0 %v4187
      %v4189 = vpop.f32.mrb[0].mxu0
      %v4190 = vadd.f32 %v3927, %v4189
      %v4191 = vpop.f32.mrb[0].mxu0
      %4192 = vmatprep.mubr.f32.mxu0 0.0
      %v4193 = vand.u32 %v2377, 4294901760
      %4194 = vmatmul.mubr.f32.gmra.mrb[0].mxu0 %v4193
      %v4195 = vpop.f32.mrb[0].mxu0
      %v4196 = vadd.f32 %v3933, %v4195
      %v4197 = vpop.f32.mrb[0].mxu0
      %4198 = vmatprep.mubr.f32.mxu0 0.0
      %v4199 = vand.u32 %v2380, 4294901760
      %4200 = vmatmul.mubr.f32.gmra.mrb[0].mxu0 %v4199
      %v4201 = vpop.f32.mrb[0].mxu0
      %v4202 = vadd.f32 %v3939, %v4201
      %v4203 = vpop.f32.mrb[0].mxu0
      %4204 = vmatprep.mubr.f32.mxu0 0.0
      %v4205 = vand.u32 %v2383, 4294901760
      %4206 = vmatmul.mubr.f32.gmra.mrb[0].mxu0 %v4205
      %v4207 = vpop.f32.mrb[0].mxu0
      %v4208 = vadd.f32 %v3945, %v4207
      %v4209 = vpop.f32.mrb[0].mxu0
      %4210 = vmatprep.mubr.f32.mxu0 0.0
      %v4211 = vand.u32 %v2386, 4294901760
      %4212 = vmatmul.mubr.f32.gmra.mrb[0].mxu0 %v4211
      %v4213 = vpop.f32.mrb[0].mxu0
      %v4214 = vadd.f32 %v3951, %v4213
      %v4215 = vpop.f32.mrb[0].mxu0
      %4216 = vmatprep.mubr.f32.mxu0 0.0
      %v4217 = vand.u32 %v2389, 4294901760
      %4218 = vmatmul.mubr.f32.gmra.mrb[0].mxu0 %v4217
      %v4219 = vpop.f32.mrb[0].mxu0
      %v4220 = vadd.f32 %v3957, %v4219
      %v4221 = vpop.f32.mrb[0].mxu0
      %4222 = vmatprep.mubr.f32.mxu0 0.0
      %v4223 = vand.u32 %v2392, 4294901760
      %4224 = vmatmul.mubr.f32.gmra.mrb[0].mxu0 %v4223
      %v4225 = vpop.f32.mrb[0].mxu0
      %v4226 = vadd.f32 %v3963, %v4225
      %v4227 = vpop.f32.mrb[0].mxu0
      %4228 = vmatprep.mubr.f32.mxu0 0.0
      %v4229 = vand.u32 %v2395, 4294901760
      %4230 = vmatmul.mubr.f32.gmra.mrb[0].mxu0 %v4229
      %v4231 = vpop.f32.mrb[0].mxu0
      %v4232 = vadd.f32 %v3969, %v4231
      %v4233 = vpop.f32.mrb[0].mxu0
      %4234 = vmatprep.mubr.f32.mxu0 0.0
      %v4235 = vand.u32 %v2398, 4294901760
      %4236 = vmatmul.mubr.f32.gmra.mrb[0].mxu0 %v4235
      %v4237 = vpop.f32.mrb[0].mxu0
      %v4238 = vadd.f32 %v3975, %v4237
      %v4239 = vpop.f32.mrb[0].mxu0
      %4240 = vmatprep.mubr.f32.mxu0 0.0
      %v4241 = vand.u32 %v2401, 4294901760
      %4242 = vmatmul.mubr.f32.gmra.mrb[0].mxu0 %v4241
      %v4243 = vpop.f32.mrb[0].mxu0
      %v4244 = vadd.f32 %v3981, %v4243
      %v4245 = vpop.f32.mrb[0].mxu0
      %4246 = vdwg.mxu0
      %vm4247 = vcmask 293888
      %4248 = vst.msk [vmem:[%s289] sm:$0xff] %vm4247, %v4058
      %4249 = vst.msk [vmem:[%s289 + $0x8] sm:$0xff] %vm4247, %v4064
      %4250 = vst.msk [vmem:[%s289 + $0x10] sm:$0xff] %vm4247, %v4070
      %4251 = vst.msk [vmem:[%s289 + $0x18] sm:$0xff] %vm4247, %v4076
      %4252 = vst.msk [vmem:[%s289 + $0x20] sm:$0xff] %vm4247, %v4082
      %4253 = vst.msk [vmem:[%s289 + $0x28] sm:$0xff] %vm4247, %v4088
      %4254 = vst.msk [vmem:[%s289 + $0x30] sm:$0xff] %vm4247, %v4094
      %4255 = vst.msk [vmem:[%s289 + $0x38] sm:$0xff] %vm4247, %v4100
      %4256 = vst.msk [vmem:[%s289 + $0x40] sm:$0xff] %vm4247, %v4106
      %4257 = vst.msk [vmem:[%s289 + $0x48] sm:$0xff] %vm4247, %v4112
      %4258 = vst.msk [vmem:[%s289 + $0x50] sm:$0xff] %vm4247, %v4118
      %4259 = vst.msk [vmem:[%s289 + $0x58] sm:$0xff] %vm4247, %v4124
      %4260 = vst.msk [vmem:[%s289 + $0x60] sm:$0xff] %vm4247, %v4130
      %4261 = vst.msk [vmem:[%s289 + $0x68] sm:$0xff] %vm4247, %v4136
      %4262 = vst.msk [vmem:[%s289 + $0x70] sm:$0xff] %vm4247, %v4142
      %4263 = vst.msk [vmem:[%s289 + $0x78] sm:$0xff] %vm4247, %v4148
      %4264 = vst.msk [vmem:[%s289 + $0x80] sm:$0xff] %vm4247, %v4154
      %4265 = vst.msk [vmem:[%s289 + $0x88] sm:$0xff] %vm4247, %v4160
      %4266 = vst.msk [vmem:[%s289 + $0x90] sm:$0xff] %vm4247, %v4166
      %4267 = vst.msk [vmem:[%s289 + $0x98] sm:$0xff] %vm4247, %v4172
      %4268 = vst.msk [vmem:[%s289 + $0xa0] sm:$0xff] %vm4247, %v4178
      %4269 = vst.msk [vmem:[%s289 + $0xa8] sm:$0xff] %vm4247, %v4184
      %4270 = vst.msk [vmem:[%s289 + $0xb0] sm:$0xff] %vm4247, %v4190
      %4271 = vst.msk [vmem:[%s289 + $0xb8] sm:$0xff] %vm4247, %v4196
      %4272 = vst.msk [vmem:[%s289 + $0xc0] sm:$0xff] %vm4247, %v4202
      %4273 = vst.msk [vmem:[%s289 + $0xc8] sm:$0xff] %vm4247, %v4208
      %4274 = vst.msk [vmem:[%s289 + $0xd0] sm:$0xff] %vm4247, %v4214
      %4275 = vst.msk [vmem:[%s289 + $0xd8] sm:$0xff] %vm4247, %v4220
      %4276 = vst.msk [vmem:[%s289 + $0xe0] sm:$0xff] %vm4247, %v4226
      %4277 = vst.msk [vmem:[%s289 + $0xe8] sm:$0xff] %vm4247, %v4232
      %4278 = vst.msk [vmem:[%s289 + $0xf0] sm:$0xff] %vm4247, %v4238
      %4279 = vst.msk [vmem:[%s289 + $0xf8] sm:$0xff] %vm4247, %v4244
      %s4280 = smul.u32 32, %s18
      %p4281 = scmp.lt.s32.totalorder %s4280, 127
      %s4282 = scalar_select %p4281, %s4280, 127
      %s4283 = smul.addr %s4282, 8
      %s4284 = scalar_lea.vmem %s5, %s4283
      %s4285 = smul.u32 32, %s18
      %p4286 = scmp.lt.s32.totalorder %s4285, 127
      %s4287 = scalar_select %p4286, %s4285, 127
      %s4288 = smul.addr %s4287, 8
      %s4289 = scalar_lea.vmem %s6, %s4288
      // Predicated region
      $region41: #{to_smplh_forward.1} parent=39 // pred_check
        %p4290 = pneg %p151
      $region42: #{to_smplh_forward.1} parent=39 // pred_check_branch
        %4292 = sbr.rel (%p4290) target = $region44
      $region43: #{to_smplh_forward.1} parent=39 // pred_region
        %s4293 = smul.u32 32, %s18
      $region44: #{to_smplh_forward.1} parent=39 // pred_fallthru
        _
      // Predicated region
      $region45: #{to_smplh_forward.1} parent=39 // pred_check
        %p4294 = pneg %p177
      $region46: #{to_smplh_forward.1} parent=39 // pred_check_branch
        %4296 = sbr.rel (%p4294) target = $region48
      $region47: #{to_smplh_forward.1} parent=39 // pred_region
        %s4297 = smul.u32 32, %s18
      $region48: #{to_smplh_forward.1} parent=39 // pred_fallthru
        _
    $region40: #{to_smplh_forward.1} parent=5 // pred_fallthru
      _
    %p4298 = scmp.le.s32.totalorder 2, %s13
    // Predicated region
    $region49: #{to_smplh_forward.1} parent=5 // pred_check
      %p4299 = pneg %p4298
    $region50: #{to_smplh_forward.1} parent=5 // pred_check_branch
      %4301 = sbr.rel (%p4299) target = $region52
    $region51: #{to_smplh_forward.1} parent=5 // pred_region
      %s4302 = ssub.s32 %s13, 2
      // Predicated region
      $region53: #{to_smplh_forward.1} parent=51 // pred_check
        %p4303 = pneg %p157
      $region54: #{to_smplh_forward.1} parent=51 // pred_check_branch
        %4305 = sbr.rel (%p4303) target = $region56
      $region55: #{to_smplh_forward.1} parent=51 // pred_region
        %s4306 = smul.u32 32, %s19
        %p4307 = scmp.lt.s32.totalorder %s4306, 127
        %s4308 = scalar_select %p4307, %s4306, 127
        %s4309 = smul.addr %s4308, 8
        %s4310 = scalar_lea.vmem %s5, %s4309
      $region56: #{to_smplh_forward.1} parent=51 // pred_fallthru
        _
      // Predicated region
      $region57: #{to_smplh_forward.1} parent=51 // pred_check
        %p4311 = pneg %p183
      $region58: #{to_smplh_forward.1} parent=51 // pred_check_branch
        %4313 = sbr.rel (%p4311) target = $region60
      $region59: #{to_smplh_forward.1} parent=51 // pred_region
        %s4314 = smul.u32 32, %s19
        %p4315 = scmp.lt.s32.totalorder %s4314, 127
        %s4316 = scalar_select %p4315, %s4314, 127
        %s4317 = smul.addr %s4316, 8
        %s4318 = scalar_lea.vmem %s6, %s4317
      $region60: #{to_smplh_forward.1} parent=51 // pred_fallthru
        _
    $region52: #{to_smplh_forward.1} parent=5 // pred_fallthru
      _
  $region6: #{to_smplh_forward.1} parent=0 // loop_footer
    %s17 = sadd.s32 1, %s13
  $region7: #{to_smplh_forward.1} parent=0 // loop_footer_branch
    %12 = sbr.rel target = $region3
  $region8: #{to_smplh_forward.1} parent=0 // loop_exit
    _

</llo_original>
